<compile_context>
chip_gen: v5e
topology: v5e:2x2
jax: 0.10.0
libtpu: 0.0.40
codegen_flags: <defaults>
</compile_context>

<pallas_src>
import functools

import jax
import jax.numpy as jnp
from jax.experimental import pallas as pl
from jax.experimental.pallas import tpu as pltpu

EPS = 1e-5
LANES = 128
MXU_DTYPE = jnp.bfloat16            # MXU operand dtype (accumulation is f32)


def _ceil_to(n, m):
    return ((n + m - 1) // m) * m


@functools.lru_cache(maxsize=None)
def _vmem_limit_bytes():
    """Per-generation VMEM limit: ~3/4 of physical capacity, capped to leave
    headroom for Mosaic's internal scratch (v5e/v6e: ~96 MiB, v7x: 48 MiB)."""
    cap = 64 << 20
    try:
        info = pltpu.get_tpu_info()
        cap = int(getattr(info, "vmem_capacity_bytes", cap) or cap)
    except Exception:
        pass
    return int(min(cap * 3 // 4, 112 << 20))


def _compiler_params(sem):
    return pltpu.CompilerParams(dimension_semantics=sem,
                                vmem_limit_bytes=_vmem_limit_bytes())


def _row_block(Ho, Wo, target_rows=128):
    """Rows of output per inner accumulation chunk (keeps the f32 accumulator
    register-resident across the 9 tap matmuls)."""
    return min(Ho, max(1, target_rows // max(Wo, 1)))


# ----------------------------------------------------------------------------
# Pallas kernels
# ----------------------------------------------------------------------------
def _conv3x3_kernel(taps, Ho, Wo, mblk, with_sc, *refs):
    """3x3 conv of one image as 9 accumulating tap-matmuls on the MXU.

    The input is the stride-phase-decomposed, zero-padded image (bf16, phases
    stacked along the row axis); each tap is a contiguous (rows, Wo) slice.
    The output is produced in M-chunks of `mblk` rows so the f32 accumulator
    stays in vregs across the 9 dots.  Per-image partial sum / sum-of-squares
    are emitted for the BatchNorm batch statistics (reduced in JAX, keeping
    the batch grid axis 'parallel').  When `with_sc` is set, the 1x1 stride-s
    shortcut conv is computed from the centre-tap patch of the same resident
    tile (x is read from HBM only once for both branches).
    """
    if with_sc:
        (x_ref, w_ref, wsc_ref,
         y_ref, s_ref, ss_ref, ysc_ref, ssc_ref, sssc_ref) = refs
    else:
        x_ref, w_ref, y_ref, s_ref, ss_ref = refs

    ci = x_ref.shape[-1]
    co = w_ref.shape[-1]
    mid = len(taps) // 2

    s_tot = jnp.zeros((1, co), jnp.float32)
    ss_tot = jnp.zeros((1, co), jnp.float32)
    if with_sc:
        ssc_tot = jnp.zeros((1, co), jnp.float32)
        sssc_tot = jnp.zeros((1, co), jnp.float32)

    for h0 in range(0, Ho, mblk):
        hb = min(mblk, Ho - h0)
        rows = hb * Wo
        acc = jnp.zeros((rows, co), jnp.float32)
        centre = None
        for t, (ro, dx) in enumerate(taps):
            patch = x_ref[0, ro + h0:ro + h0 + hb, dx:dx + Wo, :]
            patch = patch.reshape(rows, ci)
            if t == mid:
                centre = patch              # == x[::s, ::s]  (1x1-conv input)
            acc = acc + jnp.dot(patch, w_ref[t],
                                preferred_element_type=jnp.float32)

        y_ref[0, h0 * Wo:h0 * Wo + rows, :] = acc
        s_tot = s_tot + jnp.sum(acc, axis=0, keepdims=True)
        ss_tot = ss_tot + jnp.sum(acc * acc, axis=0, keepdims=True)

        if with_sc:
            ysc = jnp.dot(centre, wsc_ref[0],
                          preferred_element_type=jnp.float32)
            ysc_ref[0, h0 * Wo:h0 * Wo + rows, :] = ysc
            ssc_tot = ssc_tot + jnp.sum(ysc, axis=0, keepdims=True)
            sssc_tot = sssc_tot + jnp.sum(ysc * ysc, axis=0, keepdims=True)

    s_ref[0] = s_tot
    ss_ref[0] = ss_tot
    if with_sc:
        ssc_ref[0] = ssc_tot
        sssc_ref[0] = sssc_tot


def _conv3x3_fused_bn_relu_kernel(Ho, Wo, mblk, y1_ref, sc_ref, sh_ref, w_ref,
                                  y_ref, s_ref, ss_ref, apad_ref):
    """BN1 + ReLU fused into the front of the second (stride-1) 3x3 conv.

    The normalized activation never touches HBM: it is cast once to bf16 and
    written into a padded VMEM scratch.  Only the 1-wide halo is zeroed per
    step (the interior is fully overwritten every step), removing the
    full-tile memset from the store port.  The 9 tap matmuls read bf16
    directly (no per-tap casts), accumulating in f32 per M-chunk.
    """
    co = w_ref.shape[-1]
    a = jnp.maximum(y1_ref[0] * sc_ref[...] + sh_ref[...], 0.0)   # f32 BN+ReLU

    zrow = jnp.zeros((1, Wo + 2, co), apad_ref.dtype)
    zcol = jnp.zeros((Ho, 1, co), apad_ref.dtype)
    apad_ref[0:1, :, :] = zrow
    apad_ref[Ho + 1:Ho + 2, :, :] = zrow
    apad_ref[1:Ho + 1, 0:1, :] = zcol
    apad_ref[1:Ho + 1, Wo + 1:Wo + 2, :] = zcol
    apad_ref[1:Ho + 1, 1:Wo + 1, :] = a.astype(apad_ref.dtype)

    s_tot = jnp.zeros((1, co), jnp.float32)
    ss_tot = jnp.zeros((1, co), jnp.float32)
    for h0 in range(0, Ho, mblk):
        hb = min(mblk, Ho - h0)
        rows = hb * Wo
        acc = jnp.zeros((rows, co), jnp.float32)
        for ky in range(3):
            for kx in range(3):
                patch = apad_ref[ky + h0:ky + h0 + hb, kx:kx + Wo, :]
                patch = patch.reshape(rows, co)
                acc = acc + jnp.dot(patch, w_ref[ky * 3 + kx],
                                    preferred_element_type=jnp.float32)
        y_ref[0, h0 * Wo:h0 * Wo + rows, :] = acc
        s_tot = s_tot + jnp.sum(acc, axis=0, keepdims=True)
        ss_tot = ss_tot + jnp.sum(acc * acc, axis=0, keepdims=True)

    s_ref[0] = s_tot
    ss_ref[0] = ss_tot


def _add_bn_relu_kernel(y_ref, sc_ref, sh_ref, r_ref, rsc_ref, rsh_ref, o_ref):
    """out = relu(BN2(y2) + BN_s(shortcut)); row-tiled elementwise epilogue."""
    left = y_ref[...] * sc_ref[...] + sh_ref[...]
    right = r_ref[...] * rsc_ref[...] + rsh_ref[...]
    o_ref[...] = jnp.maximum(left + right, 0.0)


# ----------------------------------------------------------------------------
# pallas_call wrappers
# ----------------------------------------------------------------------------
def _conv3x3(phases, w_taps, wsc_taps, taps, Ho, Wo):
    """phases: (N, s*s*Hp, Wp, Ci) bf16; w_taps: (9, Ci, Co) bf16."""
    N, hstack, wp, ci = phases.shape
    co = w_taps.shape[-1]
    with_sc = wsc_taps is not None
    mblk = _row_block(Ho, Wo)
    kern = functools.partial(_conv3x3_kernel, tuple(taps), Ho, Wo, mblk,
                             with_sc)

    y_shape = jax.ShapeDtypeStruct((N, Ho * Wo, co), jnp.float32)
    st_shape = jax.ShapeDtypeStruct((N, 1, co), jnp.float32)
    y_spec = pl.BlockSpec((1, Ho * Wo, co), lambda n: (n, 0, 0))
    st_spec = pl.BlockSpec((1, 1, co), lambda n: (n, 0, 0))

    in_specs = [pl.BlockSpec((1, hstack, wp, ci), lambda n: (n, 0, 0, 0)),
                pl.BlockSpec((w_taps.shape[0], ci, co), lambda n: (0, 0, 0))]
    args = [phases, w_taps]
    out_shape = [y_shape, st_shape, st_shape]
    out_specs = [y_spec, st_spec, st_spec]
    if with_sc:
        in_specs.append(pl.BlockSpec((1, ci, co), lambda n: (0, 0, 0)))
        args.append(wsc_taps)
        out_shape += [y_shape, st_shape, st_shape]
        out_specs += [y_spec, st_spec, st_spec]

    return pl.pallas_call(
        kern,
        out_shape=tuple(out_shape),
        grid=(N,),
        in_specs=in_specs,
        out_specs=tuple(out_specs),
        compiler_params=_compiler_params(("parallel",)),
    )(*args)


def _conv3x3_fused(y1, sc1, sh1, w_taps, Ho, Wo):
    """Second conv with BN1+ReLU fused at its input.  y1: (N, Ho*Wo, Co) f32."""
    N = y1.shape[0]
    co = w_taps.shape[-1]
    y1_4d = y1.reshape(N, Ho, Wo, co)
    mblk = _row_block(Ho, Wo)
    kern = functools.partial(_conv3x3_fused_bn_relu_kernel, Ho, Wo, mblk)
    st_spec = pl.BlockSpec((1, 1, co), lambda n: (n, 0, 0))
    return pl.pallas_call(
        kern,
        out_shape=(jax.ShapeDtypeStruct((N, Ho * Wo, co), jnp.float32),
                   jax.ShapeDtypeStruct((N, 1, co), jnp.float32),
                   jax.ShapeDtypeStruct((N, 1, co), jnp.float32)),
        grid=(N,),
        in_specs=[pl.BlockSpec((1, Ho, Wo, co), lambda n: (n, 0, 0, 0)),
                  pl.BlockSpec((1, co), lambda n: (0, 0)),
                  pl.BlockSpec((1, co), lambda n: (0, 0)),
                  pl.BlockSpec((9, co, co), lambda n: (0, 0, 0))],
        out_specs=(pl.BlockSpec((1, Ho * Wo, co), lambda n: (n, 0, 0)),
                   st_spec, st_spec),
        scratch_shapes=[pltpu.VMEM((Ho + 2, Wo + 2, co), MXU_DTYPE)],
        compiler_params=_compiler_params(("parallel",)),
    )(y1_4d, sc1, sh1, w_taps)


def _add_bn_relu(y2d, sc, sh, r2d, rsc, rsh, max_tile=2048):
    """Row-tiled fused epilogue over the (N*Ho*Wo, Cp) slab.  Rows are padded
    up to a multiple of the tile (no exact-divisibility fallback)."""
    R, co = y2d.shape
    T = min(max_tile, _ceil_to(R, 8))
    Rp = _ceil_to(R, T)
    if Rp != R:
        pad = ((0, Rp - R), (0, 0))
        y2d = jnp.pad(y2d, pad)
        r2d = jnp.pad(r2d, pad)
    mat = pl.BlockSpec((T, co), lambda i: (i, 0))
    vec = pl.BlockSpec((1, co), lambda i: (0, 0))
    out = pl.pallas_call(
        _add_bn_relu_kernel,
        out_shape=jax.ShapeDtypeStruct((Rp, co), jnp.float32),
        grid=(Rp // T,),
        in_specs=[mat, vec, vec, mat, vec, vec],
        out_specs=mat,
        compiler_params=_compiler_params(("parallel",)),
    )(y2d, sc, sh, r2d, rsc, rsh)
    return out[:R] if Rp != R else out


# ----------------------------------------------------------------------------
# JAX glue (layout plumbing only; all heavy math is in the kernels)
# ----------------------------------------------------------------------------
def _pad_channels(x, cp):
    c = x.shape[-1]
    if c == cp:
        return x
    return jnp.pad(x, [(0, 0)] * (x.ndim - 1) + [(0, cp - c)])


def _phase_decompose(x, k, stride, pad):
    """Zero-pad spatially and split into stride*stride phases (stacked along
    the row axis) so that every conv tap is a contiguous (Ho, Wo) slice —
    total HBM footprint ~= one copy of the padded input (no im2col blow-up).

    Returns phases (N, s*s*Hp, Wp, C) and per tap (ky,kx) the (row_off, dx)
    pair such that tap patch = phases[n, row_off:row_off+Ho, dx:dx+Wo, :].
    """
    N, H, W, C = x.shape
    xp = jnp.pad(x, ((0, 0), (pad, pad), (pad, pad), (0, 0)))
    Ho = (H + 2 * pad - k) // stride + 1
    Wo = (W + 2 * pad - k) // stride + 1
    hp = Ho + (k - 1) // stride
    wp = Wo + (k - 1) // stride
    phs = []
    for q in range(stride):
        for p in range(stride):
            ph = xp[:, q::stride, p::stride, :][:, :hp, :wp, :]
            ph = jnp.pad(ph, ((0, 0), (0, hp - ph.shape[1]),
                              (0, wp - ph.shape[2]), (0, 0)))
            phs.append(ph)
    phases = jnp.concatenate(phs, axis=1)         # (N, s*s*hp, wp, C)
    taps = [((((ky % stride) * stride + (kx % stride)) * hp + ky // stride),
             kx // stride)
            for ky in range(k) for kx in range(k)]
    return phases, taps, Ho, Wo


def _weight_taps(w, ci_p, co_p):
    """(Cout, Cin, kh, kw) -> (kh*kw, Cin_p, Cout_p), zero-padded, tap=ky*kw+kx."""
    co, ci, kh, kw = w.shape
    wt = jnp.transpose(w, (2, 3, 1, 0)).reshape(kh * kw, ci, co)
    return jnp.pad(wt, ((0, 0), (0, ci_p - ci), (0, co_p - co)))


def _bn_affine(s_part, ss_part, count, gamma, beta, eps=EPS):
    """Fold per-grid-step partial batch stats into per-channel scale/shift
    (all in f32)."""
    cp = s_part.shape[-1]
    s = jnp.sum(s_part, axis=(0, 1))
    ss = jnp.sum(ss_part, axis=(0, 1))
    mean = s / count
    var = jnp.maximum(ss / count - mean * mean, 0.0)
    g = jnp.pad(gamma.astype(jnp.float32), (0, cp - gamma.shape[0]))
    b = jnp.pad(beta.astype(jnp.float32), (0, cp - beta.shape[0]))
    scale = g / jnp.sqrt(var + eps)
    shift = b - mean * scale
    return scale.reshape(1, cp), shift.reshape(1, cp)


def residual_block_forward_nhwc(x, params, stride):
    """ResidualBlock forward, NHWC in / NHWC out (channels on TPU lanes)."""
    N, H, W, Cin = x.shape
    Cout = params["w1"].shape[0]
    ci_p = _ceil_to(Cin, LANES)
    co_p = _ceil_to(Cout, LANES)
    has_sc = (stride != 1) or (Cin != Cout)

    x_p = _pad_channels(x.astype(jnp.float32), ci_p)

    # conv1 (3x3, stride) [+ fused 1x1 shortcut conv] with per-image BN partials
    phases, taps, Ho, Wo = _phase_decompose(x_p, 3, stride, 1)
    phases = phases.astype(MXU_DTYPE)           # bf16 conv operands in HBM/VMEM
    w1t = _weight_taps(params["w1"], ci_p, co_p).astype(MXU_DTYPE)
    if has_sc:
        wsct = _weight_taps(params["wsc"], ci_p, co_p).astype(MXU_DTYPE)
        y1, s1, ss1, ysc, ssc, sssc = _conv3x3(phases, w1t, wsct, taps, Ho, Wo)
    else:
        y1, s1, ss1 = _conv3x3(phases, w1t, None, taps, Ho, Wo)

    count = float(N * Ho * Wo)
    sc1, sh1 = _bn_affine(s1, ss1, count, params["g1"], params["b1"])

    # conv2 (3x3, stride 1) with BN1 + ReLU fused at its input (a1 never in HBM)
    w2t = _weight_taps(params["w2"], co_p, co_p).astype(MXU_DTYPE)
    y2, s2, ss2 = _conv3x3_fused(y1, sc1, sh1, w2t, Ho, Wo)
    sc2, sh2 = _bn_affine(s2, ss2, count, params["g2"], params["b2"])

    # shortcut branch
    if has_sc:
        scs, shs = _bn_affine(ssc, sssc, count, params["gsc"], params["bsc"])
        r2d = ysc.reshape(N * Ho * Wo, co_p)
    else:  # identity: stride == 1 and Cin == Cout (=> ci_p == co_p)
        r2d = x_p.reshape(N * Ho * Wo, co_p)
        scs = jnp.ones((1, co_p), jnp.float32)
        shs = jnp.zeros((1, co_p), jnp.float32)

    # fused epilogue: BN2(left) + BN_s(shortcut) -> add -> ReLU  (row-tiled)
    out = _add_bn_relu(y2.reshape(N * Ho * Wo, co_p), sc2, sh2, r2d, scs, shs)
    return out.reshape(N, Ho, Wo, co_p)[..., :Cout]


@functools.partial(jax.jit, static_argnums=(2,))
def residual_block_forward(x_nchw, params, stride):
    """PyTorch-compatible wrapper: NCHW in / NCHW out.  The NCHW<->NHWC
    transposes live only at this boundary (when chaining blocks, call
    residual_block_forward_nhwc directly to keep everything channels-last)."""
    x = jnp.transpose(x_nchw, (0, 2, 3, 1))
    out = residual_block_forward_nhwc(x, params, stride)
    return jnp.transpose(out, (0, 3, 1, 2))


# ----------------------------------------------------------------------------
# Pure-JAX reference (mirrors the PyTorch module in training mode)
# ----------------------------------------------------------------------------
def ref_forward(x, params, stride, conv_dtype=jnp.float32, eps=EPS):
    """conv_dtype=bfloat16 reproduces the kernel's MXU operand precision."""
    def conv(v, w, s, pad):
        return jax.lax.conv_general_dilated(
            v.astype(conv_dtype), w.astype(conv_dtype), (s, s),
            [(pad, pad), (pad, pad)],
            dimension_numbers=("NCHW", "OIHW", "NCHW"),
            preferred_element_type=jnp.float32)

    def bn(y, g, b):
        m = y.mean(axis=(0, 2, 3), keepdims=True)
        v = ((y - m) ** 2).mean(axis=(0, 2, 3), keepdims=True)
        return (y - m) / jnp.sqrt(v + eps) * g.reshape(1, -1, 1, 1) + b.reshape(1, -1, 1, 1)

    out = jnp.maximum(bn(conv(x, params["w1"], stride, 1), params["g1"], params["b1"]), 0.0)
    out = bn(conv(out, params["w2"], 1, 1), params["g2"], params["b2"])
    if stride != 1 or x.shape[1] != params["w1"].shape[0]:
        short = bn(conv(x, params["wsc"], stride, 0), params["gsc"], params["bsc"])
    else:
        short = x
    return jnp.maximum(out + short, 0.0)


# ----------------------------------------------------------------------------
if __name__ == "__main__":
    def run_case(key, N, Cin, Cout, H, W, stride):
        k1, k2, k3, k4 = jax.random.split(key, 4)
        params = dict(
            w1=0.2 * jax.random.normal(k1, (Cout, Cin, 3, 3), jnp.float32),
            w2=0.2 * jax.random.normal(k2, (Cout, Cout, 3, 3), jnp.float32),
            wsc=0.2 * jax.random.normal(k3, (Cout, Cin, 1, 1), jnp.float32),
            g1=jnp.ones((Cout,), jnp.float32), b1=jnp.zeros((Cout,), jnp.float32),
            g2=jnp.ones((Cout,), jnp.float32), b2=jnp.zeros((Cout,), jnp.float32),
            gsc=jnp.ones((Cout,), jnp.float32), bsc=jnp.zeros((Cout,), jnp.float32),
        )
        x = jax.random.normal(k4, (N, Cin, H, W), jnp.float32)

        out = jax.block_until_ready(residual_block_forward(x, params, stride))
        assert out.shape == (N, Cout, H // stride, W // stride), out.shape

        # strict check vs. a reference with matching (bf16) MXU operand precision
        ref_m = ref_forward(x, params, stride, conv_dtype=MXU_DTYPE)
        err_m = float(jnp.max(jnp.abs(out - ref_m)))
        assert jnp.allclose(out, ref_m, atol=5e-3, rtol=5e-3), err_m

        # sanity check vs. the full-f32 reference (bf16 MXU operands => looser)
        ref_f = ref_forward(x, params, stride, conv_dtype=jnp.float32)
        err_f = float(jnp.max(jnp.abs(out - ref_f)))
        assert jnp.allclose(out, ref_f, atol=1e-1, rtol=1e-1), err_f

    keys = jax.random.split(jax.random.PRNGKey(0), 2)
    run_case(keys[0], N=2, Cin=4, Cout=8, H=16, W=16, stride=2)   # projection shortcut
    run_case(keys[1], N=2, Cin=8, Cout=8, H=8, W=8, stride=1)     # identity shortcut
    print("KERNEL_OK")
</pallas_src>

<mosaic_0001>
module attributes {stable_mosaic.version = 11 : i64} {
  func.func @_conv3x3_kernel(%arg0: i32, %arg1: memref<1x36x9x128xbf16, #tpu.memory_space<vmem>>, %arg2: memref<9x128x128xbf16, #tpu.memory_space<vmem>>, %arg3: memref<1x128x128xbf16, #tpu.memory_space<vmem>>, %arg4: memref<1x64x128xf32, #tpu.memory_space<vmem>>, %arg5: memref<1x1x128xf32, #tpu.memory_space<vmem>>, %arg6: memref<1x1x128xf32, #tpu.memory_space<vmem>>, %arg7: memref<1x64x128xf32, #tpu.memory_space<vmem>>, %arg8: memref<1x1x128xf32, #tpu.memory_space<vmem>>, %arg9: memref<1x1x128xf32, #tpu.memory_space<vmem>>) attributes {dimension_semantics = [#tpu.dimension_semantics<parallel>], iteration_bounds = array<i64: 2>, scalar_prefetch = 0 : i64, scratch_operands = 0 : i64, tpu.core_type = #tpu.core_type<tc>, window_params = [{transform_indices = @transform_0, window_bounds = array<i64: 1, 36, 9, 128>}, {pipeline_mode = #tpu.pipeline_mode<synchronous>, transform_indices = @transform_1, window_bounds = array<i64: 9, 128, 128>}, {pipeline_mode = #tpu.pipeline_mode<synchronous>, transform_indices = @transform_2, window_bounds = array<i64: 1, 128, 128>}, {transform_indices = @transform_3, window_bounds = array<i64: 1, 64, 128>}, {transform_indices = @transform_4, window_bounds = array<i64: 1, 1, 128>}, {transform_indices = @transform_5, window_bounds = array<i64: 1, 1, 128>}, {transform_indices = @transform_6, window_bounds = array<i64: 1, 64, 128>}, {transform_indices = @transform_7, window_bounds = array<i64: 1, 1, 128>}, {transform_indices = @transform_8, window_bounds = array<i64: 1, 1, 128>}]} {
    %cst = arith.constant 0.000000e+00 : f32
    %0 = vector.broadcast %cst : f32 to vector<1x128xf32>
    %cst_0 = arith.constant 0.000000e+00 : f32
    %1 = vector.broadcast %cst_0 : f32 to vector<1x128xf32>
    %cst_1 = arith.constant 0.000000e+00 : f32
    %2 = vector.broadcast %cst_1 : f32 to vector<1x128xf32>
    %cst_2 = arith.constant 0.000000e+00 : f32
    %3 = vector.broadcast %cst_2 : f32 to vector<1x128xf32>
    %cst_3 = arith.constant 0.000000e+00 : f32
    %4 = vector.broadcast %cst_3 : f32 to vector<64x128xf32>
    %c0 = arith.constant 0 : index
    %c0_4 = arith.constant 0 : index
    %c0_5 = arith.constant 0 : index
    %c0_6 = arith.constant 0 : index
    %5 = vector.load %arg1[%c0, %c0_4, %c0_5, %c0_6] : memref<1x36x9x128xbf16, #tpu.memory_space<vmem>>, vector<1x8x8x128xbf16>
    %6 = vector.shape_cast %5 : vector<1x8x8x128xbf16> to vector<8x8x128xbf16>
    %7 = vector.shape_cast %6 : vector<8x8x128xbf16> to vector<64x128xbf16>
    %c0_7 = arith.constant 0 : index
    %c0_8 = arith.constant 0 : index
    %c0_9 = arith.constant 0 : index
    %8 = vector.load %arg2[%c0_7, %c0_8, %c0_9] : memref<9x128x128xbf16, #tpu.memory_space<vmem>>, vector<1x128x128xbf16>
    %9 = vector.shape_cast %8 : vector<1x128x128xbf16> to vector<128x128xbf16>
    %cst_10 = arith.constant dense<0.000000e+00> : vector<64x128xf32>
    %10 = tpu.matmul %7, %9, %cst_10 {dimension_numbers = #tpu.dot_dimension_numbers<[1], [0], [0], [1], [0, 0, 1, 1], [], []>} : vector<64x128xbf16>, vector<128x128xbf16>, vector<64x128xf32> -> vector<64x128xf32>
    %11 = arith.addf %4, %10 : vector<64x128xf32>
    %c0_11 = arith.constant 0 : index
    %c9 = arith.constant 9 : index
    %c0_12 = arith.constant 0 : index
    %c0_13 = arith.constant 0 : index
    %12 = vector.load %arg1[%c0_11, %c9, %c0_12, %c0_13] : memref<1x36x9x128xbf16, #tpu.memory_space<vmem>>, vector<1x8x8x128xbf16>
    %13 = vector.shape_cast %12 : vector<1x8x8x128xbf16> to vector<8x8x128xbf16>
    %14 = vector.shape_cast %13 : vector<8x8x128xbf16> to vector<64x128xbf16>
    %c1 = arith.constant 1 : index
    %c0_14 = arith.constant 0 : index
    %c0_15 = arith.constant 0 : index
    %15 = vector.load %arg2[%c1, %c0_14, %c0_15] : memref<9x128x128xbf16, #tpu.memory_space<vmem>>, vector<1x128x128xbf16>
    %16 = vector.shape_cast %15 : vector<1x128x128xbf16> to vector<128x128xbf16>
    %cst_16 = arith.constant dense<0.000000e+00> : vector<64x128xf32>
    %17 = tpu.matmul %14, %16, %cst_16 {dimension_numbers = #tpu.dot_dimension_numbers<[1], [0], [0], [1], [0, 0, 1, 1], [], []>} : vector<64x128xbf16>, vector<128x128xbf16>, vector<64x128xf32> -> vector<64x128xf32>
    %18 = arith.addf %11, %17 : vector<64x128xf32>
    %c0_17 = arith.constant 0 : index
    %c0_18 = arith.constant 0 : index
    %c1_19 = arith.constant 1 : index
    %c0_20 = arith.constant 0 : index
    %19 = vector.load %arg1[%c0_17, %c0_18, %c1_19, %c0_20] : memref<1x36x9x128xbf16, #tpu.memory_space<vmem>>, vector<1x8x8x128xbf16>
    %20 = vector.shape_cast %19 : vector<1x8x8x128xbf16> to vector<8x8x128xbf16>
    %21 = vector.shape_cast %20 : vector<8x8x128xbf16> to vector<64x128xbf16>
    %c2 = arith.constant 2 : index
    %c0_21 = arith.constant 0 : index
    %c0_22 = arith.constant 0 : index
    %22 = vector.load %arg2[%c2, %c0_21, %c0_22] : memref<9x128x128xbf16, #tpu.memory_space<vmem>>, vector<1x128x128xbf16>
    %23 = vector.shape_cast %22 : vector<1x128x128xbf16> to vector<128x128xbf16>
    %cst_23 = arith.constant dense<0.000000e+00> : vector<64x128xf32>
    %24 = tpu.matmul %21, %23, %cst_23 {dimension_numbers = #tpu.dot_dimension_numbers<[1], [0], [0], [1], [0, 0, 1, 1], [], []>} : vector<64x128xbf16>, vector<128x128xbf16>, vector<64x128xf32> -> vector<64x128xf32>
    %25 = arith.addf %18, %24 : vector<64x128xf32>
    %c0_24 = arith.constant 0 : index
    %c18 = arith.constant 18 : index
    %c0_25 = arith.constant 0 : index
    %c0_26 = arith.constant 0 : index
    %26 = vector.load %arg1[%c0_24, %c18, %c0_25, %c0_26] : memref<1x36x9x128xbf16, #tpu.memory_space<vmem>>, vector<1x8x8x128xbf16>
    %27 = vector.shape_cast %26 : vector<1x8x8x128xbf16> to vector<8x8x128xbf16>
    %28 = vector.shape_cast %27 : vector<8x8x128xbf16> to vector<64x128xbf16>
    %c3 = arith.constant 3 : index
    %c0_27 = arith.constant 0 : index
    %c0_28 = arith.constant 0 : index
    %29 = vector.load %arg2[%c3, %c0_27, %c0_28] : memref<9x128x128xbf16, #tpu.memory_space<vmem>>, vector<1x128x128xbf16>
    %30 = vector.shape_cast %29 : vector<1x128x128xbf16> to vector<128x128xbf16>
    %cst_29 = arith.constant dense<0.000000e+00> : vector<64x128xf32>
    %31 = tpu.matmul %28, %30, %cst_29 {dimension_numbers = #tpu.dot_dimension_numbers<[1], [0], [0], [1], [0, 0, 1, 1], [], []>} : vector<64x128xbf16>, vector<128x128xbf16>, vector<64x128xf32> -> vector<64x128xf32>
    %32 = arith.addf %25, %31 : vector<64x128xf32>
    %c0_30 = arith.constant 0 : index
    %c27 = arith.constant 27 : index
    %c0_31 = arith.constant 0 : index
    %c0_32 = arith.constant 0 : index
    %33 = vector.load %arg1[%c0_30, %c27, %c0_31, %c0_32] : memref<1x36x9x128xbf16, #tpu.memory_space<vmem>>, vector<1x8x8x128xbf16>
    %34 = vector.shape_cast %33 : vector<1x8x8x128xbf16> to vector<8x8x128xbf16>
    %35 = vector.shape_cast %34 : vector<8x8x128xbf16> to vector<64x128xbf16>
    %c4 = arith.constant 4 : index
    %c0_33 = arith.constant 0 : index
    %c0_34 = arith.constant 0 : index
    %36 = vector.load %arg2[%c4, %c0_33, %c0_34] : memref<9x128x128xbf16, #tpu.memory_space<vmem>>, vector<1x128x128xbf16>
    %37 = vector.shape_cast %36 : vector<1x128x128xbf16> to vector<128x128xbf16>
    %cst_35 = arith.constant dense<0.000000e+00> : vector<64x128xf32>
    %38 = tpu.matmul %35, %37, %cst_35 {dimension_numbers = #tpu.dot_dimension_numbers<[1], [0], [0], [1], [0, 0, 1, 1], [], []>} : vector<64x128xbf16>, vector<128x128xbf16>, vector<64x128xf32> -> vector<64x128xf32>
    %39 = arith.addf %32, %38 : vector<64x128xf32>
    %c0_36 = arith.constant 0 : index
    %c18_37 = arith.constant 18 : index
    %c1_38 = arith.constant 1 : index
    %c0_39 = arith.constant 0 : index
    %40 = vector.load %arg1[%c0_36, %c18_37, %c1_38, %c0_39] : memref<1x36x9x128xbf16, #tpu.memory_space<vmem>>, vector<1x8x8x128xbf16>
    %41 = vector.shape_cast %40 : vector<1x8x8x128xbf16> to vector<8x8x128xbf16>
    %42 = vector.shape_cast %41 : vector<8x8x128xbf16> to vector<64x128xbf16>
    %c5 = arith.constant 5 : index
    %c0_40 = arith.constant 0 : index
    %c0_41 = arith.constant 0 : index
    %43 = vector.load %arg2[%c5, %c0_40, %c0_41] : memref<9x128x128xbf16, #tpu.memory_space<vmem>>, vector<1x128x128xbf16>
    %44 = vector.shape_cast %43 : vector<1x128x128xbf16> to vector<128x128xbf16>
    %cst_42 = arith.constant dense<0.000000e+00> : vector<64x128xf32>
    %45 = tpu.matmul %42, %44, %cst_42 {dimension_numbers = #tpu.dot_dimension_numbers<[1], [0], [0], [1], [0, 0, 1, 1], [], []>} : vector<64x128xbf16>, vector<128x128xbf16>, vector<64x128xf32> -> vector<64x128xf32>
    %46 = arith.addf %39, %45 : vector<64x128xf32>
    %c0_43 = arith.constant 0 : index
    %c1_44 = arith.constant 1 : index
    %c0_45 = arith.constant 0 : index
    %c0_46 = arith.constant 0 : index
    %47 = vector.load %arg1[%c0_43, %c1_44, %c0_45, %c0_46] : memref<1x36x9x128xbf16, #tpu.memory_space<vmem>>, vector<1x8x8x128xbf16>
    %48 = vector.shape_cast %47 : vector<1x8x8x128xbf16> to vector<8x8x128xbf16>
    %49 = vector.shape_cast %48 : vector<8x8x128xbf16> to vector<64x128xbf16>
    %c6 = arith.constant 6 : index
    %c0_47 = arith.constant 0 : index
    %c0_48 = arith.constant 0 : index
    %50 = vector.load %arg2[%c6, %c0_47, %c0_48] : memref<9x128x128xbf16, #tpu.memory_space<vmem>>, vector<1x128x128xbf16>
    %51 = vector.shape_cast %50 : vector<1x128x128xbf16> to vector<128x128xbf16>
    %cst_49 = arith.constant dense<0.000000e+00> : vector<64x128xf32>
    %52 = tpu.matmul %49, %51, %cst_49 {dimension_numbers = #tpu.dot_dimension_numbers<[1], [0], [0], [1], [0, 0, 1, 1], [], []>} : vector<64x128xbf16>, vector<128x128xbf16>, vector<64x128xf32> -> vector<64x128xf32>
    %53 = arith.addf %46, %52 : vector<64x128xf32>
    %c0_50 = arith.constant 0 : index
    %c10 = arith.constant 10 : index
    %c0_51 = arith.constant 0 : index
    %c0_52 = arith.constant 0 : index
    %54 = vector.load %arg1[%c0_50, %c10, %c0_51, %c0_52] : memref<1x36x9x128xbf16, #tpu.memory_space<vmem>>, vector<1x8x8x128xbf16>
    %55 = vector.shape_cast %54 : vector<1x8x8x128xbf16> to vector<8x8x128xbf16>
    %56 = vector.shape_cast %55 : vector<8x8x128xbf16> to vector<64x128xbf16>
    %c7 = arith.constant 7 : index
    %c0_53 = arith.constant 0 : index
    %c0_54 = arith.constant 0 : index
    %57 = vector.load %arg2[%c7, %c0_53, %c0_54] : memref<9x128x128xbf16, #tpu.memory_space<vmem>>, vector<1x128x128xbf16>
    %58 = vector.shape_cast %57 : vector<1x128x128xbf16> to vector<128x128xbf16>
    %cst_55 = arith.constant dense<0.000000e+00> : vector<64x128xf32>
    %59 = tpu.matmul %56, %58, %cst_55 {dimension_numbers = #tpu.dot_dimension_numbers<[1], [0], [0], [1], [0, 0, 1, 1], [], []>} : vector<64x128xbf16>, vector<128x128xbf16>, vector<64x128xf32> -> vector<64x128xf32>
    %60 = arith.addf %53, %59 : vector<64x128xf32>
    %c0_56 = arith.constant 0 : index
    %c1_57 = arith.constant 1 : index
    %c1_58 = arith.constant 1 : index
    %c0_59 = arith.constant 0 : index
    %61 = vector.load %arg1[%c0_56, %c1_57, %c1_58, %c0_59] : memref<1x36x9x128xbf16, #tpu.memory_space<vmem>>, vector<1x8x8x128xbf16>
    %62 = vector.shape_cast %61 : vector<1x8x8x128xbf16> to vector<8x8x128xbf16>
    %63 = vector.shape_cast %62 : vector<8x8x128xbf16> to vector<64x128xbf16>
    %c8 = arith.constant 8 : index
    %c0_60 = arith.constant 0 : index
    %c0_61 = arith.constant 0 : index
    %64 = vector.load %arg2[%c8, %c0_60, %c0_61] : memref<9x128x128xbf16, #tpu.memory_space<vmem>>, vector<1x128x128xbf16>
    %65 = vector.shape_cast %64 : vector<1x128x128xbf16> to vector<128x128xbf16>
    %cst_62 = arith.constant dense<0.000000e+00> : vector<64x128xf32>
    %66 = tpu.matmul %63, %65, %cst_62 {dimension_numbers = #tpu.dot_dimension_numbers<[1], [0], [0], [1], [0, 0, 1, 1], [], []>} : vector<64x128xbf16>, vector<128x128xbf16>, vector<64x128xf32> -> vector<64x128xf32>
    %67 = arith.addf %60, %66 : vector<64x128xf32>
    %c0_63 = arith.constant 0 : index
    %c0_64 = arith.constant 0 : index
    %c0_65 = arith.constant 0 : index
    %68 = vector.load %arg4[%c0_63, %c0_64, %c0_65] : memref<1x64x128xf32, #tpu.memory_space<vmem>>, vector<1x64x128xf32>
    %69 = vector.shape_cast %68 : vector<1x64x128xf32> to vector<64x128xf32>
    %70 = vector.shape_cast %67 : vector<64x128xf32> to vector<1x64x128xf32>
    tpu.vector_store %arg4[%c0_63, %c0_64, %c0_65], %70 {strides = array<i32>} : memref<1x64x128xf32, #tpu.memory_space<vmem>>, vector<1x64x128xf32>,
    %cst_66 = arith.constant dense<0.000000e+00> : vector<128xf32>
    %71 = vector.multi_reduction <add>, %67, %cst_66 [0] : vector<64x128xf32> to vector<128xf32>
    %72 = vector.shape_cast %71 : vector<128xf32> to vector<1x128xf32>
    %73 = arith.addf %0, %72 : vector<1x128xf32>
    %74 = arith.mulf %67, %67 : vector<64x128xf32>
    %cst_67 = arith.constant dense<0.000000e+00> : vector<128xf32>
    %75 = vector.multi_reduction <add>, %74, %cst_67 [0] : vector<64x128xf32> to vector<128xf32>
    %76 = vector.shape_cast %75 : vector<128xf32> to vector<1x128xf32>
    %77 = arith.addf %1, %76 : vector<1x128xf32>
    %c0_68 = arith.constant 0 : index
    %c0_69 = arith.constant 0 : index
    %c0_70 = arith.constant 0 : index
    %78 = vector.load %arg3[%c0_68, %c0_69, %c0_70] : memref<1x128x128xbf16, #tpu.memory_space<vmem>>, vector<1x128x128xbf16>
    %79 = vector.shape_cast %78 : vector<1x128x128xbf16> to vector<128x128xbf16>
    %cst_71 = arith.constant dense<0.000000e+00> : vector<64x128xf32>
    %80 = tpu.matmul %35, %79, %cst_71 {dimension_numbers = #tpu.dot_dimension_numbers<[1], [0], [0], [1], [0, 0, 1, 1], [], []>} : vector<64x128xbf16>, vector<128x128xbf16>, vector<64x128xf32> -> vector<64x128xf32>
    %c0_72 = arith.constant 0 : index
    %c0_73 = arith.constant 0 : index
    %c0_74 = arith.constant 0 : index
    %81 = vector.load %arg7[%c0_72, %c0_73, %c0_74] : memref<1x64x128xf32, #tpu.memory_space<vmem>>, vector<1x64x128xf32>
    %82 = vector.shape_cast %81 : vector<1x64x128xf32> to vector<64x128xf32>
    %83 = vector.shape_cast %80 : vector<64x128xf32> to vector<1x64x128xf32>
    tpu.vector_store %arg7[%c0_72, %c0_73, %c0_74], %83 {strides = array<i32>} : memref<1x64x128xf32, #tpu.memory_space<vmem>>, vector<1x64x128xf32>,
    %cst_75 = arith.constant dense<0.000000e+00> : vector<128xf32>
    %84 = vector.multi_reduction <add>, %80, %cst_75 [0] : vector<64x128xf32> to vector<128xf32>
    %85 = vector.shape_cast %84 : vector<128xf32> to vector<1x128xf32>
    %86 = arith.addf %2, %85 : vector<1x128xf32>
    %87 = arith.mulf %80, %80 : vector<64x128xf32>
    %cst_76 = arith.constant dense<0.000000e+00> : vector<128xf32>
    %88 = vector.multi_reduction <add>, %87, %cst_76 [0] : vector<64x128xf32> to vector<128xf32>
    %89 = vector.shape_cast %88 : vector<128xf32> to vector<1x128xf32>
    %90 = arith.addf %3, %89 : vector<1x128xf32>
    %c0_77 = arith.constant 0 : index
    %c0_78 = arith.constant 0 : index
    %c0_79 = arith.constant 0 : index
    %91 = vector.load %arg5[%c0_77, %c0_78, %c0_79] : memref<1x1x128xf32, #tpu.memory_space<vmem>>, vector<1x1x128xf32>
    %92 = vector.shape_cast %91 : vector<1x1x128xf32> to vector<1x128xf32>
    %93 = vector.shape_cast %73 : vector<1x128xf32> to vector<1x1x128xf32>
    tpu.vector_store %arg5[%c0_77, %c0_78, %c0_79], %93 {strides = array<i32>} : memref<1x1x128xf32, #tpu.memory_space<vmem>>, vector<1x1x128xf32>,
    %c0_80 = arith.constant 0 : index
    %c0_81 = arith.constant 0 : index
    %c0_82 = arith.constant 0 : index
    %94 = vector.load %arg6[%c0_80, %c0_81, %c0_82] : memref<1x1x128xf32, #tpu.memory_space<vmem>>, vector<1x1x128xf32>
    %95 = vector.shape_cast %94 : vector<1x1x128xf32> to vector<1x128xf32>
    %96 = vector.shape_cast %77 : vector<1x128xf32> to vector<1x1x128xf32>
    tpu.vector_store %arg6[%c0_80, %c0_81, %c0_82], %96 {strides = array<i32>} : memref<1x1x128xf32, #tpu.memory_space<vmem>>, vector<1x1x128xf32>,
    %c0_83 = arith.constant 0 : index
    %c0_84 = arith.constant 0 : index
    %c0_85 = arith.constant 0 : index
    %97 = vector.load %arg8[%c0_83, %c0_84, %c0_85] : memref<1x1x128xf32, #tpu.memory_space<vmem>>, vector<1x1x128xf32>
    %98 = vector.shape_cast %97 : vector<1x1x128xf32> to vector<1x128xf32>
    %99 = vector.shape_cast %86 : vector<1x128xf32> to vector<1x1x128xf32>
    tpu.vector_store %arg8[%c0_83, %c0_84, %c0_85], %99 {strides = array<i32>} : memref<1x1x128xf32, #tpu.memory_space<vmem>>, vector<1x1x128xf32>,
    %c0_86 = arith.constant 0 : index
    %c0_87 = arith.constant 0 : index
    %c0_88 = arith.constant 0 : index
    %100 = vector.load %arg9[%c0_86, %c0_87, %c0_88] : memref<1x1x128xf32, #tpu.memory_space<vmem>>, vector<1x1x128xf32>
    %101 = vector.shape_cast %100 : vector<1x1x128xf32> to vector<1x128xf32>
    %102 = vector.shape_cast %90 : vector<1x128xf32> to vector<1x1x128xf32>
    tpu.vector_store %arg9[%c0_86, %c0_87, %c0_88], %102 {strides = array<i32>} : memref<1x1x128xf32, #tpu.memory_space<vmem>>, vector<1x1x128xf32>,
    return
  }
  func.func @transform_0(%arg0: i32) -> (i32, i32, i32, i32) {
    %c0_i32 = arith.constant 0 : i32
    %c0_i32_0 = arith.constant 0 : i32
    %c0_i32_1 = arith.constant 0 : i32
    %c0_i32_2 = arith.constant 0 : i32
    return %arg0, %c0_i32, %c0_i32_0, %c0_i32_1 : i32, i32, i32, i32
  }
  func.func @transform_1(%arg0: i32) -> (i32, i32, i32) {
    %c0_i32 = arith.constant 0 : i32
    %c0_i32_0 = arith.constant 0 : i32
    %c0_i32_1 = arith.constant 0 : i32
    %c0_i32_2 = arith.constant 0 : i32
    return %c0_i32, %c0_i32_0, %c0_i32_1 : i32, i32, i32
  }
  func.func @transform_2(%arg0: i32) -> (i32, i32, i32) {
    %c0_i32 = arith.constant 0 : i32
    %c0_i32_0 = arith.constant 0 : i32
    %c0_i32_1 = arith.constant 0 : i32
    %c0_i32_2 = arith.constant 0 : i32
    return %c0_i32, %c0_i32_0, %c0_i32_1 : i32, i32, i32
  }
  func.func @transform_3(%arg0: i32) -> (i32, i32, i32) {
    %c0_i32 = arith.constant 0 : i32
    %c0_i32_0 = arith.constant 0 : i32
    %c0_i32_1 = arith.constant 0 : i32
    return %arg0, %c0_i32, %c0_i32_0 : i32, i32, i32
  }
  func.func @transform_4(%arg0: i32) -> (i32, i32, i32) {
    %c0_i32 = arith.constant 0 : i32
    %c0_i32_0 = arith.constant 0 : i32
    %c0_i32_1 = arith.constant 0 : i32
    return %arg0, %c0_i32, %c0_i32_0 : i32, i32, i32
  }
  func.func @transform_5(%arg0: i32) -> (i32, i32, i32) {
    %c0_i32 = arith.constant 0 : i32
    %c0_i32_0 = arith.constant 0 : i32
    %c0_i32_1 = arith.constant 0 : i32
    return %arg0, %c0_i32, %c0_i32_0 : i32, i32, i32
  }
  func.func @transform_6(%arg0: i32) -> (i32, i32, i32) {
    %c0_i32 = arith.constant 0 : i32
    %c0_i32_0 = arith.constant 0 : i32
    %c0_i32_1 = arith.constant 0 : i32
    return %arg0, %c0_i32, %c0_i32_0 : i32, i32, i32
  }
  func.func @transform_7(%arg0: i32) -> (i32, i32, i32) {
    %c0_i32 = arith.constant 0 : i32
    %c0_i32_0 = arith.constant 0 : i32
    %c0_i32_1 = arith.constant 0 : i32
    return %arg0, %c0_i32, %c0_i32_0 : i32, i32, i32
  }
  func.func @transform_8(%arg0: i32) -> (i32, i32, i32) {
    %c0_i32 = arith.constant 0 : i32
    %c0_i32_0 = arith.constant 0 : i32
    %c0_i32_1 = arith.constant 0 : i32
    return %arg0, %c0_i32, %c0_i32_0 : i32, i32, i32
  }
}

module attributes {stable_mosaic.version = 11 : i64} {
  func.func @_conv3x3_fused_bn_relu_kernel(%arg0: i32, %arg1: memref<1x8x8x128xf32, #tpu.memory_space<vmem>>, %arg2: memref<1x128xf32, #tpu.memory_space<vmem>>, %arg3: memref<1x128xf32, #tpu.memory_space<vmem>>, %arg4: memref<9x128x128xbf16, #tpu.memory_space<vmem>>, %arg5: memref<1x64x128xf32, #tpu.memory_space<vmem>>, %arg6: memref<1x1x128xf32, #tpu.memory_space<vmem>>, %arg7: memref<1x1x128xf32, #tpu.memory_space<vmem>>, %arg8: memref<10x10x128xbf16, #tpu.memory_space<vmem>>) attributes {dimension_semantics = [#tpu.dimension_semantics<parallel>], iteration_bounds = array<i64: 2>, scalar_prefetch = 0 : i64, scratch_operands = 1 : i64, tpu.core_type = #tpu.core_type<tc>, window_params = [{transform_indices = @transform_0, window_bounds = array<i64: 1, 8, 8, 128>}, {pipeline_mode = #tpu.pipeline_mode<synchronous>, transform_indices = @transform_1, window_bounds = array<i64: 1, 128>}, {pipeline_mode = #tpu.pipeline_mode<synchronous>, transform_indices = @transform_2, window_bounds = array<i64: 1, 128>}, {pipeline_mode = #tpu.pipeline_mode<synchronous>, transform_indices = @transform_3, window_bounds = array<i64: 9, 128, 128>}, {transform_indices = @transform_4, window_bounds = array<i64: 1, 64, 128>}, {transform_indices = @transform_5, window_bounds = array<i64: 1, 1, 128>}, {transform_indices = @transform_6, window_bounds = array<i64: 1, 1, 128>}]} {
    %c0 = arith.constant 0 : index
    %c0_0 = arith.constant 0 : index
    %c0_1 = arith.constant 0 : index
    %c0_2 = arith.constant 0 : index
    %0 = vector.load %arg1[%c0, %c0_0, %c0_1, %c0_2] : memref<1x8x8x128xf32, #tpu.memory_space<vmem>>, vector<1x8x8x128xf32>
    %1 = vector.shape_cast %0 : vector<1x8x8x128xf32> to vector<8x8x128xf32>
    %c0_3 = arith.constant 0 : index
    %c0_4 = arith.constant 0 : index
    %2 = vector.load %arg2[%c0_3, %c0_4] : memref<1x128xf32, #tpu.memory_space<vmem>>, vector<1x128xf32>
    %3 = vector.shape_cast %2 : vector<1x128xf32> to vector<1x1x128xf32>
    %4 = vector.broadcast %3 : vector<1x1x128xf32> to vector<8x8x128xf32>
    %5 = arith.mulf %1, %4 : vector<8x8x128xf32>
    %c0_5 = arith.constant 0 : index
    %c0_6 = arith.constant 0 : index
    %6 = vector.load %arg3[%c0_5, %c0_6] : memref<1x128xf32, #tpu.memory_space<vmem>>, vector<1x128xf32>
    %7 = vector.shape_cast %6 : vector<1x128xf32> to vector<1x1x128xf32>
    %8 = vector.broadcast %7 : vector<1x1x128xf32> to vector<8x8x128xf32>
    %9 = arith.addf %5, %8 : vector<8x8x128xf32>
    %cst = arith.constant 0.000000e+00 : f32
    %10 = vector.broadcast %cst : f32 to vector<8x8x128xf32>
    %11 = arith.maximumf %9, %10 : vector<8x8x128xf32>
    %cst_7 = arith.constant 0.000000e+00 : bf16
    %12 = vector.broadcast %cst_7 : bf16 to vector<1x10x128xbf16>
    %cst_8 = arith.constant 0.000000e+00 : bf16
    %13 = vector.broadcast %cst_8 : bf16 to vector<8x1x128xbf16>
    %c0_9 = arith.constant 0 : index
    %c0_10 = arith.constant 0 : index
    %c0_11 = arith.constant 0 : index
    %14 = vector.load %arg8[%c0_9, %c0_10, %c0_11] : memref<10x10x128xbf16, #tpu.memory_space<vmem>>, vector<1x10x128xbf16>
    tpu.vector_store %arg8[%c0_9, %c0_10, %c0_11], %12 {strides = array<i32>} : memref<10x10x128xbf16, #tpu.memory_space<vmem>>, vector<1x10x128xbf16>,
    %c9 = arith.constant 9 : index
    %c0_12 = arith.constant 0 : index
    %c0_13 = arith.constant 0 : index
    %15 = vector.load %arg8[%c9, %c0_12, %c0_13] : memref<10x10x128xbf16, #tpu.memory_space<vmem>>, vector<1x10x128xbf16>
    tpu.vector_store %arg8[%c9, %c0_12, %c0_13], %12 {strides = array<i32>} : memref<10x10x128xbf16, #tpu.memory_space<vmem>>, vector<1x10x128xbf16>,
    %c1 = arith.constant 1 : index
    %c0_14 = arith.constant 0 : index
    %c0_15 = arith.constant 0 : index
    %16 = vector.load %arg8[%c1, %c0_14, %c0_15] : memref<10x10x128xbf16, #tpu.memory_space<vmem>>, vector<8x1x128xbf16>
    tpu.vector_store %arg8[%c1, %c0_14, %c0_15], %13 {strides = array<i32>} : memref<10x10x128xbf16, #tpu.memory_space<vmem>>, vector<8x1x128xbf16>,
    %c1_16 = arith.constant 1 : index
    %c9_17 = arith.constant 9 : index
    %c0_18 = arith.constant 0 : index
    %17 = vector.load %arg8[%c1_16, %c9_17, %c0_18] : memref<10x10x128xbf16, #tpu.memory_space<vmem>>, vector<8x1x128xbf16>
    tpu.vector_store %arg8[%c1_16, %c9_17, %c0_18], %13 {strides = array<i32>} : memref<10x10x128xbf16, #tpu.memory_space<vmem>>, vector<8x1x128xbf16>,
    %18 = arith.truncf %11 : vector<8x8x128xf32> to vector<8x8x128xbf16>
    %c1_19 = arith.constant 1 : index
    %c1_20 = arith.constant 1 : index
    %c0_21 = arith.constant 0 : index
    %19 = vector.load %arg8[%c1_19, %c1_20, %c0_21] : memref<10x10x128xbf16, #tpu.memory_space<vmem>>, vector<8x8x128xbf16>
    tpu.vector_store %arg8[%c1_19, %c1_20, %c0_21], %18 {strides = array<i32>} : memref<10x10x128xbf16, #tpu.memory_space<vmem>>, vector<8x8x128xbf16>,
    %cst_22 = arith.constant 0.000000e+00 : f32
    %20 = vector.broadcast %cst_22 : f32 to vector<1x128xf32>
    %cst_23 = arith.constant 0.000000e+00 : f32
    %21 = vector.broadcast %cst_23 : f32 to vector<1x128xf32>
    %cst_24 = arith.constant 0.000000e+00 : f32
    %22 = vector.broadcast %cst_24 : f32 to vector<64x128xf32>
    %c0_25 = arith.constant 0 : index
    %c0_26 = arith.constant 0 : index
    %c0_27 = arith.constant 0 : index
    %23 = vector.load %arg8[%c0_25, %c0_26, %c0_27] : memref<10x10x128xbf16, #tpu.memory_space<vmem>>, vector<8x8x128xbf16>
    %24 = vector.shape_cast %23 : vector<8x8x128xbf16> to vector<64x128xbf16>
    %c0_28 = arith.constant 0 : index
    %c0_29 = arith.constant 0 : index
    %c0_30 = arith.constant 0 : index
    %25 = vector.load %arg4[%c0_28, %c0_29, %c0_30] : memref<9x128x128xbf16, #tpu.memory_space<vmem>>, vector<1x128x128xbf16>
    %26 = vector.shape_cast %25 : vector<1x128x128xbf16> to vector<128x128xbf16>
    %cst_31 = arith.constant dense<0.000000e+00> : vector<64x128xf32>
    %27 = tpu.matmul %24, %26, %cst_31 {dimension_numbers = #tpu.dot_dimension_numbers<[1], [0], [0], [1], [0, 0, 1, 1], [], []>} : vector<64x128xbf16>, vector<128x128xbf16>, vector<64x128xf32> -> vector<64x128xf32>
    %28 = arith.addf %22, %27 : vector<64x128xf32>
    %c0_32 = arith.constant 0 : index
    %c1_33 = arith.constant 1 : index
    %c0_34 = arith.constant 0 : index
    %29 = vector.load %arg8[%c0_32, %c1_33, %c0_34] : memref<10x10x128xbf16, #tpu.memory_space<vmem>>, vector<8x8x128xbf16>
    %30 = vector.shape_cast %29 : vector<8x8x128xbf16> to vector<64x128xbf16>
    %c1_35 = arith.constant 1 : index
    %c0_36 = arith.constant 0 : index
    %c0_37 = arith.constant 0 : index
    %31 = vector.load %arg4[%c1_35, %c0_36, %c0_37] : memref<9x128x128xbf16, #tpu.memory_space<vmem>>, vector<1x128x128xbf16>
    %32 = vector.shape_cast %31 : vector<1x128x128xbf16> to vector<128x128xbf16>
    %cst_38 = arith.constant dense<0.000000e+00> : vector<64x128xf32>
    %33 = tpu.matmul %30, %32, %cst_38 {dimension_numbers = #tpu.dot_dimension_numbers<[1], [0], [0], [1], [0, 0, 1, 1], [], []>} : vector<64x128xbf16>, vector<128x128xbf16>, vector<64x128xf32> -> vector<64x128xf32>
    %34 = arith.addf %28, %33 : vector<64x128xf32>
    %c0_39 = arith.constant 0 : index
    %c2 = arith.constant 2 : index
    %c0_40 = arith.constant 0 : index
    %35 = vector.load %arg8[%c0_39, %c2, %c0_40] : memref<10x10x128xbf16, #tpu.memory_space<vmem>>, vector<8x8x128xbf16>
    %36 = vector.shape_cast %35 : vector<8x8x128xbf16> to vector<64x128xbf16>
    %c2_41 = arith.constant 2 : index
    %c0_42 = arith.constant 0 : index
    %c0_43 = arith.constant 0 : index
    %37 = vector.load %arg4[%c2_41, %c0_42, %c0_43] : memref<9x128x128xbf16, #tpu.memory_space<vmem>>, vector<1x128x128xbf16>
    %38 = vector.shape_cast %37 : vector<1x128x128xbf16> to vector<128x128xbf16>
    %cst_44 = arith.constant dense<0.000000e+00> : vector<64x128xf32>
    %39 = tpu.matmul %36, %38, %cst_44 {dimension_numbers = #tpu.dot_dimension_numbers<[1], [0], [0], [1], [0, 0, 1, 1], [], []>} : vector<64x128xbf16>, vector<128x128xbf16>, vector<64x128xf32> -> vector<64x128xf32>
    %40 = arith.addf %34, %39 : vector<64x128xf32>
    %c1_45 = arith.constant 1 : index
    %c0_46 = arith.constant 0 : index
    %c0_47 = arith.constant 0 : index
    %41 = vector.load %arg8[%c1_45, %c0_46, %c0_47] : memref<10x10x128xbf16, #tpu.memory_space<vmem>>, vector<8x8x128xbf16>
    %42 = vector.shape_cast %41 : vector<8x8x128xbf16> to vector<64x128xbf16>
    %c3 = arith.constant 3 : index
    %c0_48 = arith.constant 0 : index
    %c0_49 = arith.constant 0 : index
    %43 = vector.load %arg4[%c3, %c0_48, %c0_49] : memref<9x128x128xbf16, #tpu.memory_space<vmem>>, vector<1x128x128xbf16>
    %44 = vector.shape_cast %43 : vector<1x128x128xbf16> to vector<128x128xbf16>
    %cst_50 = arith.constant dense<0.000000e+00> : vector<64x128xf32>
    %45 = tpu.matmul %42, %44, %cst_50 {dimension_numbers = #tpu.dot_dimension_numbers<[1], [0], [0], [1], [0, 0, 1, 1], [], []>} : vector<64x128xbf16>, vector<128x128xbf16>, vector<64x128xf32> -> vector<64x128xf32>
    %46 = arith.addf %40, %45 : vector<64x128xf32>
    %c1_51 = arith.constant 1 : index
    %c1_52 = arith.constant 1 : index
    %c0_53 = arith.constant 0 : index
    %47 = vector.load %arg8[%c1_51, %c1_52, %c0_53] : memref<10x10x128xbf16, #tpu.memory_space<vmem>>, vector<8x8x128xbf16>
    %48 = vector.shape_cast %47 : vector<8x8x128xbf16> to vector<64x128xbf16>
    %c4 = arith.constant 4 : index
    %c0_54 = arith.constant 0 : index
    %c0_55 = arith.constant 0 : index
    %49 = vector.load %arg4[%c4, %c0_54, %c0_55] : memref<9x128x128xbf16, #tpu.memory_space<vmem>>, vector<1x128x128xbf16>
    %50 = vector.shape_cast %49 : vector<1x128x128xbf16> to vector<128x128xbf16>
    %cst_56 = arith.constant dense<0.000000e+00> : vector<64x128xf32>
    %51 = tpu.matmul %48, %50, %cst_56 {dimension_numbers = #tpu.dot_dimension_numbers<[1], [0], [0], [1], [0, 0, 1, 1], [], []>} : vector<64x128xbf16>, vector<128x128xbf16>, vector<64x128xf32> -> vector<64x128xf32>
    %52 = arith.addf %46, %51 : vector<64x128xf32>
    %c1_57 = arith.constant 1 : index
    %c2_58 = arith.constant 2 : index
    %c0_59 = arith.constant 0 : index
    %53 = vector.load %arg8[%c1_57, %c2_58, %c0_59] : memref<10x10x128xbf16, #tpu.memory_space<vmem>>, vector<8x8x128xbf16>
    %54 = vector.shape_cast %53 : vector<8x8x128xbf16> to vector<64x128xbf16>
    %c5 = arith.constant 5 : index
    %c0_60 = arith.constant 0 : index
    %c0_61 = arith.constant 0 : index
    %55 = vector.load %arg4[%c5, %c0_60, %c0_61] : memref<9x128x128xbf16, #tpu.memory_space<vmem>>, vector<1x128x128xbf16>
    %56 = vector.shape_cast %55 : vector<1x128x128xbf16> to vector<128x128xbf16>
    %cst_62 = arith.constant dense<0.000000e+00> : vector<64x128xf32>
    %57 = tpu.matmul %54, %56, %cst_62 {dimension_numbers = #tpu.dot_dimension_numbers<[1], [0], [0], [1], [0, 0, 1, 1], [], []>} : vector<64x128xbf16>, vector<128x128xbf16>, vector<64x128xf32> -> vector<64x128xf32>
    %58 = arith.addf %52, %57 : vector<64x128xf32>
    %c2_63 = arith.constant 2 : index
    %c0_64 = arith.constant 0 : index
    %c0_65 = arith.constant 0 : index
    %59 = vector.load %arg8[%c2_63, %c0_64, %c0_65] : memref<10x10x128xbf16, #tpu.memory_space<vmem>>, vector<8x8x128xbf16>
    %60 = vector.shape_cast %59 : vector<8x8x128xbf16> to vector<64x128xbf16>
    %c6 = arith.constant 6 : index
    %c0_66 = arith.constant 0 : index
    %c0_67 = arith.constant 0 : index
    %61 = vector.load %arg4[%c6, %c0_66, %c0_67] : memref<9x128x128xbf16, #tpu.memory_space<vmem>>, vector<1x128x128xbf16>
    %62 = vector.shape_cast %61 : vector<1x128x128xbf16> to vector<128x128xbf16>
    %cst_68 = arith.constant dense<0.000000e+00> : vector<64x128xf32>
    %63 = tpu.matmul %60, %62, %cst_68 {dimension_numbers = #tpu.dot_dimension_numbers<[1], [0], [0], [1], [0, 0, 1, 1], [], []>} : vector<64x128xbf16>, vector<128x128xbf16>, vector<64x128xf32> -> vector<64x128xf32>
    %64 = arith.addf %58, %63 : vector<64x128xf32>
    %c2_69 = arith.constant 2 : index
    %c1_70 = arith.constant 1 : index
    %c0_71 = arith.constant 0 : index
    %65 = vector.load %arg8[%c2_69, %c1_70, %c0_71] : memref<10x10x128xbf16, #tpu.memory_space<vmem>>, vector<8x8x128xbf16>
    %66 = vector.shape_cast %65 : vector<8x8x128xbf16> to vector<64x128xbf16>
    %c7 = arith.constant 7 : index
    %c0_72 = arith.constant 0 : index
    %c0_73 = arith.constant 0 : index
    %67 = vector.load %arg4[%c7, %c0_72, %c0_73] : memref<9x128x128xbf16, #tpu.memory_space<vmem>>, vector<1x128x128xbf16>
    %68 = vector.shape_cast %67 : vector<1x128x128xbf16> to vector<128x128xbf16>
    %cst_74 = arith.constant dense<0.000000e+00> : vector<64x128xf32>
    %69 = tpu.matmul %66, %68, %cst_74 {dimension_numbers = #tpu.dot_dimension_numbers<[1], [0], [0], [1], [0, 0, 1, 1], [], []>} : vector<64x128xbf16>, vector<128x128xbf16>, vector<64x128xf32> -> vector<64x128xf32>
    %70 = arith.addf %64, %69 : vector<64x128xf32>
    %c2_75 = arith.constant 2 : index
    %c2_76 = arith.constant 2 : index
    %c0_77 = arith.constant 0 : index
    %71 = vector.load %arg8[%c2_75, %c2_76, %c0_77] : memref<10x10x128xbf16, #tpu.memory_space<vmem>>, vector<8x8x128xbf16>
    %72 = vector.shape_cast %71 : vector<8x8x128xbf16> to vector<64x128xbf16>
    %c8 = arith.constant 8 : index
    %c0_78 = arith.constant 0 : index
    %c0_79 = arith.constant 0 : index
    %73 = vector.load %arg4[%c8, %c0_78, %c0_79] : memref<9x128x128xbf16, #tpu.memory_space<vmem>>, vector<1x128x128xbf16>
    %74 = vector.shape_cast %73 : vector<1x128x128xbf16> to vector<128x128xbf16>
    %cst_80 = arith.constant dense<0.000000e+00> : vector<64x128xf32>
    %75 = tpu.matmul %72, %74, %cst_80 {dimension_numbers = #tpu.dot_dimension_numbers<[1], [0], [0], [1], [0, 0, 1, 1], [], []>} : vector<64x128xbf16>, vector<128x128xbf16>, vector<64x128xf32> -> vector<64x128xf32>
    %76 = arith.addf %70, %75 : vector<64x128xf32>
    %c0_81 = arith.constant 0 : index
    %c0_82 = arith.constant 0 : index
    %c0_83 = arith.constant 0 : index
    %77 = vector.load %arg5[%c0_81, %c0_82, %c0_83] : memref<1x64x128xf32, #tpu.memory_space<vmem>>, vector<1x64x128xf32>
    %78 = vector.shape_cast %77 : vector<1x64x128xf32> to vector<64x128xf32>
    %79 = vector.shape_cast %76 : vector<64x128xf32> to vector<1x64x128xf32>
    tpu.vector_store %arg5[%c0_81, %c0_82, %c0_83], %79 {strides = array<i32>} : memref<1x64x128xf32, #tpu.memory_space<vmem>>, vector<1x64x128xf32>,
    %cst_84 = arith.constant dense<0.000000e+00> : vector<128xf32>
    %80 = vector.multi_reduction <add>, %76, %cst_84 [0] : vector<64x128xf32> to vector<128xf32>
    %81 = vector.shape_cast %80 : vector<128xf32> to vector<1x128xf32>
    %82 = arith.addf %20, %81 : vector<1x128xf32>
    %83 = arith.mulf %76, %76 : vector<64x128xf32>
    %cst_85 = arith.constant dense<0.000000e+00> : vector<128xf32>
    %84 = vector.multi_reduction <add>, %83, %cst_85 [0] : vector<64x128xf32> to vector<128xf32>
    %85 = vector.shape_cast %84 : vector<128xf32> to vector<1x128xf32>
    %86 = arith.addf %21, %85 : vector<1x128xf32>
    %c0_86 = arith.constant 0 : index
    %c0_87 = arith.constant 0 : index
    %c0_88 = arith.constant 0 : index
    %87 = vector.load %arg6[%c0_86, %c0_87, %c0_88] : memref<1x1x128xf32, #tpu.memory_space<vmem>>, vector<1x1x128xf32>
    %88 = vector.shape_cast %87 : vector<1x1x128xf32> to vector<1x128xf32>
    %89 = vector.shape_cast %82 : vector<1x128xf32> to vector<1x1x128xf32>
    tpu.vector_store %arg6[%c0_86, %c0_87, %c0_88], %89 {strides = array<i32>} : memref<1x1x128xf32, #tpu.memory_space<vmem>>, vector<1x1x128xf32>,
    %c0_89 = arith.constant 0 : index
    %c0_90 = arith.constant 0 : index
    %c0_91 = arith.constant 0 : index
    %90 = vector.load %arg7[%c0_89, %c0_90, %c0_91] : memref<1x1x128xf32, #tpu.memory_space<vmem>>, vector<1x1x128xf32>
    %91 = vector.shape_cast %90 : vector<1x1x128xf32> to vector<1x128xf32>
    %92 = vector.shape_cast %86 : vector<1x128xf32> to vector<1x1x128xf32>
    tpu.vector_store %arg7[%c0_89, %c0_90, %c0_91], %92 {strides = array<i32>} : memref<1x1x128xf32, #tpu.memory_space<vmem>>, vector<1x1x128xf32>,
    return
  }
  func.func @transform_0(%arg0: i32) -> (i32, i32, i32, i32) {
    %c0_i32 = arith.constant 0 : i32
    %c0_i32_0 = arith.constant 0 : i32
    %c0_i32_1 = arith.constant 0 : i32
    %c0_i32_2 = arith.constant 0 : i32
    return %arg0, %c0_i32, %c0_i32_0, %c0_i32_1 : i32, i32, i32, i32
  }
  func.func @transform_1(%arg0: i32) -> (i32, i32) {
    %c0_i32 = arith.constant 0 : i32
    %c0_i32_0 = arith.constant 0 : i32
    %c0_i32_1 = arith.constant 0 : i32
    return %c0_i32, %c0_i32_0 : i32, i32
  }
  func.func @transform_2(%arg0: i32) -> (i32, i32) {
    %c0_i32 = arith.constant 0 : i32
    %c0_i32_0 = arith.constant 0 : i32
    %c0_i32_1 = arith.constant 0 : i32
    return %c0_i32, %c0_i32_0 : i32, i32
  }
  func.func @transform_3(%arg0: i32) -> (i32, i32, i32) {
    %c0_i32 = arith.constant 0 : i32
    %c0_i32_0 = arith.constant 0 : i32
    %c0_i32_1 = arith.constant 0 : i32
    %c0_i32_2 = arith.constant 0 : i32
    return %c0_i32, %c0_i32_0, %c0_i32_1 : i32, i32, i32
  }
  func.func @transform_4(%arg0: i32) -> (i32, i32, i32) {
    %c0_i32 = arith.constant 0 : i32
    %c0_i32_0 = arith.constant 0 : i32
    %c0_i32_1 = arith.constant 0 : i32
    return %arg0, %c0_i32, %c0_i32_0 : i32, i32, i32
  }
  func.func @transform_5(%arg0: i32) -> (i32, i32, i32) {
    %c0_i32 = arith.constant 0 : i32
    %c0_i32_0 = arith.constant 0 : i32
    %c0_i32_1 = arith.constant 0 : i32
    return %arg0, %c0_i32, %c0_i32_0 : i32, i32, i32
  }
  func.func @transform_6(%arg0: i32) -> (i32, i32, i32) {
    %c0_i32 = arith.constant 0 : i32
    %c0_i32_0 = arith.constant 0 : i32
    %c0_i32_1 = arith.constant 0 : i32
    return %arg0, %c0_i32, %c0_i32_0 : i32, i32, i32
  }
}

module attributes {stable_mosaic.version = 11 : i64} {
  func.func @_add_bn_relu_kernel(%arg0: i32, %arg1: memref<128x128xf32, #tpu.memory_space<vmem>>, %arg2: memref<1x128xf32, #tpu.memory_space<vmem>>, %arg3: memref<1x128xf32, #tpu.memory_space<vmem>>, %arg4: memref<128x128xf32, #tpu.memory_space<vmem>>, %arg5: memref<1x128xf32, #tpu.memory_space<vmem>>, %arg6: memref<1x128xf32, #tpu.memory_space<vmem>>, %arg7: memref<128x128xf32, #tpu.memory_space<vmem>>) attributes {dimension_semantics = [#tpu.dimension_semantics<parallel>], iteration_bounds = array<i64: 1>, scalar_prefetch = 0 : i64, scratch_operands = 0 : i64, tpu.core_type = #tpu.core_type<tc>, window_params = [{transform_indices = @transform_0, window_bounds = array<i64: 128, 128>}, {pipeline_mode = #tpu.pipeline_mode<synchronous>, transform_indices = @transform_1, window_bounds = array<i64: 1, 128>}, {pipeline_mode = #tpu.pipeline_mode<synchronous>, transform_indices = @transform_2, window_bounds = array<i64: 1, 128>}, {transform_indices = @transform_3, window_bounds = array<i64: 128, 128>}, {pipeline_mode = #tpu.pipeline_mode<synchronous>, transform_indices = @transform_4, window_bounds = array<i64: 1, 128>}, {pipeline_mode = #tpu.pipeline_mode<synchronous>, transform_indices = @transform_5, window_bounds = array<i64: 1, 128>}, {transform_indices = @transform_6, window_bounds = array<i64: 128, 128>}]} {
    %c0 = arith.constant 0 : index
    %c0_0 = arith.constant 0 : index
    %0 = vector.load %arg1[%c0, %c0_0] : memref<128x128xf32, #tpu.memory_space<vmem>>, vector<128x128xf32>
    %c0_1 = arith.constant 0 : index
    %c0_2 = arith.constant 0 : index
    %1 = vector.load %arg2[%c0_1, %c0_2] : memref<1x128xf32, #tpu.memory_space<vmem>>, vector<1x128xf32>
    %2 = vector.broadcast %1 : vector<1x128xf32> to vector<128x128xf32>
    %3 = arith.mulf %0, %2 : vector<128x128xf32>
    %c0_3 = arith.constant 0 : index
    %c0_4 = arith.constant 0 : index
    %4 = vector.load %arg3[%c0_3, %c0_4] : memref<1x128xf32, #tpu.memory_space<vmem>>, vector<1x128xf32>
    %5 = vector.broadcast %4 : vector<1x128xf32> to vector<128x128xf32>
    %6 = arith.addf %3, %5 : vector<128x128xf32>
    %c0_5 = arith.constant 0 : index
    %c0_6 = arith.constant 0 : index
    %7 = vector.load %arg4[%c0_5, %c0_6] : memref<128x128xf32, #tpu.memory_space<vmem>>, vector<128x128xf32>
    %c0_7 = arith.constant 0 : index
    %c0_8 = arith.constant 0 : index
    %8 = vector.load %arg5[%c0_7, %c0_8] : memref<1x128xf32, #tpu.memory_space<vmem>>, vector<1x128xf32>
    %9 = vector.broadcast %8 : vector<1x128xf32> to vector<128x128xf32>
    %10 = arith.mulf %7, %9 : vector<128x128xf32>
    %c0_9 = arith.constant 0 : index
    %c0_10 = arith.constant 0 : index
    %11 = vector.load %arg6[%c0_9, %c0_10] : memref<1x128xf32, #tpu.memory_space<vmem>>, vector<1x128xf32>
    %12 = vector.broadcast %11 : vector<1x128xf32> to vector<128x128xf32>
    %13 = arith.addf %10, %12 : vector<128x128xf32>
    %14 = arith.addf %6, %13 : vector<128x128xf32>
    %cst = arith.constant 0.000000e+00 : f32
    %15 = vector.broadcast %cst : f32 to vector<128x128xf32>
    %16 = arith.maximumf %14, %15 : vector<128x128xf32>
    %c0_11 = arith.constant 0 : index
    %c0_12 = arith.constant 0 : index
    %17 = vector.load %arg7[%c0_11, %c0_12] : memref<128x128xf32, #tpu.memory_space<vmem>>, vector<128x128xf32>
    tpu.vector_store %arg7[%c0_11, %c0_12], %16 {strides = array<i32>} : memref<128x128xf32, #tpu.memory_space<vmem>>, vector<128x128xf32>,
    return
  }
  func.func @transform_0(%arg0: i32) -> (i32, i32) {
    %c0_i32 = arith.constant 0 : i32
    %c0_i32_0 = arith.constant 0 : i32
    return %arg0, %c0_i32 : i32, i32
  }
  func.func @transform_1(%arg0: i32) -> (i32, i32) {
    %c0_i32 = arith.constant 0 : i32
    %c0_i32_0 = arith.constant 0 : i32
    %c0_i32_1 = arith.constant 0 : i32
    return %c0_i32, %c0_i32_0 : i32, i32
  }
  func.func @transform_2(%arg0: i32) -> (i32, i32) {
    %c0_i32 = arith.constant 0 : i32
    %c0_i32_0 = arith.constant 0 : i32
    %c0_i32_1 = arith.constant 0 : i32
    return %c0_i32, %c0_i32_0 : i32, i32
  }
  func.func @transform_3(%arg0: i32) -> (i32, i32) {
    %c0_i32 = arith.constant 0 : i32
    %c0_i32_0 = arith.constant 0 : i32
    return %arg0, %c0_i32 : i32, i32
  }
  func.func @transform_4(%arg0: i32) -> (i32, i32) {
    %c0_i32 = arith.constant 0 : i32
    %c0_i32_0 = arith.constant 0 : i32
    %c0_i32_1 = arith.constant 0 : i32
    return %c0_i32, %c0_i32_0 : i32, i32
  }
  func.func @transform_5(%arg0: i32) -> (i32, i32) {
    %c0_i32 = arith.constant 0 : i32
    %c0_i32_0 = arith.constant 0 : i32
    %c0_i32_1 = arith.constant 0 : i32
    return %c0_i32, %c0_i32_0 : i32, i32
  }
  func.func @transform_6(%arg0: i32) -> (i32, i32) {
    %c0_i32 = arith.constant 0 : i32
    %c0_i32_0 = arith.constant 0 : i32
    return %arg0, %c0_i32 : i32, i32
  }
}

</mosaic_0001>

<llo_original>
// kernel: residual_block_forward.5
$region0: #{residual_block_forward.5}
  #allocation0 [shape = 'u32[]', space=smem, size = 0x4, offset = 0x4, fixed_abs, tag = 'smem constant byte address 0x4 - core index']
  #allocation1 [shape = 'u32[72,128]{1,0:T(1,128)}', space=vmem, size = 0x9000, scoped, tag = 'internal scratch']
  %s0 = inlined_call_operand.vmem [shape: f32[128,128], index: 0, kind: input, shape index: {}]
  %s1 = inlined_call_operand.vmem [shape: f32[1,128], index: 1, kind: input, shape index: {}]
  %s2 = inlined_call_operand.vmem [shape: f32[1,128], index: 2, kind: input, shape index: {}]
  %s3 = inlined_call_operand.vmem [shape: f32[128,128], index: 3, kind: input, shape index: {}]
  %s4 = inlined_call_operand.vmem [shape: f32[1,128], index: 4, kind: input, shape index: {}]
  %s5 = inlined_call_operand.vmem [shape: f32[1,128], index: 5, kind: input, shape index: {}]
  %s6 = inlined_call_operand.vmem [shape: f32[128,128], index: 6, kind: output, shape index: {}]
  %s7 = sld [smem:[#allocation0]]
  $region34: #{residual_block_forward.5} parent=0
    _
  %s9 = ssub.s32 1, %s7
  %s10 = scalar_select 0, %s9, %s7
  // Predicated region
  $region2: #{residual_block_forward.5} parent=0 // pred_check
    _
  $region3: #{residual_block_forward.5} parent=0 // pred_check_branch
    %12 = sbr.rel (0) target = $region5
  $region4: #{residual_block_forward.5} parent=0 // pred_region
    _
  $region5: #{residual_block_forward.5} parent=0 // pred_fallthru
    _
  // Predicated region
  $region6: #{residual_block_forward.5} parent=0 // pred_check
    _
  $region7: #{residual_block_forward.5} parent=0 // pred_check_branch
    %14 = sbr.rel (0) target = $region9
  $region8: #{residual_block_forward.5} parent=0 // pred_region
    _
  $region9: #{residual_block_forward.5} parent=0 // pred_fallthru
    _
  // Predicated region
  $region10: #{residual_block_forward.5} parent=0 // pred_check
    _
  $region11: #{residual_block_forward.5} parent=0 // pred_check_branch
    %16 = sbr.rel (0) target = $region13
  $region12: #{residual_block_forward.5} parent=0 // pred_region
    _
  $region13: #{residual_block_forward.5} parent=0 // pred_fallthru
    _
  // Predicated region
  $region14: #{residual_block_forward.5} parent=0 // pred_check
    _
  $region15: #{residual_block_forward.5} parent=0 // pred_check_branch
    %18 = sbr.rel (0) target = $region17
  $region16: #{residual_block_forward.5} parent=0 // pred_region
    _
  $region17: #{residual_block_forward.5} parent=0 // pred_fallthru
    _
  // Predicated region
  $region18: #{residual_block_forward.5} parent=0 // pred_check
    _
  $region19: #{residual_block_forward.5} parent=0 // pred_check_branch
    %20 = sbr.rel (0) target = $region21
  $region20: #{residual_block_forward.5} parent=0 // pred_region
    _
  $region21: #{residual_block_forward.5} parent=0 // pred_fallthru
    _
  // Predicated region
  $region22: #{residual_block_forward.5} parent=0 // pred_check
    _
  $region23: #{residual_block_forward.5} parent=0 // pred_check_branch
    %22 = sbr.rel (0) target = $region25
  $region24: #{residual_block_forward.5} parent=0 // pred_region
    _
  $region25: #{residual_block_forward.5} parent=0 // pred_fallthru
    _
  %v23 = vld [vmem:[%s0] sm:$0xff]
  %v24 = vld [vmem:[%s0 + $0x8] sm:$0xff]
  %v25 = vld [vmem:[%s0 + $0x10] sm:$0xff]
  %v26 = vld [vmem:[%s0 + $0x18] sm:$0xff]
  %v27 = vld [vmem:[%s0 + $0x20] sm:$0xff]
  %v28 = vld [vmem:[%s0 + $0x28] sm:$0xff]
  %v29 = vld [vmem:[%s0 + $0x30] sm:$0xff]
  %v30 = vld [vmem:[%s0 + $0x38] sm:$0xff]
  %v31 = vld [vmem:[%s0 + $0x40] sm:$0xff]
  %v32 = vld [vmem:[%s0 + $0x48] sm:$0xff]
  %v33 = vld [vmem:[%s0 + $0x50] sm:$0xff]
  %v34 = vld [vmem:[%s0 + $0x58] sm:$0xff]
  %v35 = vld [vmem:[%s0 + $0x60] sm:$0xff]
  %v36 = vld [vmem:[%s0 + $0x68] sm:$0xff]
  %v37 = vld [vmem:[%s0 + $0x70] sm:$0xff]
  %v38 = vld [vmem:[%s0 + $0x78] sm:$0xff]
  %v39 = vld [vmem:[%s1] sm:$0x1]
  %v41 = vperm.slane %v39, 0
  %v43 = vmul.f32 %v23, %v41
  %v44 = vmul.f32 %v24, %v41
  %v45 = vmul.f32 %v25, %v41
  %v46 = vmul.f32 %v26, %v41
  %v47 = vmul.f32 %v27, %v41
  %v48 = vmul.f32 %v28, %v41
  %v49 = vmul.f32 %v29, %v41
  %v50 = vmul.f32 %v30, %v41
  %v51 = vmul.f32 %v31, %v41
  %v52 = vmul.f32 %v32, %v41
  %v53 = vmul.f32 %v33, %v41
  %v54 = vmul.f32 %v34, %v41
  %v55 = vmul.f32 %v35, %v41
  %v56 = vmul.f32 %v36, %v41
  %v57 = vmul.f32 %v37, %v41
  %v58 = vmul.f32 %v38, %v41
  %v59 = vld [vmem:[%s2] sm:$0x1]
  %v61 = vperm.slane %v59, 0
  %v63 = vadd.f32 %v43, %v61
  %v64 = vadd.f32 %v44, %v61
  %v65 = vadd.f32 %v45, %v61
  %v66 = vadd.f32 %v46, %v61
  %v67 = vadd.f32 %v47, %v61
  %v68 = vadd.f32 %v48, %v61
  %v69 = vadd.f32 %v49, %v61
  %v70 = vadd.f32 %v50, %v61
  %v71 = vadd.f32 %v51, %v61
  %v72 = vadd.f32 %v52, %v61
  %v73 = vadd.f32 %v53, %v61
  %v74 = vadd.f32 %v54, %v61
  %v75 = vadd.f32 %v55, %v61
  %v76 = vadd.f32 %v56, %v61
  %v77 = vadd.f32 %v57, %v61
  %v78 = vadd.f32 %v58, %v61
  %v79 = vld [vmem:[%s3] sm:$0xff]
  %v80 = vld [vmem:[%s3 + $0x8] sm:$0xff]
  %v81 = vld [vmem:[%s3 + $0x10] sm:$0xff]
  %v82 = vld [vmem:[%s3 + $0x18] sm:$0xff]
  %v83 = vld [vmem:[%s3 + $0x20] sm:$0xff]
  %v84 = vld [vmem:[%s3 + $0x28] sm:$0xff]
  %v85 = vld [vmem:[%s3 + $0x30] sm:$0xff]
  %v86 = vld [vmem:[%s3 + $0x38] sm:$0xff]
  %v87 = vld [vmem:[%s3 + $0x40] sm:$0xff]
  %v88 = vld [vmem:[%s3 + $0x48] sm:$0xff]
  %v89 = vld [vmem:[%s3 + $0x50] sm:$0xff]
  %v90 = vld [vmem:[%s3 + $0x58] sm:$0xff]
  %v91 = vld [vmem:[%s3 + $0x60] sm:$0xff]
  %v92 = vld [vmem:[%s3 + $0x68] sm:$0xff]
  %v93 = vld [vmem:[%s3 + $0x70] sm:$0xff]
  %v94 = vld [vmem:[%s3 + $0x78] sm:$0xff]
  %v95 = vld [vmem:[%s4] sm:$0x1]
  %v97 = vperm.slane %v95, 0
  %v99 = vmul.f32 %v79, %v97
  %v100 = vmul.f32 %v80, %v97
  %v101 = vmul.f32 %v81, %v97
  %v102 = vmul.f32 %v82, %v97
  %v103 = vmul.f32 %v83, %v97
  %v104 = vmul.f32 %v84, %v97
  %v105 = vmul.f32 %v85, %v97
  %v106 = vmul.f32 %v86, %v97
  %v107 = vmul.f32 %v87, %v97
  %v108 = vmul.f32 %v88, %v97
  %v109 = vmul.f32 %v89, %v97
  %v110 = vmul.f32 %v90, %v97
  %v111 = vmul.f32 %v91, %v97
  %v112 = vmul.f32 %v92, %v97
  %v113 = vmul.f32 %v93, %v97
  %v114 = vmul.f32 %v94, %v97
  %v115 = vld [vmem:[%s5] sm:$0x1]
  %v117 = vperm.slane %v115, 0
  %v119 = vadd.f32 %v99, %v117
  %v120 = vadd.f32 %v100, %v117
  %v121 = vadd.f32 %v101, %v117
  %v122 = vadd.f32 %v102, %v117
  %v123 = vadd.f32 %v103, %v117
  %v124 = vadd.f32 %v104, %v117
  %v125 = vadd.f32 %v105, %v117
  %v126 = vadd.f32 %v106, %v117
  %v127 = vadd.f32 %v107, %v117
  %v128 = vadd.f32 %v108, %v117
  %v129 = vadd.f32 %v109, %v117
  %v130 = vadd.f32 %v110, %v117
  %v131 = vadd.f32 %v111, %v117
  %v132 = vadd.f32 %v112, %v117
  %v133 = vadd.f32 %v113, %v117
  %v134 = vadd.f32 %v114, %v117
  %v135 = vadd.f32 %v63, %v119
  %v136 = vadd.f32 %v64, %v120
  %v137 = vadd.f32 %v65, %v121
  %v138 = vadd.f32 %v66, %v122
  %v139 = vadd.f32 %v67, %v123
  %v140 = vadd.f32 %v68, %v124
  %v141 = vadd.f32 %v69, %v125
  %v142 = vadd.f32 %v70, %v126
  %v143 = vadd.f32 %v71, %v127
  %v144 = vadd.f32 %v72, %v128
  %v145 = vadd.f32 %v73, %v129
  %v146 = vadd.f32 %v74, %v130
  %v147 = vadd.f32 %v75, %v131
  %v148 = vadd.f32 %v76, %v132
  %v149 = vadd.f32 %v77, %v133
  %v150 = vadd.f32 %v78, %v134
  %v151 = vmax.f32 %v135, 0.0
  %v152 = vmax.f32 %v136, 0.0
  %v153 = vmax.f32 %v137, 0.0
  %v154 = vmax.f32 %v138, 0.0
  %v155 = vmax.f32 %v139, 0.0
  %v156 = vmax.f32 %v140, 0.0
  %v157 = vmax.f32 %v141, 0.0
  %v158 = vmax.f32 %v142, 0.0
  %v159 = vmax.f32 %v143, 0.0
  %v160 = vmax.f32 %v144, 0.0
  %v161 = vmax.f32 %v145, 0.0
  %v162 = vmax.f32 %v146, 0.0
  %v163 = vmax.f32 %v147, 0.0
  %v164 = vmax.f32 %v148, 0.0
  %v165 = vmax.f32 %v149, 0.0
  %v166 = vmax.f32 %v150, 0.0
  %167 = vst [vmem:[%s6] sm:$0xff] %v151
  %168 = vst [vmem:[%s6 + $0x8] sm:$0xff] %v152
  %169 = vst [vmem:[%s6 + $0x10] sm:$0xff] %v153
  %170 = vst [vmem:[%s6 + $0x18] sm:$0xff] %v154
  %171 = vst [vmem:[%s6 + $0x20] sm:$0xff] %v155
  %172 = vst [vmem:[%s6 + $0x28] sm:$0xff] %v156
  %173 = vst [vmem:[%s6 + $0x30] sm:$0xff] %v157
  %174 = vst [vmem:[%s6 + $0x38] sm:$0xff] %v158
  %175 = vst [vmem:[%s6 + $0x40] sm:$0xff] %v159
  %176 = vst [vmem:[%s6 + $0x48] sm:$0xff] %v160
  %177 = vst [vmem:[%s6 + $0x50] sm:$0xff] %v161
  %178 = vst [vmem:[%s6 + $0x58] sm:$0xff] %v162
  %179 = vst [vmem:[%s6 + $0x60] sm:$0xff] %v163
  %180 = vst [vmem:[%s6 + $0x68] sm:$0xff] %v164
  %181 = vst [vmem:[%s6 + $0x70] sm:$0xff] %v165
  %182 = vst [vmem:[%s6 + $0x78] sm:$0xff] %v166
  // Predicated region
  $region26: #{residual_block_forward.5} parent=0 // pred_check
    _
  $region27: #{residual_block_forward.5} parent=0 // pred_check_branch
    %184 = sbr.rel (0) target = $region29
  $region28: #{residual_block_forward.5} parent=0 // pred_region
    _
  $region29: #{residual_block_forward.5} parent=0 // pred_fallthru
    _
  // Predicated region
  $region30: #{residual_block_forward.5} parent=0 // pred_check
    _
  $region31: #{residual_block_forward.5} parent=0 // pred_check_branch
    %186 = sbr.rel (0) target = $region33
  $region32: #{residual_block_forward.5} parent=0 // pred_region
    _
  $region33: #{residual_block_forward.5} parent=0 // pred_fallthru
    _

// kernel: residual_block_forward.3
$region0: #{residual_block_forward.3}
  #allocation0 [shape = 'u32[]', space=smem, size = 0x4, offset = 0x4, fixed_abs, tag = 'smem constant byte address 0x4 - core index']
  #allocation1 [shape = 'u32[72,128]{1,0:T(1,128)}', space=vmem, size = 0x9000, scoped, tag = 'internal scratch']
  %s0 = inlined_call_operand.vmem [shape: bf16[2,36,9,128], index: 0, kind: input, shape index: {}]
  %s1 = inlined_call_operand.vmem [shape: bf16[9,128,128], index: 1, kind: input, shape index: {}]
  %s2 = inlined_call_operand.vmem [shape: bf16[1,128,128], index: 2, kind: input, shape index: {}]
  %s3 = inlined_call_operand.vmem [shape: f32[2,64,128], index: 3, kind: output, shape index: {0}]
  %s4 = inlined_call_operand.vmem [shape: f32[2,1,128], index: 4, kind: output, shape index: {1}]
  %s5 = inlined_call_operand.vmem [shape: f32[2,1,128], index: 5, kind: output, shape index: {2}]
  %s6 = inlined_call_operand.vmem [shape: f32[2,64,128], index: 6, kind: output, shape index: {3}]
  %s7 = inlined_call_operand.vmem [shape: f32[2,1,128], index: 7, kind: output, shape index: {4}]
  %s8 = inlined_call_operand.vmem [shape: f32[2,1,128], index: 8, kind: output, shape index: {5}]
  %9 = xla_tuple %s3, %s4, %s5, %s6, %s7, %s8
  %s10 = sld [smem:[#allocation0]]
  $region85: #{residual_block_forward.3} parent=0
    _
  %s12 = ssub.s32 1, %s10
  %s13 = scalar_select 0, %s12, %s10
  loop: start=0, step=1, limit=4
  $region2: #{residual_block_forward.3} parent=0 // loop_pre_header
    _
  $region3: #{residual_block_forward.3} parent=0 // loop_header
    %s15 = sphi 0, %s19
    %p16 = scmp.ge.s32.totalorder %s15, 4
    %s25 = sphi 0, %s27
    %s28 = sphi 0, %s25
    %s29 = sphi 0, %s28
    %s45 = sphi 0, %s29
    %s49 = sphi 0, %s49
    %s51 = sphi 0, %s49
    %s52 = sphi 0, %s51
    %s66 = sphi 0, %s52
    %s70 = sphi 0, %s70
    %s72 = sphi 0, %s70
    %s73 = sphi 0, %s72
    %s87 = sphi 0, %s73
    %s93 = sphi 0, %s95
    %s96 = sphi 0, %s93
    %s97 = sphi 0, %s96
    %s113 = sphi 0, %s97
    %s119 = sphi 0, %s121
    %s122 = sphi 0, %s119
    %s123 = sphi 0, %s122
    %s139 = sphi 0, %s123
    %s145 = sphi 0, %s147
    %s148 = sphi 0, %s145
    %s149 = sphi 0, %s148
    %s165 = sphi 0, %s149
    %s171 = sphi 0, %s173
    %s174 = sphi 0, %s171
    %s175 = sphi 0, %s174
    %s191 = sphi 0, %s175
    %s197 = sphi 0, %s199
    %s200 = sphi 0, %s197
    %s201 = sphi 0, %s200
    %s217 = sphi 0, %s201
    %s223 = sphi 0, %s225
    %s226 = sphi 0, %s223
    %s227 = sphi 0, %s226
    %s243 = sphi 0, %s227
  $region4: #{residual_block_forward.3} parent=0 // loop_header_branch
    %18 = sbr.rel (%p16) target = $region8
  $region5: #{residual_block_forward.3} parent=0 // loop_body
    %s20 = ssub.s32 %s15, 1
    %s21 = ssub.s32 %s15, 2
    %s22 = sadd.s32 %s15, 1
    %s23 = ssub.s32 %s15, %s22
    %p24 = scmp.eq.s32.totalorder %s23, 0
    %s26 = sadd.s32 %s25, 1
    %s27 = scalar_select %p24, %s25, %s26
    %p30 = pneg %p24
    %p31 = scmp.eq.s32.totalorder %s15, 1
    %p32 = por %p30, %p31
    %p33 = scmp.ne.s32.totalorder %s25, %s28
    %p34 = scmp.eq.s32.totalorder %s15, 0
    %p35 = por %p33, %p34
    %p36 = scmp.ne.s32.totalorder %s25, %s28
    %p37 = scmp.eq.s32.totalorder %s20, 1
    %p38 = por %p36, %p37
    %p39 = scmp.ne.s32.totalorder %s28, %s29
    %p40 = scmp.eq.s32.totalorder %s20, 0
    %p41 = por %p39, %p40
    %p42 = scmp.ne.s32.totalorder %s28, %s29
    %p43 = scmp.eq.s32.totalorder %s21, 1
    %p44 = por %p42, %p43
    %p46 = scmp.ne.s32.totalorder %s29, %s45
    %p47 = scmp.eq.s32.totalorder %s21, 0
    %p48 = por %p46, %p47
    %s50 = sadd.s32 %s49, 1
    %p53 = scmp.eq.s32.totalorder %s15, 1
    %p54 = scmp.ne.s32.totalorder %s49, %s51
    %p55 = scmp.eq.s32.totalorder %s15, 0
    %p56 = por %p54, %p55
    %p57 = scmp.ne.s32.totalorder %s49, %s51
    %p58 = scmp.eq.s32.totalorder %s20, 1
    %p59 = por %p57, %p58
    %p60 = scmp.ne.s32.totalorder %s51, %s52
    %p61 = scmp.eq.s32.totalorder %s20, 0
    %p62 = por %p60, %p61
    %p63 = scmp.ne.s32.totalorder %s51, %s52
    %p64 = scmp.eq.s32.totalorder %s21, 1
    %p65 = por %p63, %p64
    %p67 = scmp.ne.s32.totalorder %s52, %s66
    %p68 = scmp.eq.s32.totalorder %s21, 0
    %p69 = por %p67, %p68
    %s71 = sadd.s32 %s70, 1
    %p74 = scmp.eq.s32.totalorder %s15, 1
    %p75 = scmp.ne.s32.totalorder %s70, %s72
    %p76 = scmp.eq.s32.totalorder %s15, 0
    %p77 = por %p75, %p76
    %p78 = scmp.ne.s32.totalorder %s70, %s72
    %p79 = scmp.eq.s32.totalorder %s20, 1
    %p80 = por %p78, %p79
    %p81 = scmp.ne.s32.totalorder %s72, %s73
    %p82 = scmp.eq.s32.totalorder %s20, 0
    %p83 = por %p81, %p82
    %p84 = scmp.ne.s32.totalorder %s72, %s73
    %p85 = scmp.eq.s32.totalorder %s21, 1
    %p86 = por %p84, %p85
    %p88 = scmp.ne.s32.totalorder %s73, %s87
    %p89 = scmp.eq.s32.totalorder %s21, 0
    %p90 = por %p88, %p89
    %s91 = ssub.s32 %s15, %s22
    %p92 = scmp.eq.s32.totalorder %s91, 0
    %s94 = sadd.s32 %s93, 1
    %s95 = scalar_select %p92, %s93, %s94
    %p98 = pneg %p92
    %p99 = scmp.eq.s32.totalorder %s15, 1
    %p100 = por %p98, %p99
    %p101 = scmp.ne.s32.totalorder %s93, %s96
    %p102 = scmp.eq.s32.totalorder %s15, 0
    %p103 = por %p101, %p102
    %p104 = scmp.ne.s32.totalorder %s93, %s96
    %p105 = scmp.eq.s32.totalorder %s20, 1
    %p106 = por %p104, %p105
    %p107 = scmp.ne.s32.totalorder %s96, %s97
    %p108 = scmp.eq.s32.totalorder %s20, 0
    %p109 = por %p107, %p108
    %p110 = scmp.ne.s32.totalorder %s96, %s97
    %p111 = scmp.eq.s32.totalorder %s21, 1
    %p112 = por %p110, %p111
    %p114 = scmp.ne.s32.totalorder %s97, %s113
    %p115 = scmp.eq.s32.totalorder %s21, 0
    %p116 = por %p114, %p115
    %s117 = ssub.s32 %s15, %s22
    %p118 = scmp.eq.s32.totalorder %s117, 0
    %s120 = sadd.s32 %s119, 1
    %s121 = scalar_select %p118, %s119, %s120
    %p124 = pneg %p118
    %p125 = scmp.eq.s32.totalorder %s15, 1
    %p126 = por %p124, %p125
    %p127 = scmp.ne.s32.totalorder %s119, %s122
    %p128 = scmp.eq.s32.totalorder %s15, 0
    %p129 = por %p127, %p128
    %p130 = scmp.ne.s32.totalorder %s119, %s122
    %p131 = scmp.eq.s32.totalorder %s20, 1
    %p132 = por %p130, %p131
    %p133 = scmp.ne.s32.totalorder %s122, %s123
    %p134 = scmp.eq.s32.totalorder %s20, 0
    %p135 = por %p133, %p134
    %p136 = scmp.ne.s32.totalorder %s122, %s123
    %p137 = scmp.eq.s32.totalorder %s21, 1
    %p138 = por %p136, %p137
    %p140 = scmp.ne.s32.totalorder %s123, %s139
    %p141 = scmp.eq.s32.totalorder %s21, 0
    %p142 = por %p140, %p141
    %s143 = ssub.s32 %s15, %s22
    %p144 = scmp.eq.s32.totalorder %s143, 0
    %s146 = sadd.s32 %s145, 1
    %s147 = scalar_select %p144, %s145, %s146
    %p150 = pneg %p144
    %p151 = scmp.eq.s32.totalorder %s15, 1
    %p152 = por %p150, %p151
    %p153 = scmp.ne.s32.totalorder %s145, %s148
    %p154 = scmp.eq.s32.totalorder %s15, 0
    %p155 = por %p153, %p154
    %p156 = scmp.ne.s32.totalorder %s145, %s148
    %p157 = scmp.eq.s32.totalorder %s20, 1
    %p158 = por %p156, %p157
    %p159 = scmp.ne.s32.totalorder %s148, %s149
    %p160 = scmp.eq.s32.totalorder %s20, 0
    %p161 = por %p159, %p160
    %p162 = scmp.ne.s32.totalorder %s148, %s149
    %p163 = scmp.eq.s32.totalorder %s21, 1
    %p164 = por %p162, %p163
    %p166 = scmp.ne.s32.totalorder %s149, %s165
    %p167 = scmp.eq.s32.totalorder %s21, 0
    %p168 = por %p166, %p167
    %s169 = ssub.s32 %s15, %s22
    %p170 = scmp.eq.s32.totalorder %s169, 0
    %s172 = sadd.s32 %s171, 1
    %s173 = scalar_select %p170, %s171, %s172
    %p176 = pneg %p170
    %p177 = scmp.eq.s32.totalorder %s15, 1
    %p178 = por %p176, %p177
    %p179 = scmp.ne.s32.totalorder %s171, %s174
    %p180 = scmp.eq.s32.totalorder %s15, 0
    %p181 = por %p179, %p180
    %p182 = scmp.ne.s32.totalorder %s171, %s174
    %p183 = scmp.eq.s32.totalorder %s20, 1
    %p184 = por %p182, %p183
    %p185 = scmp.ne.s32.totalorder %s174, %s175
    %p186 = scmp.eq.s32.totalorder %s20, 0
    %p187 = por %p185, %p186
    %p188 = scmp.ne.s32.totalorder %s174, %s175
    %p189 = scmp.eq.s32.totalorder %s21, 1
    %p190 = por %p188, %p189
    %p192 = scmp.ne.s32.totalorder %s175, %s191
    %p193 = scmp.eq.s32.totalorder %s21, 0
    %p194 = por %p192, %p193
    %s195 = ssub.s32 %s15, %s22
    %p196 = scmp.eq.s32.totalorder %s195, 0
    %s198 = sadd.s32 %s197, 1
    %s199 = scalar_select %p196, %s197, %s198
    %p202 = pneg %p196
    %p203 = scmp.eq.s32.totalorder %s15, 1
    %p204 = por %p202, %p203
    %p205 = scmp.ne.s32.totalorder %s197, %s200
    %p206 = scmp.eq.s32.totalorder %s15, 0
    %p207 = por %p205, %p206
    %p208 = scmp.ne.s32.totalorder %s197, %s200
    %p209 = scmp.eq.s32.totalorder %s20, 1
    %p210 = por %p208, %p209
    %p211 = scmp.ne.s32.totalorder %s200, %s201
    %p212 = scmp.eq.s32.totalorder %s20, 0
    %p213 = por %p211, %p212
    %p214 = scmp.ne.s32.totalorder %s200, %s201
    %p215 = scmp.eq.s32.totalorder %s21, 1
    %p216 = por %p214, %p215
    %p218 = scmp.ne.s32.totalorder %s201, %s217
    %p219 = scmp.eq.s32.totalorder %s21, 0
    %p220 = por %p218, %p219
    %s221 = ssub.s32 %s15, %s22
    %p222 = scmp.eq.s32.totalorder %s221, 0
    %s224 = sadd.s32 %s223, 1
    %s225 = scalar_select %p222, %s223, %s224
    %p228 = pneg %p222
    %p229 = scmp.eq.s32.totalorder %s15, 1
    %p230 = por %p228, %p229
    %p231 = scmp.ne.s32.totalorder %s223, %s226
    %p232 = scmp.eq.s32.totalorder %s15, 0
    %p233 = por %p231, %p232
    %p234 = scmp.ne.s32.totalorder %s223, %s226
    %p235 = scmp.eq.s32.totalorder %s20, 1
    %p236 = por %p234, %p235
    %p237 = scmp.ne.s32.totalorder %s226, %s227
    %p238 = scmp.eq.s32.totalorder %s20, 0
    %p239 = por %p237, %p238
    %p240 = scmp.ne.s32.totalorder %s226, %s227
    %p241 = scmp.eq.s32.totalorder %s21, 1
    %p242 = por %p240, %p241
    %p244 = scmp.ne.s32.totalorder %s227, %s243
    %p245 = scmp.eq.s32.totalorder %s21, 0
    %p246 = por %p244, %p245
    %p247 = scmp.le.s32.totalorder 1, %s15
    %p248 = scmp.lt.s32.totalorder %s15, 3
    %p249 = pnand %p247, %p248
    %p250 = pneg %p249
    // Predicated region
    $region9: #{residual_block_forward.3} parent=5 // pred_check
      _
    $region10: #{residual_block_forward.3} parent=5 // pred_check_branch
      %252 = sbr.rel (%p249) target = $region12
    $region11: #{residual_block_forward.3} parent=5 // pred_region
      %s253 = ssub.s32 %s15, 1
      // Predicated region
      $region13: #{residual_block_forward.3} parent=11 // pred_check
        %p254 = pneg %p62
      $region14: #{residual_block_forward.3} parent=11 // pred_check_branch
        %256 = sbr.rel (%p254) target = $region16
      $region15: #{residual_block_forward.3} parent=11 // pred_region
        _
      $region16: #{residual_block_forward.3} parent=11 // pred_fallthru
        _
      // Predicated region
      $region17: #{residual_block_forward.3} parent=11 // pred_check
        %p257 = pneg %p83
      $region18: #{residual_block_forward.3} parent=11 // pred_check_branch
        %259 = sbr.rel (%p257) target = $region20
      $region19: #{residual_block_forward.3} parent=11 // pred_region
        _
      $region20: #{residual_block_forward.3} parent=11 // pred_fallthru
        _
    $region12: #{residual_block_forward.3} parent=5 // pred_fallthru
      _
    %p260 = scmp.lt.s32.totalorder %s15, 2
    // Predicated region
    $region21: #{residual_block_forward.3} parent=5 // pred_check
      %p261 = pneg %p260
    $region22: #{residual_block_forward.3} parent=5 // pred_check_branch
      %263 = sbr.rel (%p261) target = $region24
    $region23: #{residual_block_forward.3} parent=5 // pred_region
      // Predicated region
      $region25: #{residual_block_forward.3} parent=23 // pred_check
        %p264 = pneg %p35
      $region26: #{residual_block_forward.3} parent=23 // pred_check_branch
        %266 = sbr.rel (%p264) target = $region28
      $region27: #{residual_block_forward.3} parent=23 // pred_region
        %p267 = scmp.lt.s32.totalorder %s15, 1
        %s268 = scalar_select %p267, %s15, 1
        %s269 = smul.addr %s268, 72
        %s270 = smul.addr %s269, 4
        %s271 = scalar_lea.vmem %s0, %s270
      $region28: #{residual_block_forward.3} parent=23 // pred_fallthru
        _
    $region24: #{residual_block_forward.3} parent=5 // pred_fallthru
      _
    %p272 = scmp.le.s32.totalorder 1, %s15
    %p273 = scmp.lt.s32.totalorder %s15, 3
    %p274 = pnand %p272, %p273
    %p275 = pneg %p274
    // Predicated region
    $region29: #{residual_block_forward.3} parent=5 // pred_check
      _
    $region30: #{residual_block_forward.3} parent=5 // pred_check_branch
      %277 = sbr.rel (%p274) target = $region32
    $region31: #{residual_block_forward.3} parent=5 // pred_region
      %s278 = ssub.s32 %s15, 1
      %p279 = scmp.lt.s32.totalorder %s20, 1
      %s280 = scalar_select %p279, %s20, 1
      %s281 = smul.addr %s280, 72
      %s282 = smul.addr %s281, 4
      %s283 = scalar_lea.vmem %s0, %s282
      %p284 = pneg %p41
      %p285 = pneg %p38
      %p286 = pneg %p62
      %p287 = pneg %p59
      %p288 = pneg %p83
      %p289 = pneg %p80
      %p290 = pneg %p109
      %p291 = pneg %p106
      %p292 = scmp.lt.s32.totalorder %s20, 1
      %s293 = scalar_select %p292, %s20, 1
      %s294 = smul.addr %s293, 8
      %s295 = smul.addr %s294, 8
      %s296 = scalar_lea.vmem %s3, %s295
      %p297 = pneg %p135
      %p298 = pneg %p132
      %p299 = scmp.lt.s32.totalorder %s20, 1
      %s300 = scalar_select %p299, %s20, 1
      %s301 = scalar_lea.vmem %s4, %s300
      %p302 = pneg %p161
      %p303 = pneg %p158
      %p304 = scmp.lt.s32.totalorder %s20, 1
      %s305 = scalar_select %p304, %s20, 1
      %s306 = scalar_lea.vmem %s5, %s305
      %p307 = pneg %p187
      %p308 = pneg %p184
      %p309 = scmp.lt.s32.totalorder %s20, 1
      %s310 = scalar_select %p309, %s20, 1
      %s311 = smul.addr %s310, 8
      %s312 = smul.addr %s311, 8
      %s313 = scalar_lea.vmem %s6, %s312
      %p314 = pneg %p213
      %p315 = pneg %p210
      %p316 = scmp.lt.s32.totalorder %s20, 1
      %s317 = scalar_select %p316, %s20, 1
      %s318 = scalar_lea.vmem %s7, %s317
      %p319 = pneg %p239
      %p320 = pneg %p236
      %p321 = scmp.lt.s32.totalorder %s20, 1
      %s322 = scalar_select %p321, %s20, 1
      %s323 = scalar_lea.vmem %s8, %s322
      %p324 = scmp.lt.s32.totalorder %s20, 1
      %s325 = scalar_select %p324, %s20, 1
      %s326 = smul.addr %s325, 72
      %s327 = smul.addr %s326, 4
      %s328 = scalar_lea.vmem %s0, %s327
      %p329 = scmp.lt.s32.totalorder %s20, 1
      %s330 = scalar_select %p329, %s20, 1
      %s331 = smul.addr %s330, 8
      %s332 = smul.addr %s331, 8
      %s333 = scalar_lea.vmem %s3, %s332
      %p334 = scmp.lt.s32.totalorder %s20, 1
      %s335 = scalar_select %p334, %s20, 1
      %s336 = scalar_lea.vmem %s4, %s335
      %p337 = scmp.lt.s32.totalorder %s20, 1
      %s338 = scalar_select %p337, %s20, 1
      %s339 = scalar_lea.vmem %s5, %s338
      %p340 = scmp.lt.s32.totalorder %s20, 1
      %s341 = scalar_select %p340, %s20, 1
      %s342 = smul.addr %s341, 8
      %s343 = smul.addr %s342, 8
      %s344 = scalar_lea.vmem %s6, %s343
      %p345 = scmp.lt.s32.totalorder %s20, 1
      %s346 = scalar_select %p345, %s20, 1
      %s347 = scalar_lea.vmem %s7, %s346
      %p348 = scmp.lt.s32.totalorder %s20, 1
      %s349 = scalar_select %p348, %s20, 1
      %s350 = scalar_lea.vmem %s8, %s349
      %v351 = vld [vmem:[%s328] sm:$0xf]
      %v352 = vld [vmem:[%s328 + $0x8] sm:$0xf]
      %v353 = vld [vmem:[%s328 + $0x10] sm:$0xf]
      %v354 = vld [vmem:[%s328 + $0x18] sm:$0xf]
      %v355 = vld [vmem:[%s328 + $0x20] sm:$0xf]
      %v356 = vld [vmem:[%s328 + $0x28] sm:$0xf]
      %v357 = vld [vmem:[%s328 + $0x30] sm:$0xf]
      %v358 = vld [vmem:[%s328 + $0x38] sm:$0xf]
      %v359 = vld [vmem:[%s1] sm:$0xf]
      %v360 = vld [vmem:[%s1 + $0x4] sm:$0xf]
      %v361 = vld [vmem:[%s1 + $0x8] sm:$0xf]
      %v362 = vld [vmem:[%s1 + $0xc] sm:$0xf]
      %v363 = vld [vmem:[%s1 + $0x10] sm:$0xf]
      %v364 = vld [vmem:[%s1 + $0x14] sm:$0xf]
      %v365 = vld [vmem:[%s1 + $0x18] sm:$0xf]
      %v366 = vld [vmem:[%s1 + $0x1c] sm:$0xf]
      %v367 = vld [vmem:[%s1 + $0x20] sm:$0xf]
      %v368 = vld [vmem:[%s1 + $0x24] sm:$0xf]
      %v369 = vld [vmem:[%s1 + $0x28] sm:$0xf]
      %v370 = vld [vmem:[%s1 + $0x2c] sm:$0xf]
      %v371 = vld [vmem:[%s1 + $0x30] sm:$0xf]
      %v372 = vld [vmem:[%s1 + $0x34] sm:$0xf]
      %v373 = vld [vmem:[%s1 + $0x38] sm:$0xf]
      %v374 = vld [vmem:[%s1 + $0x3c] sm:$0xf]
      %s375 = scalar_lea.vmem %s328, 72
      %v376 = vld [vmem:[%s375] sm:$0xf]
      %v377 = vld [vmem:[%s375 + $0x8] sm:$0xf]
      %v378 = vld [vmem:[%s375 + $0x10] sm:$0xf]
      %v379 = vld [vmem:[%s375 + $0x18] sm:$0xf]
      %v380 = vld [vmem:[%s375 + $0x20] sm:$0xf]
      %v381 = vld [vmem:[%s375 + $0x28] sm:$0xf]
      %v382 = vld [vmem:[%s375 + $0x30] sm:$0xf]
      %v383 = vld [vmem:[%s375 + $0x38] sm:$0xf]
      %s384 = scalar_lea.vmem %s1, 64
      %v385 = vld [vmem:[%s384] sm:$0xf]
      %v386 = vld [vmem:[%s384 + $0x4] sm:$0xf]
      %v387 = vld [vmem:[%s384 + $0x8] sm:$0xf]
      %v388 = vld [vmem:[%s384 + $0xc] sm:$0xf]
      %v389 = vld [vmem:[%s384 + $0x10] sm:$0xf]
      %v390 = vld [vmem:[%s384 + $0x14] sm:$0xf]
      %v391 = vld [vmem:[%s384 + $0x18] sm:$0xf]
      %v392 = vld [vmem:[%s384 + $0x1c] sm:$0xf]
      %v393 = vld [vmem:[%s384 + $0x20] sm:$0xf]
      %v394 = vld [vmem:[%s384 + $0x24] sm:$0xf]
      %v395 = vld [vmem:[%s384 + $0x28] sm:$0xf]
      %v396 = vld [vmem:[%s384 + $0x2c] sm:$0xf]
      %v397 = vld [vmem:[%s384 + $0x30] sm:$0xf]
      %v398 = vld [vmem:[%s384 + $0x34] sm:$0xf]
      %v399 = vld [vmem:[%s384 + $0x38] sm:$0xf]
      %v400 = vld [vmem:[%s384 + $0x3c] sm:$0xf]
      %v409 = vunpack.c.l.b16 %v376
      %v410 = vunpack.c.l.b16 %v377
      %v411 = vunpack.c.l.b16 %v378
      %v412 = vunpack.c.l.b16 %v379
      %v413 = vunpack.c.l.b16 %v380
      %v414 = vunpack.c.l.b16 %v381
      %v415 = vunpack.c.l.b16 %v382
      %v416 = vunpack.c.l.b16 %v383
      %v417 = vpack.c.b16 %v410, %v409
      %v418 = vpack.c.b16 %v412, %v411
      %v419 = vpack.c.b16 %v414, %v413
      %v420 = vpack.c.b16 %v416, %v415
      %v441 = vunpack.c.l.b16 %v385
      %v442 = vunpack.c.l.b16 %v386
      %v443 = vunpack.c.l.b16 %v387
      %v444 = vunpack.c.l.b16 %v388
      %v445 = vunpack.c.l.b16 %v389
      %v446 = vunpack.c.l.b16 %v390
      %v447 = vunpack.c.l.b16 %v391
      %v448 = vunpack.c.l.b16 %v392
      %v449 = vunpack.c.l.b16 %v393
      %v450 = vunpack.c.l.b16 %v394
      %v451 = vunpack.c.l.b16 %v395
      %v452 = vunpack.c.l.b16 %v396
      %v453 = vunpack.c.l.b16 %v397
      %v454 = vunpack.c.l.b16 %v398
      %v455 = vunpack.c.l.b16 %v399
      %v456 = vunpack.c.l.b16 %v400
      %v457 = vpack.c.b16 %v442, %v441
      %v458 = vpack.c.b16 %v444, %v443
      %v459 = vpack.c.b16 %v446, %v445
      %v460 = vpack.c.b16 %v448, %v447
      %v461 = vpack.c.b16 %v450, %v449
      %v462 = vpack.c.b16 %v452, %v451
      %v463 = vpack.c.b16 %v454, %v453
      %v464 = vpack.c.b16 %v456, %v455
      %473 = vmatpush.bf16.msra.mxu0 %v464
      %474 = vmatpush.bf16.msra.mxu0 %v463
      %475 = vmatpush.bf16.msra.mxu0 %v462
      %476 = vmatpush.bf16.msra.mxu0 %v461
      %477 = vmatpush.bf16.msra.mxu0 %v460
      %478 = vmatpush.bf16.msra.mxu0 %v459
      %479 = vmatpush.bf16.msra.mxu0 %v458
      %480 = vmatpush.bf16.msra.mxu0 %v457
      %481 = vmatmul.bf16.gmra.mxu0 %v417
      %v482 = vpop.f32.mrf.mxu0
      %v483 = vadd.f32 0.0, %v482
      %v484 = vpop.f32.mrf.mxu0
      %v485 = vadd.f32 0.0, %v484
      %486 = vmatmul.bf16.gmra.mxu0 %v418
      %v487 = vpop.f32.mrf.mxu0
      %v488 = vadd.f32 0.0, %v487
      %v489 = vpop.f32.mrf.mxu0
      %v490 = vadd.f32 0.0, %v489
      %491 = vmatmul.bf16.gmra.mxu0 %v419
      %v492 = vpop.f32.mrf.mxu0
      %v493 = vadd.f32 0.0, %v492
      %v494 = vpop.f32.mrf.mxu0
      %v495 = vadd.f32 0.0, %v494
      %496 = vmatmul.bf16.gmra.mxu0 %v420
      %v497 = vpop.f32.mrf.mxu0
      %v498 = vadd.f32 0.0, %v497
      %v499 = vpop.f32.mrf.mxu0
      %v500 = vadd.f32 0.0, %v499
      %501 = vdwg.mxu0
      %v510 = vunpack.c.l.b16 %v351
      %v511 = vunpack.c.l.b16 %v352
      %v512 = vunpack.c.l.b16 %v353
      %v513 = vunpack.c.l.b16 %v354
      %v514 = vunpack.c.l.b16 %v355
      %v515 = vunpack.c.l.b16 %v356
      %v516 = vunpack.c.l.b16 %v357
      %v517 = vunpack.c.l.b16 %v358
      %v518 = vpack.c.b16 %v511, %v510
      %v519 = vpack.c.b16 %v513, %v512
      %v520 = vpack.c.b16 %v515, %v514
      %v521 = vpack.c.b16 %v517, %v516
      %v542 = vunpack.c.l.b16 %v359
      %v543 = vunpack.c.l.b16 %v360
      %v544 = vunpack.c.l.b16 %v361
      %v545 = vunpack.c.l.b16 %v362
      %v546 = vunpack.c.l.b16 %v363
      %v547 = vunpack.c.l.b16 %v364
      %v548 = vunpack.c.l.b16 %v365
      %v549 = vunpack.c.l.b16 %v366
      %v550 = vunpack.c.l.b16 %v367
      %v551 = vunpack.c.l.b16 %v368
      %v552 = vunpack.c.l.b16 %v369
      %v553 = vunpack.c.l.b16 %v370
      %v554 = vunpack.c.l.b16 %v371
      %v555 = vunpack.c.l.b16 %v372
      %v556 = vunpack.c.l.b16 %v373
      %v557 = vunpack.c.l.b16 %v374
      %v558 = vpack.c.b16 %v543, %v542
      %v559 = vpack.c.b16 %v545, %v544
      %v560 = vpack.c.b16 %v547, %v546
      %v561 = vpack.c.b16 %v549, %v548
      %v562 = vpack.c.b16 %v551, %v550
      %v563 = vpack.c.b16 %v553, %v552
      %v564 = vpack.c.b16 %v555, %v554
      %v565 = vpack.c.b16 %v557, %v556
      %574 = vmatpush.bf16.msra.mxu0 %v565
      %575 = vmatpush.bf16.msra.mxu0 %v564
      %576 = vmatpush.bf16.msra.mxu0 %v563
      %577 = vmatpush.bf16.msra.mxu0 %v562
      %578 = vmatpush.bf16.msra.mxu0 %v561
      %579 = vmatpush.bf16.msra.mxu0 %v560
      %580 = vmatpush.bf16.msra.mxu0 %v559
      %581 = vmatpush.bf16.msra.mxu0 %v558
      %582 = vmatmul.bf16.gmra.mxu0 %v518
      %v583 = vpop.f32.mrf.mxu0
      %v584 = vadd.f32 %v483, %v583
      %v585 = vpop.f32.mrf.mxu0
      %v586 = vadd.f32 %v485, %v585
      %587 = vmatmul.bf16.gmra.mxu0 %v519
      %v588 = vpop.f32.mrf.mxu0
      %v589 = vadd.f32 %v488, %v588
      %v590 = vpop.f32.mrf.mxu0
      %v591 = vadd.f32 %v490, %v590
      %592 = vmatmul.bf16.gmra.mxu0 %v520
      %v593 = vpop.f32.mrf.mxu0
      %v594 = vadd.f32 %v493, %v593
      %v595 = vpop.f32.mrf.mxu0
      %v596 = vadd.f32 %v495, %v595
      %597 = vmatmul.bf16.gmra.mxu0 %v521
      %v598 = vpop.f32.mrf.mxu0
      %v599 = vadd.f32 %v498, %v598
      %v600 = vpop.f32.mrf.mxu0
      %v601 = vadd.f32 %v500, %v600
      %602 = vdwg.mxu0
      %v603 = vld [vmem:[%s328] sm:$0xf]
      %v604 = vld [vmem:[%s328 + $0x4] sm:$0x1]
      %v605 = vld [vmem:[%s328 + $0x8] sm:$0xf]
      %v606 = vld [vmem:[%s328 + $0xc] sm:$0x1]
      %v607 = vld [vmem:[%s328 + $0x10] sm:$0xf]
      %v608 = vld [vmem:[%s328 + $0x14] sm:$0x1]
      %v609 = vld [vmem:[%s328 + $0x18] sm:$0xf]
      %v610 = vld [vmem:[%s328 + $0x1c] sm:$0x1]
      %v611 = vld [vmem:[%s328 + $0x20] sm:$0xf]
      %v612 = vld [vmem:[%s328 + $0x24] sm:$0x1]
      %v613 = vld [vmem:[%s328 + $0x28] sm:$0xf]
      %v614 = vld [vmem:[%s328 + $0x2c] sm:$0x1]
      %v615 = vld [vmem:[%s328 + $0x30] sm:$0xf]
      %v616 = vld [vmem:[%s328 + $0x34] sm:$0x1]
      %v617 = vld [vmem:[%s328 + $0x38] sm:$0xf]
      %v618 = vld [vmem:[%s328 + $0x3c] sm:$0x1]
      %vm619 = vsmask.f32 3328
      %vm620 = vsmask.f32 7440
      %vm621 = vmor %vm619, %vm620
      %v623 = vshrl.u32 %v603, 16
      %v625 = vrot.slane %v623, 4
      %v626 = vshll.u32 %v603, 16
      %v628 = vrot.slane %v626, 5
      %v629 = vor.u32 %v625, %v628
      %v630 = vrot.slane %v629, 4
      %v632 = vshll.u32 %v604, 16
      %v634 = vrot.slane %v632, 5
      %v635 = vsel %vm621, %v630, %v634
      %v637 = vshrl.u32 %v605, 16
      %v639 = vrot.slane %v637, 4
      %v640 = vshll.u32 %v605, 16
      %v642 = vrot.slane %v640, 5
      %v643 = vor.u32 %v639, %v642
      %v644 = vrot.slane %v643, 4
      %v646 = vshll.u32 %v606, 16
      %v648 = vrot.slane %v646, 5
      %v649 = vsel %vm621, %v644, %v648
      %v651 = vshrl.u32 %v607, 16
      %v653 = vrot.slane %v651, 4
      %v654 = vshll.u32 %v607, 16
      %v656 = vrot.slane %v654, 5
      %v657 = vor.u32 %v653, %v656
      %v658 = vrot.slane %v657, 4
      %v660 = vshll.u32 %v608, 16
      %v662 = vrot.slane %v660, 5
      %v663 = vsel %vm621, %v658, %v662
      %v665 = vshrl.u32 %v609, 16
      %v667 = vrot.slane %v665, 4
      %v668 = vshll.u32 %v609, 16
      %v670 = vrot.slane %v668, 5
      %v671 = vor.u32 %v667, %v670
      %v672 = vrot.slane %v671, 4
      %v674 = vshll.u32 %v610, 16
      %v676 = vrot.slane %v674, 5
      %v677 = vsel %vm621, %v672, %v676
      %v679 = vshrl.u32 %v611, 16
      %v681 = vrot.slane %v679, 4
      %v682 = vshll.u32 %v611, 16
      %v684 = vrot.slane %v682, 5
      %v685 = vor.u32 %v681, %v684
      %v686 = vrot.slane %v685, 4
      %v688 = vshll.u32 %v612, 16
      %v690 = vrot.slane %v688, 5
      %v691 = vsel %vm621, %v686, %v690
      %v693 = vshrl.u32 %v613, 16
      %v695 = vrot.slane %v693, 4
      %v696 = vshll.u32 %v613, 16
      %v698 = vrot.slane %v696, 5
      %v699 = vor.u32 %v695, %v698
      %v700 = vrot.slane %v699, 4
      %v702 = vshll.u32 %v614, 16
      %v704 = vrot.slane %v702, 5
      %v705 = vsel %vm621, %v700, %v704
      %v707 = vshrl.u32 %v615, 16
      %v709 = vrot.slane %v707, 4
      %v710 = vshll.u32 %v615, 16
      %v712 = vrot.slane %v710, 5
      %v713 = vor.u32 %v709, %v712
      %v714 = vrot.slane %v713, 4
      %v716 = vshll.u32 %v616, 16
      %v718 = vrot.slane %v716, 5
      %v719 = vsel %vm621, %v714, %v718
      %v721 = vshrl.u32 %v617, 16
      %v723 = vrot.slane %v721, 4
      %v724 = vshll.u32 %v617, 16
      %v726 = vrot.slane %v724, 5
      %v727 = vor.u32 %v723, %v726
      %v728 = vrot.slane %v727, 4
      %v730 = vshll.u32 %v618, 16
      %v732 = vrot.slane %v730, 5
      %v733 = vsel %vm621, %v728, %v732
      %s734 = scalar_lea.vmem %s1, 128
      %v735 = vld [vmem:[%s734] sm:$0xf]
      %v736 = vld [vmem:[%s734 + $0x4] sm:$0xf]
      %v737 = vld [vmem:[%s734 + $0x8] sm:$0xf]
      %v738 = vld [vmem:[%s734 + $0xc] sm:$0xf]
      %v739 = vld [vmem:[%s734 + $0x10] sm:$0xf]
      %v740 = vld [vmem:[%s734 + $0x14] sm:$0xf]
      %v741 = vld [vmem:[%s734 + $0x18] sm:$0xf]
      %v742 = vld [vmem:[%s734 + $0x1c] sm:$0xf]
      %v743 = vld [vmem:[%s734 + $0x20] sm:$0xf]
      %v744 = vld [vmem:[%s734 + $0x24] sm:$0xf]
      %v745 = vld [vmem:[%s734 + $0x28] sm:$0xf]
      %v746 = vld [vmem:[%s734 + $0x2c] sm:$0xf]
      %v747 = vld [vmem:[%s734 + $0x30] sm:$0xf]
      %v748 = vld [vmem:[%s734 + $0x34] sm:$0xf]
      %v749 = vld [vmem:[%s734 + $0x38] sm:$0xf]
      %v750 = vld [vmem:[%s734 + $0x3c] sm:$0xf]
      %v751 = vunpack.c.l.b16 %v635
      %v752 = vunpack.c.l.b16 %v649
      %v753 = vunpack.c.l.b16 %v663
      %v754 = vunpack.c.l.b16 %v677
      %v755 = vunpack.c.l.b16 %v691
      %v756 = vunpack.c.l.b16 %v705
      %v757 = vunpack.c.l.b16 %v719
      %v758 = vunpack.c.l.b16 %v733
      %v759 = vpack.c.b16 %v752, %v751
      %v760 = vpack.c.b16 %v754, %v753
      %v761 = vpack.c.b16 %v756, %v755
      %v762 = vpack.c.b16 %v758, %v757
      %v783 = vunpack.c.l.b16 %v735
      %v784 = vunpack.c.l.b16 %v736
      %v785 = vunpack.c.l.b16 %v737
      %v786 = vunpack.c.l.b16 %v738
      %v787 = vunpack.c.l.b16 %v739
      %v788 = vunpack.c.l.b16 %v740
      %v789 = vunpack.c.l.b16 %v741
      %v790 = vunpack.c.l.b16 %v742
      %v791 = vunpack.c.l.b16 %v743
      %v792 = vunpack.c.l.b16 %v744
      %v793 = vunpack.c.l.b16 %v745
      %v794 = vunpack.c.l.b16 %v746
      %v795 = vunpack.c.l.b16 %v747
      %v796 = vunpack.c.l.b16 %v748
      %v797 = vunpack.c.l.b16 %v749
      %v798 = vunpack.c.l.b16 %v750
      %v799 = vpack.c.b16 %v784, %v783
      %v800 = vpack.c.b16 %v786, %v785
      %v801 = vpack.c.b16 %v788, %v787
      %v802 = vpack.c.b16 %v790, %v789
      %v803 = vpack.c.b16 %v792, %v791
      %v804 = vpack.c.b16 %v794, %v793
      %v805 = vpack.c.b16 %v796, %v795
      %v806 = vpack.c.b16 %v798, %v797
      %815 = vmatpush.bf16.msra.mxu0 %v806
      %816 = vmatpush.bf16.msra.mxu0 %v805
      %817 = vmatpush.bf16.msra.mxu0 %v804
      %818 = vmatpush.bf16.msra.mxu0 %v803
      %819 = vmatpush.bf16.msra.mxu0 %v802
      %820 = vmatpush.bf16.msra.mxu0 %v801
      %821 = vmatpush.bf16.msra.mxu0 %v800
      %822 = vmatpush.bf16.msra.mxu0 %v799
      %823 = vmatmul.bf16.gmra.mxu0 %v759
      %v824 = vpop.f32.mrf.mxu0
      %v825 = vadd.f32 0.0, %v824
      %v826 = vpop.f32.mrf.mxu0
      %v827 = vadd.f32 0.0, %v826
      %828 = vmatmul.bf16.gmra.mxu0 %v760
      %v829 = vpop.f32.mrf.mxu0
      %v830 = vadd.f32 0.0, %v829
      %v831 = vpop.f32.mrf.mxu0
      %v832 = vadd.f32 0.0, %v831
      %833 = vmatmul.bf16.gmra.mxu0 %v761
      %v834 = vpop.f32.mrf.mxu0
      %v835 = vadd.f32 0.0, %v834
      %v836 = vpop.f32.mrf.mxu0
      %v837 = vadd.f32 0.0, %v836
      %838 = vmatmul.bf16.gmra.mxu0 %v762
      %v839 = vpop.f32.mrf.mxu0
      %v840 = vadd.f32 0.0, %v839
      %v841 = vpop.f32.mrf.mxu0
      %v842 = vadd.f32 0.0, %v841
      %843 = vdwg.mxu0
      %v844 = vadd.f32 %v584, %v825
      %v845 = vadd.f32 %v586, %v827
      %v846 = vadd.f32 %v589, %v830
      %v847 = vadd.f32 %v591, %v832
      %v848 = vadd.f32 %v594, %v835
      %v849 = vadd.f32 %v596, %v837
      %v850 = vadd.f32 %v599, %v840
      %v851 = vadd.f32 %v601, %v842
      %s852 = scalar_lea.vmem %s328, 144
      %v853 = vld [vmem:[%s852] sm:$0xf]
      %v854 = vld [vmem:[%s852 + $0x8] sm:$0xf]
      %v855 = vld [vmem:[%s852 + $0x10] sm:$0xf]
      %v856 = vld [vmem:[%s852 + $0x18] sm:$0xf]
      %v857 = vld [vmem:[%s852 + $0x20] sm:$0xf]
      %v858 = vld [vmem:[%s852 + $0x28] sm:$0xf]
      %v859 = vld [vmem:[%s852 + $0x30] sm:$0xf]
      %v860 = vld [vmem:[%s852 + $0x38] sm:$0xf]
      %s861 = scalar_lea.vmem %s1, 192
      %v862 = vld [vmem:[%s861] sm:$0xf]
      %v863 = vld [vmem:[%s861 + $0x4] sm:$0xf]
      %v864 = vld [vmem:[%s861 + $0x8] sm:$0xf]
      %v865 = vld [vmem:[%s861 + $0xc] sm:$0xf]
      %v866 = vld [vmem:[%s861 + $0x10] sm:$0xf]
      %v867 = vld [vmem:[%s861 + $0x14] sm:$0xf]
      %v868 = vld [vmem:[%s861 + $0x18] sm:$0xf]
      %v869 = vld [vmem:[%s861 + $0x1c] sm:$0xf]
      %v870 = vld [vmem:[%s861 + $0x20] sm:$0xf]
      %v871 = vld [vmem:[%s861 + $0x24] sm:$0xf]
      %v872 = vld [vmem:[%s861 + $0x28] sm:$0xf]
      %v873 = vld [vmem:[%s861 + $0x2c] sm:$0xf]
      %v874 = vld [vmem:[%s861 + $0x30] sm:$0xf]
      %v875 = vld [vmem:[%s861 + $0x34] sm:$0xf]
      %v876 = vld [vmem:[%s861 + $0x38] sm:$0xf]
      %v877 = vld [vmem:[%s861 + $0x3c] sm:$0xf]
      %v886 = vunpack.c.l.b16 %v853
      %v887 = vunpack.c.l.b16 %v854
      %v888 = vunpack.c.l.b16 %v855
      %v889 = vunpack.c.l.b16 %v856
      %v890 = vunpack.c.l.b16 %v857
      %v891 = vunpack.c.l.b16 %v858
      %v892 = vunpack.c.l.b16 %v859
      %v893 = vunpack.c.l.b16 %v860
      %v894 = vpack.c.b16 %v887, %v886
      %v895 = vpack.c.b16 %v889, %v888
      %v896 = vpack.c.b16 %v891, %v890
      %v897 = vpack.c.b16 %v893, %v892
      %v918 = vunpack.c.l.b16 %v862
      %v919 = vunpack.c.l.b16 %v863
      %v920 = vunpack.c.l.b16 %v864
      %v921 = vunpack.c.l.b16 %v865
      %v922 = vunpack.c.l.b16 %v866
      %v923 = vunpack.c.l.b16 %v867
      %v924 = vunpack.c.l.b16 %v868
      %v925 = vunpack.c.l.b16 %v869
      %v926 = vunpack.c.l.b16 %v870
      %v927 = vunpack.c.l.b16 %v871
      %v928 = vunpack.c.l.b16 %v872
      %v929 = vunpack.c.l.b16 %v873
      %v930 = vunpack.c.l.b16 %v874
      %v931 = vunpack.c.l.b16 %v875
      %v932 = vunpack.c.l.b16 %v876
      %v933 = vunpack.c.l.b16 %v877
      %v934 = vpack.c.b16 %v919, %v918
      %v935 = vpack.c.b16 %v921, %v920
      %v936 = vpack.c.b16 %v923, %v922
      %v937 = vpack.c.b16 %v925, %v924
      %v938 = vpack.c.b16 %v927, %v926
      %v939 = vpack.c.b16 %v929, %v928
      %v940 = vpack.c.b16 %v931, %v930
      %v941 = vpack.c.b16 %v933, %v932
      %950 = vmatpush.bf16.msra.mxu0 %v941
      %951 = vmatpush.bf16.msra.mxu0 %v940
      %952 = vmatpush.bf16.msra.mxu0 %v939
      %953 = vmatpush.bf16.msra.mxu0 %v938
      %954 = vmatpush.bf16.msra.mxu0 %v937
      %955 = vmatpush.bf16.msra.mxu0 %v936
      %956 = vmatpush.bf16.msra.mxu0 %v935
      %957 = vmatpush.bf16.msra.mxu0 %v934
      %958 = vmatmul.bf16.gmra.mxu0 %v894
      %v959 = vpop.f32.mrf.mxu0
      %v960 = vadd.f32 0.0, %v959
      %v961 = vpop.f32.mrf.mxu0
      %v962 = vadd.f32 0.0, %v961
      %963 = vmatmul.bf16.gmra.mxu0 %v895
      %v964 = vpop.f32.mrf.mxu0
      %v965 = vadd.f32 0.0, %v964
      %v966 = vpop.f32.mrf.mxu0
      %v967 = vadd.f32 0.0, %v966
      %968 = vmatmul.bf16.gmra.mxu0 %v896
      %v969 = vpop.f32.mrf.mxu0
      %v970 = vadd.f32 0.0, %v969
      %v971 = vpop.f32.mrf.mxu0
      %v972 = vadd.f32 0.0, %v971
      %973 = vmatmul.bf16.gmra.mxu0 %v897
      %v974 = vpop.f32.mrf.mxu0
      %v975 = vadd.f32 0.0, %v974
      %v976 = vpop.f32.mrf.mxu0
      %v977 = vadd.f32 0.0, %v976
      %978 = vdwg.mxu0
      %v979 = vadd.f32 %v844, %v960
      %v980 = vadd.f32 %v845, %v962
      %v981 = vadd.f32 %v846, %v965
      %v982 = vadd.f32 %v847, %v967
      %v983 = vadd.f32 %v848, %v970
      %v984 = vadd.f32 %v849, %v972
      %v985 = vadd.f32 %v850, %v975
      %v986 = vadd.f32 %v851, %v977
      %s987 = scalar_lea.vmem %s328, 216
      %v988 = vld [vmem:[%s987] sm:$0xf]
      %v989 = vld [vmem:[%s987 + $0x8] sm:$0xf]
      %v990 = vld [vmem:[%s987 + $0x10] sm:$0xf]
      %v991 = vld [vmem:[%s987 + $0x18] sm:$0xf]
      %v992 = vld [vmem:[%s987 + $0x20] sm:$0xf]
      %v993 = vld [vmem:[%s987 + $0x28] sm:$0xf]
      %v994 = vld [vmem:[%s987 + $0x30] sm:$0xf]
      %v995 = vld [vmem:[%s987 + $0x38] sm:$0xf]
      %s996 = scalar_lea.vmem %s1, 256
      %v997 = vld [vmem:[%s996] sm:$0xf]
      %v998 = vld [vmem:[%s996 + $0x4] sm:$0xf]
      %v999 = vld [vmem:[%s996 + $0x8] sm:$0xf]
      %v1000 = vld [vmem:[%s996 + $0xc] sm:$0xf]
      %v1001 = vld [vmem:[%s996 + $0x10] sm:$0xf]
      %v1002 = vld [vmem:[%s996 + $0x14] sm:$0xf]
      %v1003 = vld [vmem:[%s996 + $0x18] sm:$0xf]
      %v1004 = vld [vmem:[%s996 + $0x1c] sm:$0xf]
      %v1005 = vld [vmem:[%s996 + $0x20] sm:$0xf]
      %v1006 = vld [vmem:[%s996 + $0x24] sm:$0xf]
      %v1007 = vld [vmem:[%s996 + $0x28] sm:$0xf]
      %v1008 = vld [vmem:[%s996 + $0x2c] sm:$0xf]
      %v1009 = vld [vmem:[%s996 + $0x30] sm:$0xf]
      %v1010 = vld [vmem:[%s996 + $0x34] sm:$0xf]
      %v1011 = vld [vmem:[%s996 + $0x38] sm:$0xf]
      %v1012 = vld [vmem:[%s996 + $0x3c] sm:$0xf]
      %v1021 = vunpack.c.l.b16 %v988
      %v1022 = vunpack.c.l.b16 %v989
      %v1023 = vunpack.c.l.b16 %v990
      %v1024 = vunpack.c.l.b16 %v991
      %v1025 = vunpack.c.l.b16 %v992
      %v1026 = vunpack.c.l.b16 %v993
      %v1027 = vunpack.c.l.b16 %v994
      %v1028 = vunpack.c.l.b16 %v995
      %v1029 = vpack.c.b16 %v1022, %v1021
      %v1030 = vpack.c.b16 %v1024, %v1023
      %v1031 = vpack.c.b16 %v1026, %v1025
      %v1032 = vpack.c.b16 %v1028, %v1027
      %v1053 = vunpack.c.l.b16 %v997
      %v1054 = vunpack.c.l.b16 %v998
      %v1055 = vunpack.c.l.b16 %v999
      %v1056 = vunpack.c.l.b16 %v1000
      %v1057 = vunpack.c.l.b16 %v1001
      %v1058 = vunpack.c.l.b16 %v1002
      %v1059 = vunpack.c.l.b16 %v1003
      %v1060 = vunpack.c.l.b16 %v1004
      %v1061 = vunpack.c.l.b16 %v1005
      %v1062 = vunpack.c.l.b16 %v1006
      %v1063 = vunpack.c.l.b16 %v1007
      %v1064 = vunpack.c.l.b16 %v1008
      %v1065 = vunpack.c.l.b16 %v1009
      %v1066 = vunpack.c.l.b16 %v1010
      %v1067 = vunpack.c.l.b16 %v1011
      %v1068 = vunpack.c.l.b16 %v1012
      %v1069 = vpack.c.b16 %v1054, %v1053
      %v1070 = vpack.c.b16 %v1056, %v1055
      %v1071 = vpack.c.b16 %v1058, %v1057
      %v1072 = vpack.c.b16 %v1060, %v1059
      %v1073 = vpack.c.b16 %v1062, %v1061
      %v1074 = vpack.c.b16 %v1064, %v1063
      %v1075 = vpack.c.b16 %v1066, %v1065
      %v1076 = vpack.c.b16 %v1068, %v1067
      %1085 = vmatpush.bf16.msra.mxu0 %v1076
      %1086 = vmatpush.bf16.msra.mxu0 %v1075
      %1087 = vmatpush.bf16.msra.mxu0 %v1074
      %1088 = vmatpush.bf16.msra.mxu0 %v1073
      %1089 = vmatpush.bf16.msra.mxu0 %v1072
      %1090 = vmatpush.bf16.msra.mxu0 %v1071
      %1091 = vmatpush.bf16.msra.mxu0 %v1070
      %1092 = vmatpush.bf16.msra.mxu0 %v1069
      %1093 = vmatmul.bf16.gmra.mxu0 %v1029
      %v1094 = vpop.f32.mrf.mxu0
      %v1095 = vadd.f32 0.0, %v1094
      %v1096 = vpop.f32.mrf.mxu0
      %v1097 = vadd.f32 0.0, %v1096
      %1098 = vmatmul.bf16.gmra.mxu0 %v1030
      %v1099 = vpop.f32.mrf.mxu0
      %v1100 = vadd.f32 0.0, %v1099
      %v1101 = vpop.f32.mrf.mxu0
      %v1102 = vadd.f32 0.0, %v1101
      %1103 = vmatmul.bf16.gmra.mxu0 %v1031
      %v1104 = vpop.f32.mrf.mxu0
      %v1105 = vadd.f32 0.0, %v1104
      %v1106 = vpop.f32.mrf.mxu0
      %v1107 = vadd.f32 0.0, %v1106
      %1108 = vmatmul.bf16.gmra.mxu0 %v1032
      %v1109 = vpop.f32.mrf.mxu0
      %v1110 = vadd.f32 0.0, %v1109
      %v1111 = vpop.f32.mrf.mxu0
      %v1112 = vadd.f32 0.0, %v1111
      %1113 = vdwg.mxu0
      %v1114 = vadd.f32 %v979, %v1095
      %v1115 = vadd.f32 %v980, %v1097
      %v1116 = vadd.f32 %v981, %v1100
      %v1117 = vadd.f32 %v982, %v1102
      %v1118 = vadd.f32 %v983, %v1105
      %v1119 = vadd.f32 %v984, %v1107
      %v1120 = vadd.f32 %v985, %v1110
      %v1121 = vadd.f32 %v986, %v1112
      %v1122 = vld [vmem:[%s852] sm:$0xf]
      %v1123 = vld [vmem:[%s852 + $0x4] sm:$0x1]
      %v1124 = vld [vmem:[%s852 + $0x8] sm:$0xf]
      %v1125 = vld [vmem:[%s852 + $0xc] sm:$0x1]
      %v1126 = vld [vmem:[%s852 + $0x10] sm:$0xf]
      %v1127 = vld [vmem:[%s852 + $0x14] sm:$0x1]
      %v1128 = vld [vmem:[%s852 + $0x18] sm:$0xf]
      %v1129 = vld [vmem:[%s852 + $0x1c] sm:$0x1]
      %v1130 = vld [vmem:[%s852 + $0x20] sm:$0xf]
      %v1131 = vld [vmem:[%s852 + $0x24] sm:$0x1]
      %v1132 = vld [vmem:[%s852 + $0x28] sm:$0xf]
      %v1133 = vld [vmem:[%s852 + $0x2c] sm:$0x1]
      %v1134 = vld [vmem:[%s852 + $0x30] sm:$0xf]
      %v1135 = vld [vmem:[%s852 + $0x34] sm:$0x1]
      %v1136 = vld [vmem:[%s852 + $0x38] sm:$0xf]
      %v1137 = vld [vmem:[%s852 + $0x3c] sm:$0x1]
      %v1139 = vshrl.u32 %v1122, 16
      %v1141 = vrot.slane %v1139, 4
      %v1142 = vshll.u32 %v1122, 16
      %v1144 = vrot.slane %v1142, 5
      %v1145 = vor.u32 %v1141, %v1144
      %v1146 = vrot.slane %v1145, 4
      %v1148 = vshll.u32 %v1123, 16
      %v1150 = vrot.slane %v1148, 5
      %v1151 = vsel %vm621, %v1146, %v1150
      %v1153 = vshrl.u32 %v1124, 16
      %v1155 = vrot.slane %v1153, 4
      %v1156 = vshll.u32 %v1124, 16
      %v1158 = vrot.slane %v1156, 5
      %v1159 = vor.u32 %v1155, %v1158
      %v1160 = vrot.slane %v1159, 4
      %v1162 = vshll.u32 %v1125, 16
      %v1164 = vrot.slane %v1162, 5
      %v1165 = vsel %vm621, %v1160, %v1164
      %v1167 = vshrl.u32 %v1126, 16
      %v1169 = vrot.slane %v1167, 4
      %v1170 = vshll.u32 %v1126, 16
      %v1172 = vrot.slane %v1170, 5
      %v1173 = vor.u32 %v1169, %v1172
      %v1174 = vrot.slane %v1173, 4
      %v1176 = vshll.u32 %v1127, 16
      %v1178 = vrot.slane %v1176, 5
      %v1179 = vsel %vm621, %v1174, %v1178
      %v1181 = vshrl.u32 %v1128, 16
      %v1183 = vrot.slane %v1181, 4
      %v1184 = vshll.u32 %v1128, 16
      %v1186 = vrot.slane %v1184, 5
      %v1187 = vor.u32 %v1183, %v1186
      %v1188 = vrot.slane %v1187, 4
      %v1190 = vshll.u32 %v1129, 16
      %v1192 = vrot.slane %v1190, 5
      %v1193 = vsel %vm621, %v1188, %v1192
      %v1195 = vshrl.u32 %v1130, 16
      %v1197 = vrot.slane %v1195, 4
      %v1198 = vshll.u32 %v1130, 16
      %v1200 = vrot.slane %v1198, 5
      %v1201 = vor.u32 %v1197, %v1200
      %v1202 = vrot.slane %v1201, 4
      %v1204 = vshll.u32 %v1131, 16
      %v1206 = vrot.slane %v1204, 5
      %v1207 = vsel %vm621, %v1202, %v1206
      %v1209 = vshrl.u32 %v1132, 16
      %v1211 = vrot.slane %v1209, 4
      %v1212 = vshll.u32 %v1132, 16
      %v1214 = vrot.slane %v1212, 5
      %v1215 = vor.u32 %v1211, %v1214
      %v1216 = vrot.slane %v1215, 4
      %v1218 = vshll.u32 %v1133, 16
      %v1220 = vrot.slane %v1218, 5
      %v1221 = vsel %vm621, %v1216, %v1220
      %v1223 = vshrl.u32 %v1134, 16
      %v1225 = vrot.slane %v1223, 4
      %v1226 = vshll.u32 %v1134, 16
      %v1228 = vrot.slane %v1226, 5
      %v1229 = vor.u32 %v1225, %v1228
      %v1230 = vrot.slane %v1229, 4
      %v1232 = vshll.u32 %v1135, 16
      %v1234 = vrot.slane %v1232, 5
      %v1235 = vsel %vm621, %v1230, %v1234
      %v1237 = vshrl.u32 %v1136, 16
      %v1239 = vrot.slane %v1237, 4
      %v1240 = vshll.u32 %v1136, 16
      %v1242 = vrot.slane %v1240, 5
      %v1243 = vor.u32 %v1239, %v1242
      %v1244 = vrot.slane %v1243, 4
      %v1246 = vshll.u32 %v1137, 16
      %v1248 = vrot.slane %v1246, 5
      %v1249 = vsel %vm621, %v1244, %v1248
      %s1250 = scalar_lea.vmem %s1, 320
      %v1251 = vld [vmem:[%s1250] sm:$0xf]
      %v1252 = vld [vmem:[%s1250 + $0x4] sm:$0xf]
      %v1253 = vld [vmem:[%s1250 + $0x8] sm:$0xf]
      %v1254 = vld [vmem:[%s1250 + $0xc] sm:$0xf]
      %v1255 = vld [vmem:[%s1250 + $0x10] sm:$0xf]
      %v1256 = vld [vmem:[%s1250 + $0x14] sm:$0xf]
      %v1257 = vld [vmem:[%s1250 + $0x18] sm:$0xf]
      %v1258 = vld [vmem:[%s1250 + $0x1c] sm:$0xf]
      %v1259 = vld [vmem:[%s1250 + $0x20] sm:$0xf]
      %v1260 = vld [vmem:[%s1250 + $0x24] sm:$0xf]
      %v1261 = vld [vmem:[%s1250 + $0x28] sm:$0xf]
      %v1262 = vld [vmem:[%s1250 + $0x2c] sm:$0xf]
      %v1263 = vld [vmem:[%s1250 + $0x30] sm:$0xf]
      %v1264 = vld [vmem:[%s1250 + $0x34] sm:$0xf]
      %v1265 = vld [vmem:[%s1250 + $0x38] sm:$0xf]
      %v1266 = vld [vmem:[%s1250 + $0x3c] sm:$0xf]
      %v1267 = vunpack.c.l.b16 %v1151
      %v1268 = vunpack.c.l.b16 %v1165
      %v1269 = vunpack.c.l.b16 %v1179
      %v1270 = vunpack.c.l.b16 %v1193
      %v1271 = vunpack.c.l.b16 %v1207
      %v1272 = vunpack.c.l.b16 %v1221
      %v1273 = vunpack.c.l.b16 %v1235
      %v1274 = vunpack.c.l.b16 %v1249
      %v1275 = vpack.c.b16 %v1268, %v1267
      %v1276 = vpack.c.b16 %v1270, %v1269
      %v1277 = vpack.c.b16 %v1272, %v1271
      %v1278 = vpack.c.b16 %v1274, %v1273
      %v1299 = vunpack.c.l.b16 %v1251
      %v1300 = vunpack.c.l.b16 %v1252
      %v1301 = vunpack.c.l.b16 %v1253
      %v1302 = vunpack.c.l.b16 %v1254
      %v1303 = vunpack.c.l.b16 %v1255
      %v1304 = vunpack.c.l.b16 %v1256
      %v1305 = vunpack.c.l.b16 %v1257
      %v1306 = vunpack.c.l.b16 %v1258
      %v1307 = vunpack.c.l.b16 %v1259
      %v1308 = vunpack.c.l.b16 %v1260
      %v1309 = vunpack.c.l.b16 %v1261
      %v1310 = vunpack.c.l.b16 %v1262
      %v1311 = vunpack.c.l.b16 %v1263
      %v1312 = vunpack.c.l.b16 %v1264
      %v1313 = vunpack.c.l.b16 %v1265
      %v1314 = vunpack.c.l.b16 %v1266
      %v1315 = vpack.c.b16 %v1300, %v1299
      %v1316 = vpack.c.b16 %v1302, %v1301
      %v1317 = vpack.c.b16 %v1304, %v1303
      %v1318 = vpack.c.b16 %v1306, %v1305
      %v1319 = vpack.c.b16 %v1308, %v1307
      %v1320 = vpack.c.b16 %v1310, %v1309
      %v1321 = vpack.c.b16 %v1312, %v1311
      %v1322 = vpack.c.b16 %v1314, %v1313
      %1331 = vmatpush.bf16.msra.mxu0 %v1322
      %1332 = vmatpush.bf16.msra.mxu0 %v1321
      %1333 = vmatpush.bf16.msra.mxu0 %v1320
      %1334 = vmatpush.bf16.msra.mxu0 %v1319
      %1335 = vmatpush.bf16.msra.mxu0 %v1318
      %1336 = vmatpush.bf16.msra.mxu0 %v1317
      %1337 = vmatpush.bf16.msra.mxu0 %v1316
      %1338 = vmatpush.bf16.msra.mxu0 %v1315
      %1339 = vmatmul.bf16.gmra.mxu0 %v1275
      %v1340 = vpop.f32.mrf.mxu0
      %v1341 = vadd.f32 0.0, %v1340
      %v1342 = vpop.f32.mrf.mxu0
      %v1343 = vadd.f32 0.0, %v1342
      %1344 = vmatmul.bf16.gmra.mxu0 %v1276
      %v1345 = vpop.f32.mrf.mxu0
      %v1346 = vadd.f32 0.0, %v1345
      %v1347 = vpop.f32.mrf.mxu0
      %v1348 = vadd.f32 0.0, %v1347
      %1349 = vmatmul.bf16.gmra.mxu0 %v1277
      %v1350 = vpop.f32.mrf.mxu0
      %v1351 = vadd.f32 0.0, %v1350
      %v1352 = vpop.f32.mrf.mxu0
      %v1353 = vadd.f32 0.0, %v1352
      %1354 = vmatmul.bf16.gmra.mxu0 %v1278
      %v1355 = vpop.f32.mrf.mxu0
      %v1356 = vadd.f32 0.0, %v1355
      %v1357 = vpop.f32.mrf.mxu0
      %v1358 = vadd.f32 0.0, %v1357
      %1359 = vdwg.mxu0
      %v1360 = vadd.f32 %v1114, %v1341
      %v1361 = vadd.f32 %v1115, %v1343
      %v1362 = vadd.f32 %v1116, %v1346
      %v1363 = vadd.f32 %v1117, %v1348
      %v1364 = vadd.f32 %v1118, %v1351
      %v1365 = vadd.f32 %v1119, %v1353
      %v1366 = vadd.f32 %v1120, %v1356
      %v1367 = vadd.f32 %v1121, %v1358
      %s1368 = scalar_lea.vmem %s328, 8
      %v1369 = vld [vmem:[%s1368] sm:$0xf]
      %v1370 = vld [vmem:[%s1368 + $0x8] sm:$0xf]
      %v1371 = vld [vmem:[%s1368 + $0x10] sm:$0xf]
      %v1372 = vld [vmem:[%s1368 + $0x18] sm:$0xf]
      %v1373 = vld [vmem:[%s1368 + $0x20] sm:$0xf]
      %v1374 = vld [vmem:[%s1368 + $0x28] sm:$0xf]
      %v1375 = vld [vmem:[%s1368 + $0x30] sm:$0xf]
      %v1376 = vld [vmem:[%s1368 + $0x38] sm:$0xf]
      %s1377 = scalar_lea.vmem %s1, 384
      %v1378 = vld [vmem:[%s1377] sm:$0xf]
      %v1379 = vld [vmem:[%s1377 + $0x4] sm:$0xf]
      %v1380 = vld [vmem:[%s1377 + $0x8] sm:$0xf]
      %v1381 = vld [vmem:[%s1377 + $0xc] sm:$0xf]
      %v1382 = vld [vmem:[%s1377 + $0x10] sm:$0xf]
      %v1383 = vld [vmem:[%s1377 + $0x14] sm:$0xf]
      %v1384 = vld [vmem:[%s1377 + $0x18] sm:$0xf]
      %v1385 = vld [vmem:[%s1377 + $0x1c] sm:$0xf]
      %v1386 = vld [vmem:[%s1377 + $0x20] sm:$0xf]
      %v1387 = vld [vmem:[%s1377 + $0x24] sm:$0xf]
      %v1388 = vld [vmem:[%s1377 + $0x28] sm:$0xf]
      %v1389 = vld [vmem:[%s1377 + $0x2c] sm:$0xf]
      %v1390 = vld [vmem:[%s1377 + $0x30] sm:$0xf]
      %v1391 = vld [vmem:[%s1377 + $0x34] sm:$0xf]
      %v1392 = vld [vmem:[%s1377 + $0x38] sm:$0xf]
      %v1393 = vld [vmem:[%s1377 + $0x3c] sm:$0xf]
      %v1402 = vunpack.c.l.b16 %v1369
      %v1403 = vunpack.c.l.b16 %v1370
      %v1404 = vunpack.c.l.b16 %v1371
      %v1405 = vunpack.c.l.b16 %v1372
      %v1406 = vunpack.c.l.b16 %v1373
      %v1407 = vunpack.c.l.b16 %v1374
      %v1408 = vunpack.c.l.b16 %v1375
      %v1409 = vunpack.c.l.b16 %v1376
      %v1410 = vpack.c.b16 %v1403, %v1402
      %v1411 = vpack.c.b16 %v1405, %v1404
      %v1412 = vpack.c.b16 %v1407, %v1406
      %v1413 = vpack.c.b16 %v1409, %v1408
      %v1434 = vunpack.c.l.b16 %v1378
      %v1435 = vunpack.c.l.b16 %v1379
      %v1436 = vunpack.c.l.b16 %v1380
      %v1437 = vunpack.c.l.b16 %v1381
      %v1438 = vunpack.c.l.b16 %v1382
      %v1439 = vunpack.c.l.b16 %v1383
      %v1440 = vunpack.c.l.b16 %v1384
      %v1441 = vunpack.c.l.b16 %v1385
      %v1442 = vunpack.c.l.b16 %v1386
      %v1443 = vunpack.c.l.b16 %v1387
      %v1444 = vunpack.c.l.b16 %v1388
      %v1445 = vunpack.c.l.b16 %v1389
      %v1446 = vunpack.c.l.b16 %v1390
      %v1447 = vunpack.c.l.b16 %v1391
      %v1448 = vunpack.c.l.b16 %v1392
      %v1449 = vunpack.c.l.b16 %v1393
      %v1450 = vpack.c.b16 %v1435, %v1434
      %v1451 = vpack.c.b16 %v1437, %v1436
      %v1452 = vpack.c.b16 %v1439, %v1438
      %v1453 = vpack.c.b16 %v1441, %v1440
      %v1454 = vpack.c.b16 %v1443, %v1442
      %v1455 = vpack.c.b16 %v1445, %v1444
      %v1456 = vpack.c.b16 %v1447, %v1446
      %v1457 = vpack.c.b16 %v1449, %v1448
      %1466 = vmatpush.bf16.msra.mxu0 %v1457
      %1467 = vmatpush.bf16.msra.mxu0 %v1456
      %1468 = vmatpush.bf16.msra.mxu0 %v1455
      %1469 = vmatpush.bf16.msra.mxu0 %v1454
      %1470 = vmatpush.bf16.msra.mxu0 %v1453
      %1471 = vmatpush.bf16.msra.mxu0 %v1452
      %1472 = vmatpush.bf16.msra.mxu0 %v1451
      %1473 = vmatpush.bf16.msra.mxu0 %v1450
      %1474 = vmatmul.bf16.gmra.mxu0 %v1410
      %v1475 = vpop.f32.mrf.mxu0
      %v1476 = vadd.f32 0.0, %v1475
      %v1477 = vpop.f32.mrf.mxu0
      %v1478 = vadd.f32 0.0, %v1477
      %1479 = vmatmul.bf16.gmra.mxu0 %v1411
      %v1480 = vpop.f32.mrf.mxu0
      %v1481 = vadd.f32 0.0, %v1480
      %v1482 = vpop.f32.mrf.mxu0
      %v1483 = vadd.f32 0.0, %v1482
      %1484 = vmatmul.bf16.gmra.mxu0 %v1412
      %v1485 = vpop.f32.mrf.mxu0
      %v1486 = vadd.f32 0.0, %v1485
      %v1487 = vpop.f32.mrf.mxu0
      %v1488 = vadd.f32 0.0, %v1487
      %1489 = vmatmul.bf16.gmra.mxu0 %v1413
      %v1490 = vpop.f32.mrf.mxu0
      %v1491 = vadd.f32 0.0, %v1490
      %v1492 = vpop.f32.mrf.mxu0
      %v1493 = vadd.f32 0.0, %v1492
      %1494 = vdwg.mxu0
      %v1495 = vadd.f32 %v1360, %v1476
      %v1496 = vadd.f32 %v1361, %v1478
      %v1497 = vadd.f32 %v1362, %v1481
      %v1498 = vadd.f32 %v1363, %v1483
      %v1499 = vadd.f32 %v1364, %v1486
      %v1500 = vadd.f32 %v1365, %v1488
      %v1501 = vadd.f32 %v1366, %v1491
      %v1502 = vadd.f32 %v1367, %v1493
      %s1503 = scalar_lea.vmem %s328, 80
      %v1504 = vld [vmem:[%s1503] sm:$0xf]
      %v1505 = vld [vmem:[%s1503 + $0x8] sm:$0xf]
      %v1506 = vld [vmem:[%s1503 + $0x10] sm:$0xf]
      %v1507 = vld [vmem:[%s1503 + $0x18] sm:$0xf]
      %v1508 = vld [vmem:[%s1503 + $0x20] sm:$0xf]
      %v1509 = vld [vmem:[%s1503 + $0x28] sm:$0xf]
      %v1510 = vld [vmem:[%s1503 + $0x30] sm:$0xf]
      %v1511 = vld [vmem:[%s1503 + $0x38] sm:$0xf]
      %s1512 = scalar_lea.vmem %s1, 448
      %v1513 = vld [vmem:[%s1512] sm:$0xf]
      %v1514 = vld [vmem:[%s1512 + $0x4] sm:$0xf]
      %v1515 = vld [vmem:[%s1512 + $0x8] sm:$0xf]
      %v1516 = vld [vmem:[%s1512 + $0xc] sm:$0xf]
      %v1517 = vld [vmem:[%s1512 + $0x10] sm:$0xf]
      %v1518 = vld [vmem:[%s1512 + $0x14] sm:$0xf]
      %v1519 = vld [vmem:[%s1512 + $0x18] sm:$0xf]
      %v1520 = vld [vmem:[%s1512 + $0x1c] sm:$0xf]
      %v1521 = vld [vmem:[%s1512 + $0x20] sm:$0xf]
      %v1522 = vld [vmem:[%s1512 + $0x24] sm:$0xf]
      %v1523 = vld [vmem:[%s1512 + $0x28] sm:$0xf]
      %v1524 = vld [vmem:[%s1512 + $0x2c] sm:$0xf]
      %v1525 = vld [vmem:[%s1512 + $0x30] sm:$0xf]
      %v1526 = vld [vmem:[%s1512 + $0x34] sm:$0xf]
      %v1527 = vld [vmem:[%s1512 + $0x38] sm:$0xf]
      %v1528 = vld [vmem:[%s1512 + $0x3c] sm:$0xf]
      %v1537 = vunpack.c.l.b16 %v1504
      %v1538 = vunpack.c.l.b16 %v1505
      %v1539 = vunpack.c.l.b16 %v1506
      %v1540 = vunpack.c.l.b16 %v1507
      %v1541 = vunpack.c.l.b16 %v1508
      %v1542 = vunpack.c.l.b16 %v1509
      %v1543 = vunpack.c.l.b16 %v1510
      %v1544 = vunpack.c.l.b16 %v1511
      %v1545 = vpack.c.b16 %v1538, %v1537
      %v1546 = vpack.c.b16 %v1540, %v1539
      %v1547 = vpack.c.b16 %v1542, %v1541
      %v1548 = vpack.c.b16 %v1544, %v1543
      %v1569 = vunpack.c.l.b16 %v1513
      %v1570 = vunpack.c.l.b16 %v1514
      %v1571 = vunpack.c.l.b16 %v1515
      %v1572 = vunpack.c.l.b16 %v1516
      %v1573 = vunpack.c.l.b16 %v1517
      %v1574 = vunpack.c.l.b16 %v1518
      %v1575 = vunpack.c.l.b16 %v1519
      %v1576 = vunpack.c.l.b16 %v1520
      %v1577 = vunpack.c.l.b16 %v1521
      %v1578 = vunpack.c.l.b16 %v1522
      %v1579 = vunpack.c.l.b16 %v1523
      %v1580 = vunpack.c.l.b16 %v1524
      %v1581 = vunpack.c.l.b16 %v1525
      %v1582 = vunpack.c.l.b16 %v1526
      %v1583 = vunpack.c.l.b16 %v1527
      %v1584 = vunpack.c.l.b16 %v1528
      %v1585 = vpack.c.b16 %v1570, %v1569
      %v1586 = vpack.c.b16 %v1572, %v1571
      %v1587 = vpack.c.b16 %v1574, %v1573
      %v1588 = vpack.c.b16 %v1576, %v1575
      %v1589 = vpack.c.b16 %v1578, %v1577
      %v1590 = vpack.c.b16 %v1580, %v1579
      %v1591 = vpack.c.b16 %v1582, %v1581
      %v1592 = vpack.c.b16 %v1584, %v1583
      %1601 = vmatpush.bf16.msra.mxu0 %v1592
      %1602 = vmatpush.bf16.msra.mxu0 %v1591
      %1603 = vmatpush.bf16.msra.mxu0 %v1590
      %1604 = vmatpush.bf16.msra.mxu0 %v1589
      %1605 = vmatpush.bf16.msra.mxu0 %v1588
      %1606 = vmatpush.bf16.msra.mxu0 %v1587
      %1607 = vmatpush.bf16.msra.mxu0 %v1586
      %1608 = vmatpush.bf16.msra.mxu0 %v1585
      %1609 = vmatmul.bf16.gmra.mxu0 %v1545
      %v1610 = vpop.f32.mrf.mxu0
      %v1611 = vadd.f32 0.0, %v1610
      %v1612 = vpop.f32.mrf.mxu0
      %v1613 = vadd.f32 0.0, %v1612
      %1614 = vmatmul.bf16.gmra.mxu0 %v1546
      %v1615 = vpop.f32.mrf.mxu0
      %v1616 = vadd.f32 0.0, %v1615
      %v1617 = vpop.f32.mrf.mxu0
      %v1618 = vadd.f32 0.0, %v1617
      %1619 = vmatmul.bf16.gmra.mxu0 %v1547
      %v1620 = vpop.f32.mrf.mxu0
      %v1621 = vadd.f32 0.0, %v1620
      %v1622 = vpop.f32.mrf.mxu0
      %v1623 = vadd.f32 0.0, %v1622
      %1624 = vmatmul.bf16.gmra.mxu0 %v1548
      %v1625 = vpop.f32.mrf.mxu0
      %v1626 = vadd.f32 0.0, %v1625
      %v1627 = vpop.f32.mrf.mxu0
      %v1628 = vadd.f32 0.0, %v1627
      %1629 = vdwg.mxu0
      %v1630 = vadd.f32 %v1495, %v1611
      %v1631 = vadd.f32 %v1496, %v1613
      %v1632 = vadd.f32 %v1497, %v1616
      %v1633 = vadd.f32 %v1498, %v1618
      %v1634 = vadd.f32 %v1499, %v1621
      %v1635 = vadd.f32 %v1500, %v1623
      %v1636 = vadd.f32 %v1501, %v1626
      %v1637 = vadd.f32 %v1502, %v1628
      %v1638 = vld [vmem:[%s1368] sm:$0xf]
      %v1639 = vld [vmem:[%s1368 + $0x4] sm:$0x1]
      %v1640 = vld [vmem:[%s1368 + $0x8] sm:$0xf]
      %v1641 = vld [vmem:[%s1368 + $0xc] sm:$0x1]
      %v1642 = vld [vmem:[%s1368 + $0x10] sm:$0xf]
      %v1643 = vld [vmem:[%s1368 + $0x14] sm:$0x1]
      %v1644 = vld [vmem:[%s1368 + $0x18] sm:$0xf]
      %v1645 = vld [vmem:[%s1368 + $0x1c] sm:$0x1]
      %v1646 = vld [vmem:[%s1368 + $0x20] sm:$0xf]
      %v1647 = vld [vmem:[%s1368 + $0x24] sm:$0x1]
      %v1648 = vld [vmem:[%s1368 + $0x28] sm:$0xf]
      %v1649 = vld [vmem:[%s1368 + $0x2c] sm:$0x1]
      %v1650 = vld [vmem:[%s1368 + $0x30] sm:$0xf]
      %v1651 = vld [vmem:[%s1368 + $0x34] sm:$0x1]
      %v1652 = vld [vmem:[%s1368 + $0x38] sm:$0xf]
      %v1653 = vld [vmem:[%s1368 + $0x3c] sm:$0x1]
      %v1655 = vshrl.u32 %v1638, 16
      %v1657 = vrot.slane %v1655, 4
      %v1658 = vshll.u32 %v1638, 16
      %v1660 = vrot.slane %v1658, 5
      %v1661 = vor.u32 %v1657, %v1660
      %v1662 = vrot.slane %v1661, 4
      %v1664 = vshll.u32 %v1639, 16
      %v1666 = vrot.slane %v1664, 5
      %v1667 = vsel %vm621, %v1662, %v1666
      %v1669 = vshrl.u32 %v1640, 16
      %v1671 = vrot.slane %v1669, 4
      %v1672 = vshll.u32 %v1640, 16
      %v1674 = vrot.slane %v1672, 5
      %v1675 = vor.u32 %v1671, %v1674
      %v1676 = vrot.slane %v1675, 4
      %v1678 = vshll.u32 %v1641, 16
      %v1680 = vrot.slane %v1678, 5
      %v1681 = vsel %vm621, %v1676, %v1680
      %v1683 = vshrl.u32 %v1642, 16
      %v1685 = vrot.slane %v1683, 4
      %v1686 = vshll.u32 %v1642, 16
      %v1688 = vrot.slane %v1686, 5
      %v1689 = vor.u32 %v1685, %v1688
      %v1690 = vrot.slane %v1689, 4
      %v1692 = vshll.u32 %v1643, 16
      %v1694 = vrot.slane %v1692, 5
      %v1695 = vsel %vm621, %v1690, %v1694
      %v1697 = vshrl.u32 %v1644, 16
      %v1699 = vrot.slane %v1697, 4
      %v1700 = vshll.u32 %v1644, 16
      %v1702 = vrot.slane %v1700, 5
      %v1703 = vor.u32 %v1699, %v1702
      %v1704 = vrot.slane %v1703, 4
      %v1706 = vshll.u32 %v1645, 16
      %v1708 = vrot.slane %v1706, 5
      %v1709 = vsel %vm621, %v1704, %v1708
      %v1711 = vshrl.u32 %v1646, 16
      %v1713 = vrot.slane %v1711, 4
      %v1714 = vshll.u32 %v1646, 16
      %v1716 = vrot.slane %v1714, 5
      %v1717 = vor.u32 %v1713, %v1716
      %v1718 = vrot.slane %v1717, 4
      %v1720 = vshll.u32 %v1647, 16
      %v1722 = vrot.slane %v1720, 5
      %v1723 = vsel %vm621, %v1718, %v1722
      %v1725 = vshrl.u32 %v1648, 16
      %v1727 = vrot.slane %v1725, 4
      %v1728 = vshll.u32 %v1648, 16
      %v1730 = vrot.slane %v1728, 5
      %v1731 = vor.u32 %v1727, %v1730
      %v1732 = vrot.slane %v1731, 4
      %v1734 = vshll.u32 %v1649, 16
      %v1736 = vrot.slane %v1734, 5
      %v1737 = vsel %vm621, %v1732, %v1736
      %v1739 = vshrl.u32 %v1650, 16
      %v1741 = vrot.slane %v1739, 4
      %v1742 = vshll.u32 %v1650, 16
      %v1744 = vrot.slane %v1742, 5
      %v1745 = vor.u32 %v1741, %v1744
      %v1746 = vrot.slane %v1745, 4
      %v1748 = vshll.u32 %v1651, 16
      %v1750 = vrot.slane %v1748, 5
      %v1751 = vsel %vm621, %v1746, %v1750
      %v1753 = vshrl.u32 %v1652, 16
      %v1755 = vrot.slane %v1753, 4
      %v1756 = vshll.u32 %v1652, 16
      %v1758 = vrot.slane %v1756, 5
      %v1759 = vor.u32 %v1755, %v1758
      %v1760 = vrot.slane %v1759, 4
      %v1762 = vshll.u32 %v1653, 16
      %v1764 = vrot.slane %v1762, 5
      %v1765 = vsel %vm621, %v1760, %v1764
      %s1766 = scalar_lea.vmem %s1, 512
      %v1767 = vld [vmem:[%s1766] sm:$0xf]
      %v1768 = vld [vmem:[%s1766 + $0x4] sm:$0xf]
      %v1769 = vld [vmem:[%s1766 + $0x8] sm:$0xf]
      %v1770 = vld [vmem:[%s1766 + $0xc] sm:$0xf]
      %v1771 = vld [vmem:[%s1766 + $0x10] sm:$0xf]
      %v1772 = vld [vmem:[%s1766 + $0x14] sm:$0xf]
      %v1773 = vld [vmem:[%s1766 + $0x18] sm:$0xf]
      %v1774 = vld [vmem:[%s1766 + $0x1c] sm:$0xf]
      %v1775 = vld [vmem:[%s1766 + $0x20] sm:$0xf]
      %v1776 = vld [vmem:[%s1766 + $0x24] sm:$0xf]
      %v1777 = vld [vmem:[%s1766 + $0x28] sm:$0xf]
      %v1778 = vld [vmem:[%s1766 + $0x2c] sm:$0xf]
      %v1779 = vld [vmem:[%s1766 + $0x30] sm:$0xf]
      %v1780 = vld [vmem:[%s1766 + $0x34] sm:$0xf]
      %v1781 = vld [vmem:[%s1766 + $0x38] sm:$0xf]
      %v1782 = vld [vmem:[%s1766 + $0x3c] sm:$0xf]
      %v1783 = vunpack.c.l.b16 %v1667
      %v1784 = vunpack.c.l.b16 %v1681
      %v1785 = vunpack.c.l.b16 %v1695
      %v1786 = vunpack.c.l.b16 %v1709
      %v1787 = vunpack.c.l.b16 %v1723
      %v1788 = vunpack.c.l.b16 %v1737
      %v1789 = vunpack.c.l.b16 %v1751
      %v1790 = vunpack.c.l.b16 %v1765
      %v1791 = vpack.c.b16 %v1784, %v1783
      %v1792 = vpack.c.b16 %v1786, %v1785
      %v1793 = vpack.c.b16 %v1788, %v1787
      %v1794 = vpack.c.b16 %v1790, %v1789
      %v1815 = vunpack.c.l.b16 %v1767
      %v1816 = vunpack.c.l.b16 %v1768
      %v1817 = vunpack.c.l.b16 %v1769
      %v1818 = vunpack.c.l.b16 %v1770
      %v1819 = vunpack.c.l.b16 %v1771
      %v1820 = vunpack.c.l.b16 %v1772
      %v1821 = vunpack.c.l.b16 %v1773
      %v1822 = vunpack.c.l.b16 %v1774
      %v1823 = vunpack.c.l.b16 %v1775
      %v1824 = vunpack.c.l.b16 %v1776
      %v1825 = vunpack.c.l.b16 %v1777
      %v1826 = vunpack.c.l.b16 %v1778
      %v1827 = vunpack.c.l.b16 %v1779
      %v1828 = vunpack.c.l.b16 %v1780
      %v1829 = vunpack.c.l.b16 %v1781
      %v1830 = vunpack.c.l.b16 %v1782
      %v1831 = vpack.c.b16 %v1816, %v1815
      %v1832 = vpack.c.b16 %v1818, %v1817
      %v1833 = vpack.c.b16 %v1820, %v1819
      %v1834 = vpack.c.b16 %v1822, %v1821
      %v1835 = vpack.c.b16 %v1824, %v1823
      %v1836 = vpack.c.b16 %v1826, %v1825
      %v1837 = vpack.c.b16 %v1828, %v1827
      %v1838 = vpack.c.b16 %v1830, %v1829
      %1847 = vmatpush.bf16.msra.mxu0 %v1838
      %1848 = vmatpush.bf16.msra.mxu0 %v1837
      %1849 = vmatpush.bf16.msra.mxu0 %v1836
      %1850 = vmatpush.bf16.msra.mxu0 %v1835
      %1851 = vmatpush.bf16.msra.mxu0 %v1834
      %1852 = vmatpush.bf16.msra.mxu0 %v1833
      %1853 = vmatpush.bf16.msra.mxu0 %v1832
      %1854 = vmatpush.bf16.msra.mxu0 %v1831
      %1855 = vmatmul.bf16.gmra.mxu0 %v1791
      %v1856 = vpop.f32.mrf.mxu0
      %v1857 = vadd.f32 0.0, %v1856
      %v1858 = vpop.f32.mrf.mxu0
      %v1859 = vadd.f32 0.0, %v1858
      %1860 = vmatmul.bf16.gmra.mxu0 %v1792
      %v1861 = vpop.f32.mrf.mxu0
      %v1862 = vadd.f32 0.0, %v1861
      %v1863 = vpop.f32.mrf.mxu0
      %v1864 = vadd.f32 0.0, %v1863
      %1865 = vmatmul.bf16.gmra.mxu0 %v1793
      %v1866 = vpop.f32.mrf.mxu0
      %v1867 = vadd.f32 0.0, %v1866
      %v1868 = vpop.f32.mrf.mxu0
      %v1869 = vadd.f32 0.0, %v1868
      %1870 = vmatmul.bf16.gmra.mxu0 %v1794
      %v1871 = vpop.f32.mrf.mxu0
      %v1872 = vadd.f32 0.0, %v1871
      %v1873 = vpop.f32.mrf.mxu0
      %v1874 = vadd.f32 0.0, %v1873
      %1875 = vdwg.mxu0
      %v1876 = vadd.f32 %v1630, %v1857
      %v1877 = vadd.f32 %v1631, %v1859
      %v1878 = vadd.f32 %v1632, %v1862
      %v1879 = vadd.f32 %v1633, %v1864
      %v1880 = vadd.f32 %v1634, %v1867
      %v1881 = vadd.f32 %v1635, %v1869
      %v1882 = vadd.f32 %v1636, %v1872
      %v1883 = vadd.f32 %v1637, %v1874
      %1884 = vst [vmem:[%s333] sm:$0xff] %v1876
      %1885 = vst [vmem:[%s333 + $0x8] sm:$0xff] %v1877
      %1886 = vst [vmem:[%s333 + $0x10] sm:$0xff] %v1878
      %1887 = vst [vmem:[%s333 + $0x18] sm:$0xff] %v1879
      %1888 = vst [vmem:[%s333 + $0x20] sm:$0xff] %v1880
      %1889 = vst [vmem:[%s333 + $0x28] sm:$0xff] %v1881
      %1890 = vst [vmem:[%s333 + $0x30] sm:$0xff] %v1882
      %1891 = vst [vmem:[%s333 + $0x38] sm:$0xff] %v1883
      %v1892 = vadd.f32 %v1876, %v1877
      %v1893 = vadd.f32 %v1892, %v1878
      %v1894 = vadd.f32 %v1893, %v1879
      %v1895 = vadd.f32 %v1894, %v1880
      %v1896 = vadd.f32 %v1895, %v1881
      %v1897 = vadd.f32 %v1896, %v1882
      %v1898 = vadd.f32 %v1897, %v1883
      %v1899 = vrot.slane %v1898, 4
      %v1900 = vadd.f32 %v1898, %v1899
      %v1901 = vrot.slane %v1900, 2
      %v1902 = vadd.f32 %v1900, %v1901
      %v1903 = vrot.slane %v1902, 1
      %v1904 = vadd.f32 %v1902, %v1903
      %v1905 = vadd.f32 %v1904, 0.0
      %v1906 = vmul.f32 %v1876, %v1876
      %v1907 = vmul.f32 %v1877, %v1877
      %v1908 = vmul.f32 %v1878, %v1878
      %v1909 = vmul.f32 %v1879, %v1879
      %v1910 = vmul.f32 %v1880, %v1880
      %v1911 = vmul.f32 %v1881, %v1881
      %v1912 = vmul.f32 %v1882, %v1882
      %v1913 = vmul.f32 %v1883, %v1883
      %v1914 = vadd.f32 %v1906, %v1907
      %v1915 = vadd.f32 %v1914, %v1908
      %v1916 = vadd.f32 %v1915, %v1909
      %v1917 = vadd.f32 %v1916, %v1910
      %v1918 = vadd.f32 %v1917, %v1911
      %v1919 = vadd.f32 %v1918, %v1912
      %v1920 = vadd.f32 %v1919, %v1913
      %v1921 = vrot.slane %v1920, 4
      %v1922 = vadd.f32 %v1920, %v1921
      %v1923 = vrot.slane %v1922, 2
      %v1924 = vadd.f32 %v1922, %v1923
      %v1925 = vrot.slane %v1924, 1
      %v1926 = vadd.f32 %v1924, %v1925
      %v1927 = vadd.f32 %v1926, 0.0
      %v1928 = vld [vmem:[%s2] sm:$0xf]
      %v1929 = vld [vmem:[%s2 + $0x4] sm:$0xf]
      %v1930 = vld [vmem:[%s2 + $0x8] sm:$0xf]
      %v1931 = vld [vmem:[%s2 + $0xc] sm:$0xf]
      %v1932 = vld [vmem:[%s2 + $0x10] sm:$0xf]
      %v1933 = vld [vmem:[%s2 + $0x14] sm:$0xf]
      %v1934 = vld [vmem:[%s2 + $0x18] sm:$0xf]
      %v1935 = vld [vmem:[%s2 + $0x1c] sm:$0xf]
      %v1936 = vld [vmem:[%s2 + $0x20] sm:$0xf]
      %v1937 = vld [vmem:[%s2 + $0x24] sm:$0xf]
      %v1938 = vld [vmem:[%s2 + $0x28] sm:$0xf]
      %v1939 = vld [vmem:[%s2 + $0x2c] sm:$0xf]
      %v1940 = vld [vmem:[%s2 + $0x30] sm:$0xf]
      %v1941 = vld [vmem:[%s2 + $0x34] sm:$0xf]
      %v1942 = vld [vmem:[%s2 + $0x38] sm:$0xf]
      %v1943 = vld [vmem:[%s2 + $0x3c] sm:$0xf]
      %v1960 = vunpack.c.l.b16 %v1928
      %v1961 = vunpack.c.l.b16 %v1929
      %v1962 = vunpack.c.l.b16 %v1930
      %v1963 = vunpack.c.l.b16 %v1931
      %v1964 = vunpack.c.l.b16 %v1932
      %v1965 = vunpack.c.l.b16 %v1933
      %v1966 = vunpack.c.l.b16 %v1934
      %v1967 = vunpack.c.l.b16 %v1935
      %v1968 = vunpack.c.l.b16 %v1936
      %v1969 = vunpack.c.l.b16 %v1937
      %v1970 = vunpack.c.l.b16 %v1938
      %v1971 = vunpack.c.l.b16 %v1939
      %v1972 = vunpack.c.l.b16 %v1940
      %v1973 = vunpack.c.l.b16 %v1941
      %v1974 = vunpack.c.l.b16 %v1942
      %v1975 = vunpack.c.l.b16 %v1943
      %v1976 = vpack.c.b16 %v1961, %v1960
      %v1977 = vpack.c.b16 %v1963, %v1962
      %v1978 = vpack.c.b16 %v1965, %v1964
      %v1979 = vpack.c.b16 %v1967, %v1966
      %v1980 = vpack.c.b16 %v1969, %v1968
      %v1981 = vpack.c.b16 %v1971, %v1970
      %v1982 = vpack.c.b16 %v1973, %v1972
      %v1983 = vpack.c.b16 %v1975, %v1974
      %1992 = vmatpush.bf16.msra.mxu0 %v1983
      %1993 = vmatpush.bf16.msra.mxu0 %v1982
      %1994 = vmatpush.bf16.msra.mxu0 %v1981
      %1995 = vmatpush.bf16.msra.mxu0 %v1980
      %1996 = vmatpush.bf16.msra.mxu0 %v1979
      %1997 = vmatpush.bf16.msra.mxu0 %v1978
      %1998 = vmatpush.bf16.msra.mxu0 %v1977
      %1999 = vmatpush.bf16.msra.mxu0 %v1976
      %2000 = vmatmul.bf16.gmra.mxu0 %v1029
      %v2001 = vpop.f32.mrf.mxu0
      %v2002 = vadd.f32 0.0, %v2001
      %v2003 = vpop.f32.mrf.mxu0
      %v2004 = vadd.f32 0.0, %v2003
      %2005 = vmatmul.bf16.gmra.mxu0 %v1030
      %v2006 = vpop.f32.mrf.mxu0
      %v2007 = vadd.f32 0.0, %v2006
      %v2008 = vpop.f32.mrf.mxu0
      %v2009 = vadd.f32 0.0, %v2008
      %2010 = vmatmul.bf16.gmra.mxu0 %v1031
      %v2011 = vpop.f32.mrf.mxu0
      %v2012 = vadd.f32 0.0, %v2011
      %v2013 = vpop.f32.mrf.mxu0
      %v2014 = vadd.f32 0.0, %v2013
      %2015 = vmatmul.bf16.gmra.mxu0 %v1032
      %v2016 = vpop.f32.mrf.mxu0
      %v2017 = vadd.f32 0.0, %v2016
      %v2018 = vpop.f32.mrf.mxu0
      %v2019 = vadd.f32 0.0, %v2018
      %2020 = vdwg.mxu0
      %2021 = vst [vmem:[%s344] sm:$0xff] %v2002
      %2022 = vst [vmem:[%s344 + $0x8] sm:$0xff] %v2004
      %2023 = vst [vmem:[%s344 + $0x10] sm:$0xff] %v2007
      %2024 = vst [vmem:[%s344 + $0x18] sm:$0xff] %v2009
      %2025 = vst [vmem:[%s344 + $0x20] sm:$0xff] %v2012
      %2026 = vst [vmem:[%s344 + $0x28] sm:$0xff] %v2014
      %2027 = vst [vmem:[%s344 + $0x30] sm:$0xff] %v2017
      %2028 = vst [vmem:[%s344 + $0x38] sm:$0xff] %v2019
      %v2029 = vadd.f32 %v2002, %v2004
      %v2030 = vadd.f32 %v2029, %v2007
      %v2031 = vadd.f32 %v2030, %v2009
      %v2032 = vadd.f32 %v2031, %v2012
      %v2033 = vadd.f32 %v2032, %v2014
      %v2034 = vadd.f32 %v2033, %v2017
      %v2035 = vadd.f32 %v2034, %v2019
      %v2036 = vrot.slane %v2035, 4
      %v2037 = vadd.f32 %v2035, %v2036
      %v2038 = vrot.slane %v2037, 2
      %v2039 = vadd.f32 %v2037, %v2038
      %v2040 = vrot.slane %v2039, 1
      %v2041 = vadd.f32 %v2039, %v2040
      %v2042 = vadd.f32 %v2041, 0.0
      %v2043 = vmul.f32 %v2002, %v2002
      %v2044 = vmul.f32 %v2004, %v2004
      %v2045 = vmul.f32 %v2007, %v2007
      %v2046 = vmul.f32 %v2009, %v2009
      %v2047 = vmul.f32 %v2012, %v2012
      %v2048 = vmul.f32 %v2014, %v2014
      %v2049 = vmul.f32 %v2017, %v2017
      %v2050 = vmul.f32 %v2019, %v2019
      %v2051 = vadd.f32 %v2043, %v2044
      %v2052 = vadd.f32 %v2051, %v2045
      %v2053 = vadd.f32 %v2052, %v2046
      %v2054 = vadd.f32 %v2053, %v2047
      %v2055 = vadd.f32 %v2054, %v2048
      %v2056 = vadd.f32 %v2055, %v2049
      %v2057 = vadd.f32 %v2056, %v2050
      %v2058 = vrot.slane %v2057, 4
      %v2059 = vadd.f32 %v2057, %v2058
      %v2060 = vrot.slane %v2059, 2
      %v2061 = vadd.f32 %v2059, %v2060
      %v2062 = vrot.slane %v2061, 1
      %v2063 = vadd.f32 %v2061, %v2062
      %v2064 = vadd.f32 %v2063, 0.0
      %2065 = vst [vmem:[%s336] sm:$0x1] %v1905
      %2066 = vst [vmem:[%s339] sm:$0x1] %v1927
      %2067 = vst [vmem:[%s347] sm:$0x1] %v2042
      %2068 = vst [vmem:[%s350] sm:$0x1] %v2064
      %p2069 = scmp.lt.s32.totalorder %s20, 1
      %s2070 = scalar_select %p2069, %s20, 1
      %s2071 = smul.addr %s2070, 8
      %s2072 = smul.addr %s2071, 8
      %s2073 = scalar_lea.vmem %s3, %s2072
      %p2074 = scmp.lt.s32.totalorder %s20, 1
      %s2075 = scalar_select %p2074, %s20, 1
      %s2076 = scalar_lea.vmem %s4, %s2075
      %p2077 = scmp.lt.s32.totalorder %s20, 1
      %s2078 = scalar_select %p2077, %s20, 1
      %s2079 = scalar_lea.vmem %s5, %s2078
      %p2080 = scmp.lt.s32.totalorder %s20, 1
      %s2081 = scalar_select %p2080, %s20, 1
      %s2082 = smul.addr %s2081, 8
      %s2083 = smul.addr %s2082, 8
      %s2084 = scalar_lea.vmem %s6, %s2083
      %p2085 = scmp.lt.s32.totalorder %s20, 1
      %s2086 = scalar_select %p2085, %s20, 1
      %s2087 = scalar_lea.vmem %s7, %s2086
      %p2088 = scmp.lt.s32.totalorder %s20, 1
      %s2089 = scalar_select %p2088, %s20, 1
      %s2090 = scalar_lea.vmem %s8, %s2089
      // Predicated region
      $region33: #{residual_block_forward.3} parent=31 // pred_check
        %p2091 = pneg %p106
      $region34: #{residual_block_forward.3} parent=31 // pred_check_branch
        %2093 = sbr.rel (%p2091) target = $region36
      $region35: #{residual_block_forward.3} parent=31 // pred_region
        _
      $region36: #{residual_block_forward.3} parent=31 // pred_fallthru
        _
      // Predicated region
      $region37: #{residual_block_forward.3} parent=31 // pred_check
        %p2094 = pneg %p132
      $region38: #{residual_block_forward.3} parent=31 // pred_check_branch
        %2096 = sbr.rel (%p2094) target = $region40
      $region39: #{residual_block_forward.3} parent=31 // pred_region
        _
      $region40: #{residual_block_forward.3} parent=31 // pred_fallthru
        _
      // Predicated region
      $region41: #{residual_block_forward.3} parent=31 // pred_check
        %p2097 = pneg %p158
      $region42: #{residual_block_forward.3} parent=31 // pred_check_branch
        %2099 = sbr.rel (%p2097) target = $region44
      $region43: #{residual_block_forward.3} parent=31 // pred_region
        _
      $region44: #{residual_block_forward.3} parent=31 // pred_fallthru
        _
      // Predicated region
      $region45: #{residual_block_forward.3} parent=31 // pred_check
        %p2100 = pneg %p184
      $region46: #{residual_block_forward.3} parent=31 // pred_check_branch
        %2102 = sbr.rel (%p2100) target = $region48
      $region47: #{residual_block_forward.3} parent=31 // pred_region
        _
      $region48: #{residual_block_forward.3} parent=31 // pred_fallthru
        _
      // Predicated region
      $region49: #{residual_block_forward.3} parent=31 // pred_check
        %p2103 = pneg %p210
      $region50: #{residual_block_forward.3} parent=31 // pred_check_branch
        %2105 = sbr.rel (%p2103) target = $region52
      $region51: #{residual_block_forward.3} parent=31 // pred_region
        _
      $region52: #{residual_block_forward.3} parent=31 // pred_fallthru
        _
      // Predicated region
      $region53: #{residual_block_forward.3} parent=31 // pred_check
        %p2106 = pneg %p236
      $region54: #{residual_block_forward.3} parent=31 // pred_check_branch
        %2108 = sbr.rel (%p2106) target = $region56
      $region55: #{residual_block_forward.3} parent=31 // pred_region
        _
      $region56: #{residual_block_forward.3} parent=31 // pred_fallthru
        _
    $region32: #{residual_block_forward.3} parent=5 // pred_fallthru
      _
    %p2109 = scmp.le.s32.totalorder 2, %s15
    // Predicated region
    $region57: #{residual_block_forward.3} parent=5 // pred_check
      %p2110 = pneg %p2109
    $region58: #{residual_block_forward.3} parent=5 // pred_check_branch
      %2112 = sbr.rel (%p2110) target = $region60
    $region59: #{residual_block_forward.3} parent=5 // pred_region
      %s2113 = ssub.s32 %s15, 2
      // Predicated region
      $region61: #{residual_block_forward.3} parent=59 // pred_check
        %p2114 = pneg %p112
      $region62: #{residual_block_forward.3} parent=59 // pred_check_branch
        %2116 = sbr.rel (%p2114) target = $region64
      $region63: #{residual_block_forward.3} parent=59 // pred_region
        %p2117 = scmp.lt.s32.totalorder %s21, 1
        %s2118 = scalar_select %p2117, %s21, 1
        %s2119 = smul.addr %s2118, 8
        %s2120 = smul.addr %s2119, 8
        %s2121 = scalar_lea.vmem %s3, %s2120
      $region64: #{residual_block_forward.3} parent=59 // pred_fallthru
        _
      // Predicated region
      $region65: #{residual_block_forward.3} parent=59 // pred_check
        %p2122 = pneg %p138
      $region66: #{residual_block_forward.3} parent=59 // pred_check_branch
        %2124 = sbr.rel (%p2122) target = $region68
      $region67: #{residual_block_forward.3} parent=59 // pred_region
        %p2125 = scmp.lt.s32.totalorder %s21, 1
        %s2126 = scalar_select %p2125, %s21, 1
        %s2127 = scalar_lea.vmem %s4, %s2126
      $region68: #{residual_block_forward.3} parent=59 // pred_fallthru
        _
      // Predicated region
      $region69: #{residual_block_forward.3} parent=59 // pred_check
        %p2128 = pneg %p164
      $region70: #{residual_block_forward.3} parent=59 // pred_check_branch
        %2130 = sbr.rel (%p2128) target = $region72
      $region71: #{residual_block_forward.3} parent=59 // pred_region
        %p2131 = scmp.lt.s32.totalorder %s21, 1
        %s2132 = scalar_select %p2131, %s21, 1
        %s2133 = scalar_lea.vmem %s5, %s2132
      $region72: #{residual_block_forward.3} parent=59 // pred_fallthru
        _
      // Predicated region
      $region73: #{residual_block_forward.3} parent=59 // pred_check
        %p2134 = pneg %p190
      $region74: #{residual_block_forward.3} parent=59 // pred_check_branch
        %2136 = sbr.rel (%p2134) target = $region76
      $region75: #{residual_block_forward.3} parent=59 // pred_region
        %p2137 = scmp.lt.s32.totalorder %s21, 1
        %s2138 = scalar_select %p2137, %s21, 1
        %s2139 = smul.addr %s2138, 8
        %s2140 = smul.addr %s2139, 8
        %s2141 = scalar_lea.vmem %s6, %s2140
      $region76: #{residual_block_forward.3} parent=59 // pred_fallthru
        _
      // Predicated region
      $region77: #{residual_block_forward.3} parent=59 // pred_check
        %p2142 = pneg %p216
      $region78: #{residual_block_forward.3} parent=59 // pred_check_branch
        %2144 = sbr.rel (%p2142) target = $region80
      $region79: #{residual_block_forward.3} parent=59 // pred_region
        %p2145 = scmp.lt.s32.totalorder %s21, 1
        %s2146 = scalar_select %p2145, %s21, 1
        %s2147 = scalar_lea.vmem %s7, %s2146
      $region80: #{residual_block_forward.3} parent=59 // pred_fallthru
        _
      // Predicated region
      $region81: #{residual_block_forward.3} parent=59 // pred_check
        %p2148 = pneg %p242
      $region82: #{residual_block_forward.3} parent=59 // pred_check_branch
        %2150 = sbr.rel (%p2148) target = $region84
      $region83: #{residual_block_forward.3} parent=59 // pred_region
        %p2151 = scmp.lt.s32.totalorder %s21, 1
        %s2152 = scalar_select %p2151, %s21, 1
        %s2153 = scalar_lea.vmem %s8, %s2152
      $region84: #{residual_block_forward.3} parent=59 // pred_fallthru
        _
    $region60: #{residual_block_forward.3} parent=5 // pred_fallthru
      _
  $region6: #{residual_block_forward.3} parent=0 // loop_footer
    %s19 = sadd.s32 1, %s15
  $region7: #{residual_block_forward.3} parent=0 // loop_footer_branch
    %14 = sbr.rel target = $region3
  $region8: #{residual_block_forward.3} parent=0 // loop_exit
    _

// kernel: residual_block_forward.4
$region0: #{residual_block_forward.4}
  #allocation0 [shape = 'u32[]', space=smem, size = 0x4, offset = 0x4, fixed_abs, tag = 'smem constant byte address 0x4 - core index']
  #allocation1 [shape = 'u32[72,128]{1,0:T(1,128)}', space=vmem, size = 0x9000, scoped, tag = 'internal scratch']
  #allocation2 [shape = 'bf16[10,10,128]{2,1,0:T(8,128)(2,1)}', space=vmem, size = 0xa000, scoped, tag = 'scratch operand']
  %s0 = inlined_call_operand.vmem [shape: f32[2,8,8,128], index: 0, kind: input, shape index: {}]
  %s1 = inlined_call_operand.vmem [shape: f32[1,128], index: 1, kind: input, shape index: {}]
  %s2 = inlined_call_operand.vmem [shape: f32[1,128], index: 2, kind: input, shape index: {}]
  %s3 = inlined_call_operand.vmem [shape: bf16[9,128,128], index: 3, kind: input, shape index: {}]
  %s4 = inlined_call_operand.vmem [shape: f32[2,64,128], index: 4, kind: output, shape index: {0}]
  %s5 = inlined_call_operand.vmem [shape: f32[2,1,128], index: 5, kind: output, shape index: {1}]
  %s6 = inlined_call_operand.vmem [shape: f32[2,1,128], index: 6, kind: output, shape index: {2}]
  %7 = xla_tuple %s4, %s5, %s6
  %s8 = sld [smem:[#allocation0]]
  $region65: #{residual_block_forward.4} parent=0
    _
  %s10 = ssub.s32 1, %s8
  %s11 = scalar_select 0, %s10, %s8
  loop: start=0, step=1, limit=4
  $region2: #{residual_block_forward.4} parent=0 // loop_pre_header
    _
  $region3: #{residual_block_forward.4} parent=0 // loop_header
    %s13 = sphi 0, %s17
    %p14 = scmp.ge.s32.totalorder %s13, 4
    %s23 = sphi 0, %s25
    %s26 = sphi 0, %s23
    %s27 = sphi 0, %s26
    %s43 = sphi 0, %s27
    %s47 = sphi 0, %s47
    %s49 = sphi 0, %s47
    %s50 = sphi 0, %s49
    %s64 = sphi 0, %s50
    %s68 = sphi 0, %s68
    %s70 = sphi 0, %s68
    %s71 = sphi 0, %s70
    %s85 = sphi 0, %s71
    %s89 = sphi 0, %s89
    %s91 = sphi 0, %s89
    %s92 = sphi 0, %s91
    %s106 = sphi 0, %s92
    %s112 = sphi 0, %s114
    %s115 = sphi 0, %s112
    %s116 = sphi 0, %s115
    %s132 = sphi 0, %s116
    %s138 = sphi 0, %s140
    %s141 = sphi 0, %s138
    %s142 = sphi 0, %s141
    %s158 = sphi 0, %s142
    %s164 = sphi 0, %s166
    %s167 = sphi 0, %s164
    %s168 = sphi 0, %s167
    %s184 = sphi 0, %s168
  $region4: #{residual_block_forward.4} parent=0 // loop_header_branch
    %16 = sbr.rel (%p14) target = $region8
  $region5: #{residual_block_forward.4} parent=0 // loop_body
    %s18 = ssub.s32 %s13, 1
    %s19 = ssub.s32 %s13, 2
    %s20 = sadd.s32 %s13, 1
    %s21 = ssub.s32 %s13, %s20
    %p22 = scmp.eq.s32.totalorder %s21, 0
    %s24 = sadd.s32 %s23, 1
    %s25 = scalar_select %p22, %s23, %s24
    %p28 = pneg %p22
    %p29 = scmp.eq.s32.totalorder %s13, 1
    %p30 = por %p28, %p29
    %p31 = scmp.ne.s32.totalorder %s23, %s26
    %p32 = scmp.eq.s32.totalorder %s13, 0
    %p33 = por %p31, %p32
    %p34 = scmp.ne.s32.totalorder %s23, %s26
    %p35 = scmp.eq.s32.totalorder %s18, 1
    %p36 = por %p34, %p35
    %p37 = scmp.ne.s32.totalorder %s26, %s27
    %p38 = scmp.eq.s32.totalorder %s18, 0
    %p39 = por %p37, %p38
    %p40 = scmp.ne.s32.totalorder %s26, %s27
    %p41 = scmp.eq.s32.totalorder %s19, 1
    %p42 = por %p40, %p41
    %p44 = scmp.ne.s32.totalorder %s27, %s43
    %p45 = scmp.eq.s32.totalorder %s19, 0
    %p46 = por %p44, %p45
    %s48 = sadd.s32 %s47, 1
    %p51 = scmp.eq.s32.totalorder %s13, 1
    %p52 = scmp.ne.s32.totalorder %s47, %s49
    %p53 = scmp.eq.s32.totalorder %s13, 0
    %p54 = por %p52, %p53
    %p55 = scmp.ne.s32.totalorder %s47, %s49
    %p56 = scmp.eq.s32.totalorder %s18, 1
    %p57 = por %p55, %p56
    %p58 = scmp.ne.s32.totalorder %s49, %s50
    %p59 = scmp.eq.s32.totalorder %s18, 0
    %p60 = por %p58, %p59
    %p61 = scmp.ne.s32.totalorder %s49, %s50
    %p62 = scmp.eq.s32.totalorder %s19, 1
    %p63 = por %p61, %p62
    %p65 = scmp.ne.s32.totalorder %s50, %s64
    %p66 = scmp.eq.s32.totalorder %s19, 0
    %p67 = por %p65, %p66
    %s69 = sadd.s32 %s68, 1
    %p72 = scmp.eq.s32.totalorder %s13, 1
    %p73 = scmp.ne.s32.totalorder %s68, %s70
    %p74 = scmp.eq.s32.totalorder %s13, 0
    %p75 = por %p73, %p74
    %p76 = scmp.ne.s32.totalorder %s68, %s70
    %p77 = scmp.eq.s32.totalorder %s18, 1
    %p78 = por %p76, %p77
    %p79 = scmp.ne.s32.totalorder %s70, %s71
    %p80 = scmp.eq.s32.totalorder %s18, 0
    %p81 = por %p79, %p80
    %p82 = scmp.ne.s32.totalorder %s70, %s71
    %p83 = scmp.eq.s32.totalorder %s19, 1
    %p84 = por %p82, %p83
    %p86 = scmp.ne.s32.totalorder %s71, %s85
    %p87 = scmp.eq.s32.totalorder %s19, 0
    %p88 = por %p86, %p87
    %s90 = sadd.s32 %s89, 1
    %p93 = scmp.eq.s32.totalorder %s13, 1
    %p94 = scmp.ne.s32.totalorder %s89, %s91
    %p95 = scmp.eq.s32.totalorder %s13, 0
    %p96 = por %p94, %p95
    %p97 = scmp.ne.s32.totalorder %s89, %s91
    %p98 = scmp.eq.s32.totalorder %s18, 1
    %p99 = por %p97, %p98
    %p100 = scmp.ne.s32.totalorder %s91, %s92
    %p101 = scmp.eq.s32.totalorder %s18, 0
    %p102 = por %p100, %p101
    %p103 = scmp.ne.s32.totalorder %s91, %s92
    %p104 = scmp.eq.s32.totalorder %s19, 1
    %p105 = por %p103, %p104
    %p107 = scmp.ne.s32.totalorder %s92, %s106
    %p108 = scmp.eq.s32.totalorder %s19, 0
    %p109 = por %p107, %p108
    %s110 = ssub.s32 %s13, %s20
    %p111 = scmp.eq.s32.totalorder %s110, 0
    %s113 = sadd.s32 %s112, 1
    %s114 = scalar_select %p111, %s112, %s113
    %p117 = pneg %p111
    %p118 = scmp.eq.s32.totalorder %s13, 1
    %p119 = por %p117, %p118
    %p120 = scmp.ne.s32.totalorder %s112, %s115
    %p121 = scmp.eq.s32.totalorder %s13, 0
    %p122 = por %p120, %p121
    %p123 = scmp.ne.s32.totalorder %s112, %s115
    %p124 = scmp.eq.s32.totalorder %s18, 1
    %p125 = por %p123, %p124
    %p126 = scmp.ne.s32.totalorder %s115, %s116
    %p127 = scmp.eq.s32.totalorder %s18, 0
    %p128 = por %p126, %p127
    %p129 = scmp.ne.s32.totalorder %s115, %s116
    %p130 = scmp.eq.s32.totalorder %s19, 1
    %p131 = por %p129, %p130
    %p133 = scmp.ne.s32.totalorder %s116, %s132
    %p134 = scmp.eq.s32.totalorder %s19, 0
    %p135 = por %p133, %p134
    %s136 = ssub.s32 %s13, %s20
    %p137 = scmp.eq.s32.totalorder %s136, 0
    %s139 = sadd.s32 %s138, 1
    %s140 = scalar_select %p137, %s138, %s139
    %p143 = pneg %p137
    %p144 = scmp.eq.s32.totalorder %s13, 1
    %p145 = por %p143, %p144
    %p146 = scmp.ne.s32.totalorder %s138, %s141
    %p147 = scmp.eq.s32.totalorder %s13, 0
    %p148 = por %p146, %p147
    %p149 = scmp.ne.s32.totalorder %s138, %s141
    %p150 = scmp.eq.s32.totalorder %s18, 1
    %p151 = por %p149, %p150
    %p152 = scmp.ne.s32.totalorder %s141, %s142
    %p153 = scmp.eq.s32.totalorder %s18, 0
    %p154 = por %p152, %p153
    %p155 = scmp.ne.s32.totalorder %s141, %s142
    %p156 = scmp.eq.s32.totalorder %s19, 1
    %p157 = por %p155, %p156
    %p159 = scmp.ne.s32.totalorder %s142, %s158
    %p160 = scmp.eq.s32.totalorder %s19, 0
    %p161 = por %p159, %p160
    %s162 = ssub.s32 %s13, %s20
    %p163 = scmp.eq.s32.totalorder %s162, 0
    %s165 = sadd.s32 %s164, 1
    %s166 = scalar_select %p163, %s164, %s165
    %p169 = pneg %p163
    %p170 = scmp.eq.s32.totalorder %s13, 1
    %p171 = por %p169, %p170
    %p172 = scmp.ne.s32.totalorder %s164, %s167
    %p173 = scmp.eq.s32.totalorder %s13, 0
    %p174 = por %p172, %p173
    %p175 = scmp.ne.s32.totalorder %s164, %s167
    %p176 = scmp.eq.s32.totalorder %s18, 1
    %p177 = por %p175, %p176
    %p178 = scmp.ne.s32.totalorder %s167, %s168
    %p179 = scmp.eq.s32.totalorder %s18, 0
    %p180 = por %p178, %p179
    %p181 = scmp.ne.s32.totalorder %s167, %s168
    %p182 = scmp.eq.s32.totalorder %s19, 1
    %p183 = por %p181, %p182
    %p185 = scmp.ne.s32.totalorder %s168, %s184
    %p186 = scmp.eq.s32.totalorder %s19, 0
    %p187 = por %p185, %p186
    %p188 = scmp.le.s32.totalorder 1, %s13
    %p189 = scmp.lt.s32.totalorder %s13, 3
    %p190 = pnand %p188, %p189
    %p191 = pneg %p190
    // Predicated region
    $region9: #{residual_block_forward.4} parent=5 // pred_check
      _
    $region10: #{residual_block_forward.4} parent=5 // pred_check_branch
      %193 = sbr.rel (%p190) target = $region12
    $region11: #{residual_block_forward.4} parent=5 // pred_region
      %s194 = ssub.s32 %s13, 1
      // Predicated region
      $region13: #{residual_block_forward.4} parent=11 // pred_check
        %p195 = pneg %p60
      $region14: #{residual_block_forward.4} parent=11 // pred_check_branch
        %197 = sbr.rel (%p195) target = $region16
      $region15: #{residual_block_forward.4} parent=11 // pred_region
        _
      $region16: #{residual_block_forward.4} parent=11 // pred_fallthru
        _
      // Predicated region
      $region17: #{residual_block_forward.4} parent=11 // pred_check
        %p198 = pneg %p81
      $region18: #{residual_block_forward.4} parent=11 // pred_check_branch
        %200 = sbr.rel (%p198) target = $region20
      $region19: #{residual_block_forward.4} parent=11 // pred_region
        _
      $region20: #{residual_block_forward.4} parent=11 // pred_fallthru
        _
      // Predicated region
      $region21: #{residual_block_forward.4} parent=11 // pred_check
        %p201 = pneg %p102
      $region22: #{residual_block_forward.4} parent=11 // pred_check_branch
        %203 = sbr.rel (%p201) target = $region24
      $region23: #{residual_block_forward.4} parent=11 // pred_region
        _
      $region24: #{residual_block_forward.4} parent=11 // pred_fallthru
        _
    $region12: #{residual_block_forward.4} parent=5 // pred_fallthru
      _
    %p204 = scmp.lt.s32.totalorder %s13, 2
    // Predicated region
    $region25: #{residual_block_forward.4} parent=5 // pred_check
      %p205 = pneg %p204
    $region26: #{residual_block_forward.4} parent=5 // pred_check_branch
      %207 = sbr.rel (%p205) target = $region28
    $region27: #{residual_block_forward.4} parent=5 // pred_region
      // Predicated region
      $region29: #{residual_block_forward.4} parent=27 // pred_check
        %p208 = pneg %p33
      $region30: #{residual_block_forward.4} parent=27 // pred_check_branch
        %210 = sbr.rel (%p208) target = $region32
      $region31: #{residual_block_forward.4} parent=27 // pred_region
        %p211 = scmp.lt.s32.totalorder %s13, 1
        %s212 = scalar_select %p211, %s13, 1
        %s213 = smul.addr %s212, 8
        %s214 = smul.addr %s213, 8
        %s215 = scalar_lea.vmem %s0, %s214
      $region32: #{residual_block_forward.4} parent=27 // pred_fallthru
        _
    $region28: #{residual_block_forward.4} parent=5 // pred_fallthru
      _
    %p216 = scmp.le.s32.totalorder 1, %s13
    %p217 = scmp.lt.s32.totalorder %s13, 3
    %p218 = pnand %p216, %p217
    %p219 = pneg %p218
    // Predicated region
    $region33: #{residual_block_forward.4} parent=5 // pred_check
      _
    $region34: #{residual_block_forward.4} parent=5 // pred_check_branch
      %221 = sbr.rel (%p218) target = $region36
    $region35: #{residual_block_forward.4} parent=5 // pred_region
      %s222 = ssub.s32 %s13, 1
      %p223 = scmp.lt.s32.totalorder %s18, 1
      %s224 = scalar_select %p223, %s18, 1
      %s225 = smul.addr %s224, 8
      %s226 = smul.addr %s225, 8
      %s227 = scalar_lea.vmem %s0, %s226
      %p228 = pneg %p39
      %p229 = pneg %p36
      %p230 = pneg %p60
      %p231 = pneg %p57
      %p232 = pneg %p81
      %p233 = pneg %p78
      %p234 = pneg %p102
      %p235 = pneg %p99
      %p236 = pneg %p128
      %p237 = pneg %p125
      %p238 = scmp.lt.s32.totalorder %s18, 1
      %s239 = scalar_select %p238, %s18, 1
      %s240 = smul.addr %s239, 8
      %s241 = smul.addr %s240, 8
      %s242 = scalar_lea.vmem %s4, %s241
      %p243 = pneg %p154
      %p244 = pneg %p151
      %p245 = scmp.lt.s32.totalorder %s18, 1
      %s246 = scalar_select %p245, %s18, 1
      %s247 = scalar_lea.vmem %s5, %s246
      %p248 = pneg %p180
      %p249 = pneg %p177
      %p250 = scmp.lt.s32.totalorder %s18, 1
      %s251 = scalar_select %p250, %s18, 1
      %s252 = scalar_lea.vmem %s6, %s251
      %p253 = scmp.lt.s32.totalorder %s18, 1
      %s254 = scalar_select %p253, %s18, 1
      %s255 = smul.addr %s254, 8
      %s256 = smul.addr %s255, 8
      %s257 = scalar_lea.vmem %s0, %s256
      %p258 = scmp.lt.s32.totalorder %s18, 1
      %s259 = scalar_select %p258, %s18, 1
      %s260 = smul.addr %s259, 8
      %s261 = smul.addr %s260, 8
      %s262 = scalar_lea.vmem %s4, %s261
      %p263 = scmp.lt.s32.totalorder %s18, 1
      %s264 = scalar_select %p263, %s18, 1
      %s265 = scalar_lea.vmem %s5, %s264
      %p266 = scmp.lt.s32.totalorder %s18, 1
      %s267 = scalar_select %p266, %s18, 1
      %s268 = scalar_lea.vmem %s6, %s267
      %v270 = vld [vmem:[%s257] sm:$0xff]
      %v271 = vld [vmem:[%s257 + $0x8] sm:$0xff]
      %v272 = vld [vmem:[%s257 + $0x10] sm:$0xff]
      %v273 = vld [vmem:[%s257 + $0x18] sm:$0xff]
      %v274 = vld [vmem:[%s257 + $0x20] sm:$0xff]
      %v275 = vld [vmem:[%s257 + $0x28] sm:$0xff]
      %v276 = vld [vmem:[%s257 + $0x30] sm:$0xff]
      %v277 = vld [vmem:[%s257 + $0x38] sm:$0xff]
      %v278 = vld [vmem:[%s1] sm:$0x1]
      %v280 = vperm.slane %v278, 0
      %v282 = vmul.f32 %v270, %v280
      %v283 = vmul.f32 %v271, %v280
      %v284 = vmul.f32 %v272, %v280
      %v285 = vmul.f32 %v273, %v280
      %v286 = vmul.f32 %v274, %v280
      %v287 = vmul.f32 %v275, %v280
      %v288 = vmul.f32 %v276, %v280
      %v289 = vmul.f32 %v277, %v280
      %v290 = vld [vmem:[%s2] sm:$0x1]
      %v292 = vperm.slane %v290, 0
      %v294 = vadd.f32 %v282, %v292
      %v295 = vadd.f32 %v283, %v292
      %v296 = vadd.f32 %v284, %v292
      %v297 = vadd.f32 %v285, %v292
      %v298 = vadd.f32 %v286, %v292
      %v299 = vadd.f32 %v287, %v292
      %v300 = vadd.f32 %v288, %v292
      %v301 = vadd.f32 %v289, %v292
      %v302 = vmax.f32 %v294, 0.0
      %v303 = vmax.f32 %v295, 0.0
      %v304 = vmax.f32 %v296, 0.0
      %v305 = vmax.f32 %v297, 0.0
      %v306 = vmax.f32 %v298, 0.0
      %v307 = vmax.f32 %v299, 0.0
      %v308 = vmax.f32 %v300, 0.0
      %v309 = vmax.f32 %v301, 0.0
      %310 = vst [vmem:[#allocation2] sm:$0xf] 0
      %311 = vst [vmem:[#allocation2 + $0x4] sm:$0x1] 0
      %s312 = scalar_lea.vmem [#allocation2], 72
      %313 = vst [vmem:[%s312] sm:$0xf] 0
      %314 = vst [vmem:[%s312 + $0x4] sm:$0x1] 0
      %s315 = scalar_lea.vmem [#allocation2], 8
      %vm316 = vcmask 1040384
      %vm317 = vsmask.f32 256
      %vm318 = vmand %vm316, %vm317
      %v319 = vld [vmem:[%s315] sm:$0x1]
      %v320 = vsel %vm318, 0, %v319
      %321 = vst [vmem:[%s315] sm:$0x1] %v320
      %v322 = vld [vmem:[%s315 + $0x8] sm:$0x1]
      %v323 = vsel %vm318, 0, %v322
      %324 = vst [vmem:[%s315 + $0x8] sm:$0x1] %v323
      %v325 = vld [vmem:[%s315 + $0x10] sm:$0x1]
      %v326 = vsel %vm318, 0, %v325
      %327 = vst [vmem:[%s315 + $0x10] sm:$0x1] %v326
      %v328 = vld [vmem:[%s315 + $0x18] sm:$0x1]
      %v329 = vsel %vm318, 0, %v328
      %330 = vst [vmem:[%s315 + $0x18] sm:$0x1] %v329
      %v331 = vld [vmem:[%s315 + $0x20] sm:$0x1]
      %v332 = vsel %vm318, 0, %v331
      %333 = vst [vmem:[%s315 + $0x20] sm:$0x1] %v332
      %v334 = vld [vmem:[%s315 + $0x28] sm:$0x1]
      %v335 = vsel %vm318, 0, %v334
      %336 = vst [vmem:[%s315 + $0x28] sm:$0x1] %v335
      %v337 = vld [vmem:[%s315 + $0x30] sm:$0x1]
      %v338 = vsel %vm318, 0, %v337
      %339 = vst [vmem:[%s315 + $0x30] sm:$0x1] %v338
      %v340 = vld [vmem:[%s315 + $0x38] sm:$0x1]
      %v341 = vsel %vm318, 0, %v340
      %342 = vst [vmem:[%s315 + $0x38] sm:$0x1] %v341
      %vm343 = vsmask.f32 7938
      %vm344 = vmand %vm316, %vm343
      %v345 = vld [vmem:[%s315 + $0x4] sm:$0x1]
      %v346 = vsel %vm344, 0, %v345
      %347 = vst [vmem:[%s315 + $0x4] sm:$0x1] %v346
      %v348 = vld [vmem:[%s315 + $0xc] sm:$0x1]
      %v349 = vsel %vm344, 0, %v348
      %350 = vst [vmem:[%s315 + $0xc] sm:$0x1] %v349
      %v351 = vld [vmem:[%s315 + $0x14] sm:$0x1]
      %v352 = vsel %vm344, 0, %v351
      %353 = vst [vmem:[%s315 + $0x14] sm:$0x1] %v352
      %v354 = vld [vmem:[%s315 + $0x1c] sm:$0x1]
      %v355 = vsel %vm344, 0, %v354
      %356 = vst [vmem:[%s315 + $0x1c] sm:$0x1] %v355
      %v357 = vld [vmem:[%s315 + $0x24] sm:$0x1]
      %v358 = vsel %vm344, 0, %v357
      %359 = vst [vmem:[%s315 + $0x24] sm:$0x1] %v358
      %v360 = vld [vmem:[%s315 + $0x2c] sm:$0x1]
      %v361 = vsel %vm344, 0, %v360
      %362 = vst [vmem:[%s315 + $0x2c] sm:$0x1] %v361
      %v363 = vld [vmem:[%s315 + $0x34] sm:$0x1]
      %v364 = vsel %vm344, 0, %v363
      %365 = vst [vmem:[%s315 + $0x34] sm:$0x1] %v364
      %v366 = vld [vmem:[%s315 + $0x3c] sm:$0x1]
      %v367 = vsel %vm344, 0, %v366
      %368 = vst [vmem:[%s315 + $0x3c] sm:$0x1] %v367
      %v369 = vpack.c.bf16 %v302, %v302
      %v370 = vpack.c.bf16 %v303, %v303
      %v371 = vpack.c.bf16 %v304, %v304
      %v372 = vpack.c.bf16 %v305, %v305
      %v373 = vpack.c.bf16 %v306, %v306
      %v374 = vpack.c.bf16 %v307, %v307
      %v375 = vpack.c.bf16 %v308, %v308
      %v376 = vpack.c.bf16 %v309, %v309
      %v378 = vshrl.u32 %v369, 16
      %v380 = vrot.slane %v378, 7
      %v381 = vshll.u32 %v369, 16
      %v383 = vor.u32 %v380, %v381
      %v384 = vrot.slane %v380, 4
      %v386 = vshrl.u32 %v370, 16
      %v388 = vrot.slane %v386, 7
      %v389 = vshll.u32 %v370, 16
      %v391 = vor.u32 %v388, %v389
      %v392 = vrot.slane %v388, 4
      %v394 = vshrl.u32 %v371, 16
      %v396 = vrot.slane %v394, 7
      %v397 = vshll.u32 %v371, 16
      %v399 = vor.u32 %v396, %v397
      %v400 = vrot.slane %v396, 4
      %v402 = vshrl.u32 %v372, 16
      %v404 = vrot.slane %v402, 7
      %v405 = vshll.u32 %v372, 16
      %v407 = vor.u32 %v404, %v405
      %v408 = vrot.slane %v404, 4
      %v410 = vshrl.u32 %v373, 16
      %v412 = vrot.slane %v410, 7
      %v413 = vshll.u32 %v373, 16
      %v415 = vor.u32 %v412, %v413
      %v416 = vrot.slane %v412, 4
      %v418 = vshrl.u32 %v374, 16
      %v420 = vrot.slane %v418, 7
      %v421 = vshll.u32 %v374, 16
      %v423 = vor.u32 %v420, %v421
      %v424 = vrot.slane %v420, 4
      %v426 = vshrl.u32 %v375, 16
      %v428 = vrot.slane %v426, 7
      %v429 = vshll.u32 %v375, 16
      %v431 = vor.u32 %v428, %v429
      %v432 = vrot.slane %v428, 4
      %v434 = vshrl.u32 %v376, 16
      %v436 = vrot.slane %v434, 7
      %v437 = vshll.u32 %v376, 16
      %v439 = vor.u32 %v436, %v437
      %v440 = vrot.slane %v436, 4
      %vm457 = vcmask 1043456
      %vm458 = vmand %vm457, %vm343
      %v459 = vld [vmem:[%s315] sm:$0xf]
      %v460 = vsel %vm458, %v383, %v459
      %461 = vst [vmem:[%s315] sm:$0xf] %v460
      %v462 = vld [vmem:[%s315 + $0x4] sm:$0x1]
      %v463 = vsel %vm318, %v384, %v462
      %464 = vst [vmem:[%s315 + $0x4] sm:$0x1] %v463
      %v465 = vld [vmem:[%s315 + $0x8] sm:$0xf]
      %v466 = vsel %vm458, %v391, %v465
      %467 = vst [vmem:[%s315 + $0x8] sm:$0xf] %v466
      %v468 = vld [vmem:[%s315 + $0xc] sm:$0x1]
      %v469 = vsel %vm318, %v392, %v468
      %470 = vst [vmem:[%s315 + $0xc] sm:$0x1] %v469
      %v471 = vld [vmem:[%s315 + $0x10] sm:$0xf]
      %v472 = vsel %vm458, %v399, %v471
      %473 = vst [vmem:[%s315 + $0x10] sm:$0xf] %v472
      %v474 = vld [vmem:[%s315 + $0x14] sm:$0x1]
      %v475 = vsel %vm318, %v400, %v474
      %476 = vst [vmem:[%s315 + $0x14] sm:$0x1] %v475
      %v477 = vld [vmem:[%s315 + $0x18] sm:$0xf]
      %v478 = vsel %vm458, %v407, %v477
      %479 = vst [vmem:[%s315 + $0x18] sm:$0xf] %v478
      %v480 = vld [vmem:[%s315 + $0x1c] sm:$0x1]
      %v481 = vsel %vm318, %v408, %v480
      %482 = vst [vmem:[%s315 + $0x1c] sm:$0x1] %v481
      %v483 = vld [vmem:[%s315 + $0x20] sm:$0xf]
      %v484 = vsel %vm458, %v415, %v483
      %485 = vst [vmem:[%s315 + $0x20] sm:$0xf] %v484
      %v486 = vld [vmem:[%s315 + $0x24] sm:$0x1]
      %v487 = vsel %vm318, %v416, %v486
      %488 = vst [vmem:[%s315 + $0x24] sm:$0x1] %v487
      %v489 = vld [vmem:[%s315 + $0x28] sm:$0xf]
      %v490 = vsel %vm458, %v423, %v489
      %491 = vst [vmem:[%s315 + $0x28] sm:$0xf] %v490
      %v492 = vld [vmem:[%s315 + $0x2c] sm:$0x1]
      %v493 = vsel %vm318, %v424, %v492
      %494 = vst [vmem:[%s315 + $0x2c] sm:$0x1] %v493
      %v495 = vld [vmem:[%s315 + $0x30] sm:$0xf]
      %v496 = vsel %vm458, %v431, %v495
      %497 = vst [vmem:[%s315 + $0x30] sm:$0xf] %v496
      %v498 = vld [vmem:[%s315 + $0x34] sm:$0x1]
      %v499 = vsel %vm318, %v432, %v498
      %500 = vst [vmem:[%s315 + $0x34] sm:$0x1] %v499
      %v501 = vld [vmem:[%s315 + $0x38] sm:$0xf]
      %v502 = vsel %vm458, %v439, %v501
      %503 = vst [vmem:[%s315 + $0x38] sm:$0xf] %v502
      %v504 = vld [vmem:[%s315 + $0x3c] sm:$0x1]
      %v505 = vsel %vm318, %v440, %v504
      %506 = vst [vmem:[%s315 + $0x3c] sm:$0x1] %v505
      %v507 = vld [vmem:[#allocation2] sm:$0xf]
      %v508 = vld [vmem:[#allocation2 + $0x8] sm:$0xf]
      %v509 = vld [vmem:[#allocation2 + $0x10] sm:$0xf]
      %v510 = vld [vmem:[#allocation2 + $0x18] sm:$0xf]
      %v511 = vld [vmem:[#allocation2 + $0x20] sm:$0xf]
      %v512 = vld [vmem:[#allocation2 + $0x28] sm:$0xf]
      %v513 = vld [vmem:[#allocation2 + $0x30] sm:$0xf]
      %v514 = vld [vmem:[#allocation2 + $0x38] sm:$0xf]
      %v515 = vld [vmem:[%s3] sm:$0xf]
      %v516 = vld [vmem:[%s3 + $0x4] sm:$0xf]
      %v517 = vld [vmem:[%s3 + $0x8] sm:$0xf]
      %v518 = vld [vmem:[%s3 + $0xc] sm:$0xf]
      %v519 = vld [vmem:[%s3 + $0x10] sm:$0xf]
      %v520 = vld [vmem:[%s3 + $0x14] sm:$0xf]
      %v521 = vld [vmem:[%s3 + $0x18] sm:$0xf]
      %v522 = vld [vmem:[%s3 + $0x1c] sm:$0xf]
      %v523 = vld [vmem:[%s3 + $0x20] sm:$0xf]
      %v524 = vld [vmem:[%s3 + $0x24] sm:$0xf]
      %v525 = vld [vmem:[%s3 + $0x28] sm:$0xf]
      %v526 = vld [vmem:[%s3 + $0x2c] sm:$0xf]
      %v527 = vld [vmem:[%s3 + $0x30] sm:$0xf]
      %v528 = vld [vmem:[%s3 + $0x34] sm:$0xf]
      %v529 = vld [vmem:[%s3 + $0x38] sm:$0xf]
      %v530 = vld [vmem:[%s3 + $0x3c] sm:$0xf]
      %v531 = vld [vmem:[#allocation2 + $0x4] sm:$0x1]
      %v532 = vld [vmem:[#allocation2 + $0xc] sm:$0x1]
      %v533 = vld [vmem:[#allocation2 + $0x14] sm:$0x1]
      %v534 = vld [vmem:[#allocation2 + $0x1c] sm:$0x1]
      %v535 = vld [vmem:[#allocation2 + $0x24] sm:$0x1]
      %v536 = vld [vmem:[#allocation2 + $0x2c] sm:$0x1]
      %v537 = vld [vmem:[#allocation2 + $0x34] sm:$0x1]
      %v538 = vld [vmem:[#allocation2 + $0x3c] sm:$0x1]
      %vm539 = vsmask.f32 3328
      %vm540 = vsmask.f32 7440
      %vm541 = vmor %vm539, %vm540
      %v543 = vshrl.u32 %v507, 16
      %v545 = vrot.slane %v543, 4
      %v546 = vshll.u32 %v507, 16
      %v548 = vrot.slane %v546, 5
      %v549 = vor.u32 %v545, %v548
      %v550 = vrot.slane %v549, 4
      %v552 = vshll.u32 %v531, 16
      %v554 = vrot.slane %v552, 5
      %v555 = vsel %vm541, %v550, %v554
      %v557 = vshrl.u32 %v508, 16
      %v559 = vrot.slane %v557, 4
      %v560 = vshll.u32 %v508, 16
      %v562 = vrot.slane %v560, 5
      %v563 = vor.u32 %v559, %v562
      %v564 = vrot.slane %v563, 4
      %v566 = vshll.u32 %v532, 16
      %v568 = vrot.slane %v566, 5
      %v569 = vsel %vm541, %v564, %v568
      %v571 = vshrl.u32 %v509, 16
      %v573 = vrot.slane %v571, 4
      %v574 = vshll.u32 %v509, 16
      %v576 = vrot.slane %v574, 5
      %v577 = vor.u32 %v573, %v576
      %v578 = vrot.slane %v577, 4
      %v580 = vshll.u32 %v533, 16
      %v582 = vrot.slane %v580, 5
      %v583 = vsel %vm541, %v578, %v582
      %v585 = vshrl.u32 %v510, 16
      %v587 = vrot.slane %v585, 4
      %v588 = vshll.u32 %v510, 16
      %v590 = vrot.slane %v588, 5
      %v591 = vor.u32 %v587, %v590
      %v592 = vrot.slane %v591, 4
      %v594 = vshll.u32 %v534, 16
      %v596 = vrot.slane %v594, 5
      %v597 = vsel %vm541, %v592, %v596
      %v599 = vshrl.u32 %v511, 16
      %v601 = vrot.slane %v599, 4
      %v602 = vshll.u32 %v511, 16
      %v604 = vrot.slane %v602, 5
      %v605 = vor.u32 %v601, %v604
      %v606 = vrot.slane %v605, 4
      %v608 = vshll.u32 %v535, 16
      %v610 = vrot.slane %v608, 5
      %v611 = vsel %vm541, %v606, %v610
      %v613 = vshrl.u32 %v512, 16
      %v615 = vrot.slane %v613, 4
      %v616 = vshll.u32 %v512, 16
      %v618 = vrot.slane %v616, 5
      %v619 = vor.u32 %v615, %v618
      %v620 = vrot.slane %v619, 4
      %v622 = vshll.u32 %v536, 16
      %v624 = vrot.slane %v622, 5
      %v625 = vsel %vm541, %v620, %v624
      %v627 = vshrl.u32 %v513, 16
      %v629 = vrot.slane %v627, 4
      %v630 = vshll.u32 %v513, 16
      %v632 = vrot.slane %v630, 5
      %v633 = vor.u32 %v629, %v632
      %v634 = vrot.slane %v633, 4
      %v636 = vshll.u32 %v537, 16
      %v638 = vrot.slane %v636, 5
      %v639 = vsel %vm541, %v634, %v638
      %v641 = vshrl.u32 %v514, 16
      %v643 = vrot.slane %v641, 4
      %v644 = vshll.u32 %v514, 16
      %v646 = vrot.slane %v644, 5
      %v647 = vor.u32 %v643, %v646
      %v648 = vrot.slane %v647, 4
      %v650 = vshll.u32 %v538, 16
      %v652 = vrot.slane %v650, 5
      %v653 = vsel %vm541, %v648, %v652
      %s654 = scalar_lea.vmem %s3, 64
      %v655 = vld [vmem:[%s654] sm:$0xf]
      %v656 = vld [vmem:[%s654 + $0x4] sm:$0xf]
      %v657 = vld [vmem:[%s654 + $0x8] sm:$0xf]
      %v658 = vld [vmem:[%s654 + $0xc] sm:$0xf]
      %v659 = vld [vmem:[%s654 + $0x10] sm:$0xf]
      %v660 = vld [vmem:[%s654 + $0x14] sm:$0xf]
      %v661 = vld [vmem:[%s654 + $0x18] sm:$0xf]
      %v662 = vld [vmem:[%s654 + $0x1c] sm:$0xf]
      %v663 = vld [vmem:[%s654 + $0x20] sm:$0xf]
      %v664 = vld [vmem:[%s654 + $0x24] sm:$0xf]
      %v665 = vld [vmem:[%s654 + $0x28] sm:$0xf]
      %v666 = vld [vmem:[%s654 + $0x2c] sm:$0xf]
      %v667 = vld [vmem:[%s654 + $0x30] sm:$0xf]
      %v668 = vld [vmem:[%s654 + $0x34] sm:$0xf]
      %v669 = vld [vmem:[%s654 + $0x38] sm:$0xf]
      %v670 = vld [vmem:[%s654 + $0x3c] sm:$0xf]
      %v671 = vunpack.c.l.b16 %v555
      %v672 = vunpack.c.l.b16 %v569
      %v673 = vunpack.c.l.b16 %v583
      %v674 = vunpack.c.l.b16 %v597
      %v675 = vunpack.c.l.b16 %v611
      %v676 = vunpack.c.l.b16 %v625
      %v677 = vunpack.c.l.b16 %v639
      %v678 = vunpack.c.l.b16 %v653
      %v679 = vpack.c.b16 %v672, %v671
      %v680 = vpack.c.b16 %v674, %v673
      %v681 = vpack.c.b16 %v676, %v675
      %v682 = vpack.c.b16 %v678, %v677
      %v703 = vunpack.c.l.b16 %v655
      %v704 = vunpack.c.l.b16 %v656
      %v705 = vunpack.c.l.b16 %v657
      %v706 = vunpack.c.l.b16 %v658
      %v707 = vunpack.c.l.b16 %v659
      %v708 = vunpack.c.l.b16 %v660
      %v709 = vunpack.c.l.b16 %v661
      %v710 = vunpack.c.l.b16 %v662
      %v711 = vunpack.c.l.b16 %v663
      %v712 = vunpack.c.l.b16 %v664
      %v713 = vunpack.c.l.b16 %v665
      %v714 = vunpack.c.l.b16 %v666
      %v715 = vunpack.c.l.b16 %v667
      %v716 = vunpack.c.l.b16 %v668
      %v717 = vunpack.c.l.b16 %v669
      %v718 = vunpack.c.l.b16 %v670
      %v719 = vpack.c.b16 %v704, %v703
      %v720 = vpack.c.b16 %v706, %v705
      %v721 = vpack.c.b16 %v708, %v707
      %v722 = vpack.c.b16 %v710, %v709
      %v723 = vpack.c.b16 %v712, %v711
      %v724 = vpack.c.b16 %v714, %v713
      %v725 = vpack.c.b16 %v716, %v715
      %v726 = vpack.c.b16 %v718, %v717
      %735 = vmatpush.bf16.msra.mxu0 %v726
      %736 = vmatpush.bf16.msra.mxu0 %v725
      %737 = vmatpush.bf16.msra.mxu0 %v724
      %738 = vmatpush.bf16.msra.mxu0 %v723
      %739 = vmatpush.bf16.msra.mxu0 %v722
      %740 = vmatpush.bf16.msra.mxu0 %v721
      %741 = vmatpush.bf16.msra.mxu0 %v720
      %742 = vmatpush.bf16.msra.mxu0 %v719
      %743 = vmatmul.bf16.gmra.mxu0 %v679
      %v744 = vpop.f32.mrf.mxu0
      %v745 = vadd.f32 0.0, %v744
      %v746 = vpop.f32.mrf.mxu0
      %v747 = vadd.f32 0.0, %v746
      %748 = vmatmul.bf16.gmra.mxu0 %v680
      %v749 = vpop.f32.mrf.mxu0
      %v750 = vadd.f32 0.0, %v749
      %v751 = vpop.f32.mrf.mxu0
      %v752 = vadd.f32 0.0, %v751
      %753 = vmatmul.bf16.gmra.mxu0 %v681
      %v754 = vpop.f32.mrf.mxu0
      %v755 = vadd.f32 0.0, %v754
      %v756 = vpop.f32.mrf.mxu0
      %v757 = vadd.f32 0.0, %v756
      %758 = vmatmul.bf16.gmra.mxu0 %v682
      %v759 = vpop.f32.mrf.mxu0
      %v760 = vadd.f32 0.0, %v759
      %v761 = vpop.f32.mrf.mxu0
      %v762 = vadd.f32 0.0, %v761
      %763 = vdwg.mxu0
      %v772 = vunpack.c.l.b16 %v507
      %v773 = vunpack.c.l.b16 %v508
      %v774 = vunpack.c.l.b16 %v509
      %v775 = vunpack.c.l.b16 %v510
      %v776 = vunpack.c.l.b16 %v511
      %v777 = vunpack.c.l.b16 %v512
      %v778 = vunpack.c.l.b16 %v513
      %v779 = vunpack.c.l.b16 %v514
      %v780 = vpack.c.b16 %v773, %v772
      %v781 = vpack.c.b16 %v775, %v774
      %v782 = vpack.c.b16 %v777, %v776
      %v783 = vpack.c.b16 %v779, %v778
      %v804 = vunpack.c.l.b16 %v515
      %v805 = vunpack.c.l.b16 %v516
      %v806 = vunpack.c.l.b16 %v517
      %v807 = vunpack.c.l.b16 %v518
      %v808 = vunpack.c.l.b16 %v519
      %v809 = vunpack.c.l.b16 %v520
      %v810 = vunpack.c.l.b16 %v521
      %v811 = vunpack.c.l.b16 %v522
      %v812 = vunpack.c.l.b16 %v523
      %v813 = vunpack.c.l.b16 %v524
      %v814 = vunpack.c.l.b16 %v525
      %v815 = vunpack.c.l.b16 %v526
      %v816 = vunpack.c.l.b16 %v527
      %v817 = vunpack.c.l.b16 %v528
      %v818 = vunpack.c.l.b16 %v529
      %v819 = vunpack.c.l.b16 %v530
      %v820 = vpack.c.b16 %v805, %v804
      %v821 = vpack.c.b16 %v807, %v806
      %v822 = vpack.c.b16 %v809, %v808
      %v823 = vpack.c.b16 %v811, %v810
      %v824 = vpack.c.b16 %v813, %v812
      %v825 = vpack.c.b16 %v815, %v814
      %v826 = vpack.c.b16 %v817, %v816
      %v827 = vpack.c.b16 %v819, %v818
      %836 = vmatpush.bf16.msra.mxu0 %v827
      %837 = vmatpush.bf16.msra.mxu0 %v826
      %838 = vmatpush.bf16.msra.mxu0 %v825
      %839 = vmatpush.bf16.msra.mxu0 %v824
      %840 = vmatpush.bf16.msra.mxu0 %v823
      %841 = vmatpush.bf16.msra.mxu0 %v822
      %842 = vmatpush.bf16.msra.mxu0 %v821
      %843 = vmatpush.bf16.msra.mxu0 %v820
      %844 = vmatmul.bf16.gmra.mxu0 %v780
      %v845 = vpop.f32.mrf.mxu0
      %v846 = vadd.f32 %v745, %v845
      %v847 = vpop.f32.mrf.mxu0
      %v848 = vadd.f32 %v747, %v847
      %849 = vmatmul.bf16.gmra.mxu0 %v781
      %v850 = vpop.f32.mrf.mxu0
      %v851 = vadd.f32 %v750, %v850
      %v852 = vpop.f32.mrf.mxu0
      %v853 = vadd.f32 %v752, %v852
      %854 = vmatmul.bf16.gmra.mxu0 %v782
      %v855 = vpop.f32.mrf.mxu0
      %v856 = vadd.f32 %v755, %v855
      %v857 = vpop.f32.mrf.mxu0
      %v858 = vadd.f32 %v757, %v857
      %859 = vmatmul.bf16.gmra.mxu0 %v783
      %v860 = vpop.f32.mrf.mxu0
      %v861 = vadd.f32 %v760, %v860
      %v862 = vpop.f32.mrf.mxu0
      %v863 = vadd.f32 %v762, %v862
      %864 = vdwg.mxu0
      %v865 = vld [vmem:[#allocation2] sm:$0xe]
      %v866 = vld [vmem:[#allocation2 + $0x8] sm:$0xe]
      %v867 = vld [vmem:[#allocation2 + $0x10] sm:$0xe]
      %v868 = vld [vmem:[#allocation2 + $0x18] sm:$0xe]
      %v869 = vld [vmem:[#allocation2 + $0x20] sm:$0xe]
      %v870 = vld [vmem:[#allocation2 + $0x28] sm:$0xe]
      %v871 = vld [vmem:[#allocation2 + $0x30] sm:$0xe]
      %v872 = vld [vmem:[#allocation2 + $0x38] sm:$0xe]
      %vm889 = vcmask 1042432
      %vm890 = vcmask 1046532
      %vm891 = vmor %vm889, %vm890
      %v892 = vrot.slane %v865, 5
      %v893 = vrot.slane %v892, 4
      %v894 = vrot.slane %v531, 5
      %v895 = vsel %vm891, %v893, %v894
      %v896 = vrot.slane %v866, 5
      %v897 = vrot.slane %v896, 4
      %v898 = vrot.slane %v532, 5
      %v899 = vsel %vm891, %v897, %v898
      %v900 = vrot.slane %v867, 5
      %v901 = vrot.slane %v900, 4
      %v902 = vrot.slane %v533, 5
      %v903 = vsel %vm891, %v901, %v902
      %v904 = vrot.slane %v868, 5
      %v905 = vrot.slane %v904, 4
      %v906 = vrot.slane %v534, 5
      %v907 = vsel %vm891, %v905, %v906
      %v908 = vrot.slane %v869, 5
      %v909 = vrot.slane %v908, 4
      %v910 = vrot.slane %v535, 5
      %v911 = vsel %vm891, %v909, %v910
      %v912 = vrot.slane %v870, 5
      %v913 = vrot.slane %v912, 4
      %v914 = vrot.slane %v536, 5
      %v915 = vsel %vm891, %v913, %v914
      %v916 = vrot.slane %v871, 5
      %v917 = vrot.slane %v916, 4
      %v918 = vrot.slane %v537, 5
      %v919 = vsel %vm891, %v917, %v918
      %v920 = vrot.slane %v872, 5
      %v921 = vrot.slane %v920, 4
      %v922 = vrot.slane %v538, 5
      %v923 = vsel %vm891, %v921, %v922
      %s924 = scalar_lea.vmem %s3, 128
      %v925 = vld [vmem:[%s924] sm:$0xf]
      %v926 = vld [vmem:[%s924 + $0x4] sm:$0xf]
      %v927 = vld [vmem:[%s924 + $0x8] sm:$0xf]
      %v928 = vld [vmem:[%s924 + $0xc] sm:$0xf]
      %v929 = vld [vmem:[%s924 + $0x10] sm:$0xf]
      %v930 = vld [vmem:[%s924 + $0x14] sm:$0xf]
      %v931 = vld [vmem:[%s924 + $0x18] sm:$0xf]
      %v932 = vld [vmem:[%s924 + $0x1c] sm:$0xf]
      %v933 = vld [vmem:[%s924 + $0x20] sm:$0xf]
      %v934 = vld [vmem:[%s924 + $0x24] sm:$0xf]
      %v935 = vld [vmem:[%s924 + $0x28] sm:$0xf]
      %v936 = vld [vmem:[%s924 + $0x2c] sm:$0xf]
      %v937 = vld [vmem:[%s924 + $0x30] sm:$0xf]
      %v938 = vld [vmem:[%s924 + $0x34] sm:$0xf]
      %v939 = vld [vmem:[%s924 + $0x38] sm:$0xf]
      %v940 = vld [vmem:[%s924 + $0x3c] sm:$0xf]
      %v941 = vunpack.c.l.b16 %v895
      %v942 = vunpack.c.l.b16 %v899
      %v943 = vunpack.c.l.b16 %v903
      %v944 = vunpack.c.l.b16 %v907
      %v945 = vunpack.c.l.b16 %v911
      %v946 = vunpack.c.l.b16 %v915
      %v947 = vunpack.c.l.b16 %v919
      %v948 = vunpack.c.l.b16 %v923
      %v949 = vpack.c.b16 %v942, %v941
      %v950 = vpack.c.b16 %v944, %v943
      %v951 = vpack.c.b16 %v946, %v945
      %v952 = vpack.c.b16 %v948, %v947
      %v973 = vunpack.c.l.b16 %v925
      %v974 = vunpack.c.l.b16 %v926
      %v975 = vunpack.c.l.b16 %v927
      %v976 = vunpack.c.l.b16 %v928
      %v977 = vunpack.c.l.b16 %v929
      %v978 = vunpack.c.l.b16 %v930
      %v979 = vunpack.c.l.b16 %v931
      %v980 = vunpack.c.l.b16 %v932
      %v981 = vunpack.c.l.b16 %v933
      %v982 = vunpack.c.l.b16 %v934
      %v983 = vunpack.c.l.b16 %v935
      %v984 = vunpack.c.l.b16 %v936
      %v985 = vunpack.c.l.b16 %v937
      %v986 = vunpack.c.l.b16 %v938
      %v987 = vunpack.c.l.b16 %v939
      %v988 = vunpack.c.l.b16 %v940
      %v989 = vpack.c.b16 %v974, %v973
      %v990 = vpack.c.b16 %v976, %v975
      %v991 = vpack.c.b16 %v978, %v977
      %v992 = vpack.c.b16 %v980, %v979
      %v993 = vpack.c.b16 %v982, %v981
      %v994 = vpack.c.b16 %v984, %v983
      %v995 = vpack.c.b16 %v986, %v985
      %v996 = vpack.c.b16 %v988, %v987
      %1005 = vmatpush.bf16.msra.mxu0 %v996
      %1006 = vmatpush.bf16.msra.mxu0 %v995
      %1007 = vmatpush.bf16.msra.mxu0 %v994
      %1008 = vmatpush.bf16.msra.mxu0 %v993
      %1009 = vmatpush.bf16.msra.mxu0 %v992
      %1010 = vmatpush.bf16.msra.mxu0 %v991
      %1011 = vmatpush.bf16.msra.mxu0 %v990
      %1012 = vmatpush.bf16.msra.mxu0 %v989
      %1013 = vmatmul.bf16.gmra.mxu0 %v949
      %v1014 = vpop.f32.mrf.mxu0
      %v1015 = vadd.f32 0.0, %v1014
      %v1016 = vpop.f32.mrf.mxu0
      %v1017 = vadd.f32 0.0, %v1016
      %1018 = vmatmul.bf16.gmra.mxu0 %v950
      %v1019 = vpop.f32.mrf.mxu0
      %v1020 = vadd.f32 0.0, %v1019
      %v1021 = vpop.f32.mrf.mxu0
      %v1022 = vadd.f32 0.0, %v1021
      %1023 = vmatmul.bf16.gmra.mxu0 %v951
      %v1024 = vpop.f32.mrf.mxu0
      %v1025 = vadd.f32 0.0, %v1024
      %v1026 = vpop.f32.mrf.mxu0
      %v1027 = vadd.f32 0.0, %v1026
      %1028 = vmatmul.bf16.gmra.mxu0 %v952
      %v1029 = vpop.f32.mrf.mxu0
      %v1030 = vadd.f32 0.0, %v1029
      %v1031 = vpop.f32.mrf.mxu0
      %v1032 = vadd.f32 0.0, %v1031
      %1033 = vdwg.mxu0
      %v1034 = vadd.f32 %v846, %v1015
      %v1035 = vadd.f32 %v848, %v1017
      %v1036 = vadd.f32 %v851, %v1020
      %v1037 = vadd.f32 %v853, %v1022
      %v1038 = vadd.f32 %v856, %v1025
      %v1039 = vadd.f32 %v858, %v1027
      %v1040 = vadd.f32 %v861, %v1030
      %v1041 = vadd.f32 %v863, %v1032
      %v1042 = vld [vmem:[%s315] sm:$0xf]
      %v1043 = vld [vmem:[%s315 + $0x8] sm:$0xf]
      %v1044 = vld [vmem:[%s315 + $0x10] sm:$0xf]
      %v1045 = vld [vmem:[%s315 + $0x18] sm:$0xf]
      %v1046 = vld [vmem:[%s315 + $0x20] sm:$0xf]
      %v1047 = vld [vmem:[%s315 + $0x28] sm:$0xf]
      %v1048 = vld [vmem:[%s315 + $0x30] sm:$0xf]
      %v1049 = vld [vmem:[%s315 + $0x38] sm:$0xf]
      %s1050 = scalar_lea.vmem %s3, 192
      %v1051 = vld [vmem:[%s1050] sm:$0xf]
      %v1052 = vld [vmem:[%s1050 + $0x4] sm:$0xf]
      %v1053 = vld [vmem:[%s1050 + $0x8] sm:$0xf]
      %v1054 = vld [vmem:[%s1050 + $0xc] sm:$0xf]
      %v1055 = vld [vmem:[%s1050 + $0x10] sm:$0xf]
      %v1056 = vld [vmem:[%s1050 + $0x14] sm:$0xf]
      %v1057 = vld [vmem:[%s1050 + $0x18] sm:$0xf]
      %v1058 = vld [vmem:[%s1050 + $0x1c] sm:$0xf]
      %v1059 = vld [vmem:[%s1050 + $0x20] sm:$0xf]
      %v1060 = vld [vmem:[%s1050 + $0x24] sm:$0xf]
      %v1061 = vld [vmem:[%s1050 + $0x28] sm:$0xf]
      %v1062 = vld [vmem:[%s1050 + $0x2c] sm:$0xf]
      %v1063 = vld [vmem:[%s1050 + $0x30] sm:$0xf]
      %v1064 = vld [vmem:[%s1050 + $0x34] sm:$0xf]
      %v1065 = vld [vmem:[%s1050 + $0x38] sm:$0xf]
      %v1066 = vld [vmem:[%s1050 + $0x3c] sm:$0xf]
      %v1075 = vunpack.c.l.b16 %v1042
      %v1076 = vunpack.c.l.b16 %v1043
      %v1077 = vunpack.c.l.b16 %v1044
      %v1078 = vunpack.c.l.b16 %v1045
      %v1079 = vunpack.c.l.b16 %v1046
      %v1080 = vunpack.c.l.b16 %v1047
      %v1081 = vunpack.c.l.b16 %v1048
      %v1082 = vunpack.c.l.b16 %v1049
      %v1083 = vpack.c.b16 %v1076, %v1075
      %v1084 = vpack.c.b16 %v1078, %v1077
      %v1085 = vpack.c.b16 %v1080, %v1079
      %v1086 = vpack.c.b16 %v1082, %v1081
      %v1107 = vunpack.c.l.b16 %v1051
      %v1108 = vunpack.c.l.b16 %v1052
      %v1109 = vunpack.c.l.b16 %v1053
      %v1110 = vunpack.c.l.b16 %v1054
      %v1111 = vunpack.c.l.b16 %v1055
      %v1112 = vunpack.c.l.b16 %v1056
      %v1113 = vunpack.c.l.b16 %v1057
      %v1114 = vunpack.c.l.b16 %v1058
      %v1115 = vunpack.c.l.b16 %v1059
      %v1116 = vunpack.c.l.b16 %v1060
      %v1117 = vunpack.c.l.b16 %v1061
      %v1118 = vunpack.c.l.b16 %v1062
      %v1119 = vunpack.c.l.b16 %v1063
      %v1120 = vunpack.c.l.b16 %v1064
      %v1121 = vunpack.c.l.b16 %v1065
      %v1122 = vunpack.c.l.b16 %v1066
      %v1123 = vpack.c.b16 %v1108, %v1107
      %v1124 = vpack.c.b16 %v1110, %v1109
      %v1125 = vpack.c.b16 %v1112, %v1111
      %v1126 = vpack.c.b16 %v1114, %v1113
      %v1127 = vpack.c.b16 %v1116, %v1115
      %v1128 = vpack.c.b16 %v1118, %v1117
      %v1129 = vpack.c.b16 %v1120, %v1119
      %v1130 = vpack.c.b16 %v1122, %v1121
      %1139 = vmatpush.bf16.msra.mxu0 %v1130
      %1140 = vmatpush.bf16.msra.mxu0 %v1129
      %1141 = vmatpush.bf16.msra.mxu0 %v1128
      %1142 = vmatpush.bf16.msra.mxu0 %v1127
      %1143 = vmatpush.bf16.msra.mxu0 %v1126
      %1144 = vmatpush.bf16.msra.mxu0 %v1125
      %1145 = vmatpush.bf16.msra.mxu0 %v1124
      %1146 = vmatpush.bf16.msra.mxu0 %v1123
      %1147 = vmatmul.bf16.gmra.mxu0 %v1083
      %v1148 = vpop.f32.mrf.mxu0
      %v1149 = vadd.f32 0.0, %v1148
      %v1150 = vpop.f32.mrf.mxu0
      %v1151 = vadd.f32 0.0, %v1150
      %1152 = vmatmul.bf16.gmra.mxu0 %v1084
      %v1153 = vpop.f32.mrf.mxu0
      %v1154 = vadd.f32 0.0, %v1153
      %v1155 = vpop.f32.mrf.mxu0
      %v1156 = vadd.f32 0.0, %v1155
      %1157 = vmatmul.bf16.gmra.mxu0 %v1085
      %v1158 = vpop.f32.mrf.mxu0
      %v1159 = vadd.f32 0.0, %v1158
      %v1160 = vpop.f32.mrf.mxu0
      %v1161 = vadd.f32 0.0, %v1160
      %1162 = vmatmul.bf16.gmra.mxu0 %v1086
      %v1163 = vpop.f32.mrf.mxu0
      %v1164 = vadd.f32 0.0, %v1163
      %v1165 = vpop.f32.mrf.mxu0
      %v1166 = vadd.f32 0.0, %v1165
      %1167 = vdwg.mxu0
      %v1168 = vadd.f32 %v1034, %v1149
      %v1169 = vadd.f32 %v1035, %v1151
      %v1170 = vadd.f32 %v1036, %v1154
      %v1171 = vadd.f32 %v1037, %v1156
      %v1172 = vadd.f32 %v1038, %v1159
      %v1173 = vadd.f32 %v1039, %v1161
      %v1174 = vadd.f32 %v1040, %v1164
      %v1175 = vadd.f32 %v1041, %v1166
      %v1176 = vld [vmem:[%s315] sm:$0xf]
      %v1177 = vld [vmem:[%s315 + $0x4] sm:$0x1]
      %v1178 = vld [vmem:[%s315 + $0x8] sm:$0xf]
      %v1179 = vld [vmem:[%s315 + $0xc] sm:$0x1]
      %v1180 = vld [vmem:[%s315 + $0x10] sm:$0xf]
      %v1181 = vld [vmem:[%s315 + $0x14] sm:$0x1]
      %v1182 = vld [vmem:[%s315 + $0x18] sm:$0xf]
      %v1183 = vld [vmem:[%s315 + $0x1c] sm:$0x1]
      %v1184 = vld [vmem:[%s315 + $0x20] sm:$0xf]
      %v1185 = vld [vmem:[%s315 + $0x24] sm:$0x1]
      %v1186 = vld [vmem:[%s315 + $0x28] sm:$0xf]
      %v1187 = vld [vmem:[%s315 + $0x2c] sm:$0x1]
      %v1188 = vld [vmem:[%s315 + $0x30] sm:$0xf]
      %v1189 = vld [vmem:[%s315 + $0x34] sm:$0x1]
      %v1190 = vld [vmem:[%s315 + $0x38] sm:$0xf]
      %v1191 = vld [vmem:[%s315 + $0x3c] sm:$0x1]
      %v1193 = vshrl.u32 %v1176, 16
      %v1195 = vrot.slane %v1193, 4
      %v1196 = vshll.u32 %v1176, 16
      %v1198 = vrot.slane %v1196, 5
      %v1199 = vor.u32 %v1195, %v1198
      %v1200 = vrot.slane %v1199, 4
      %v1202 = vshll.u32 %v1177, 16
      %v1204 = vrot.slane %v1202, 5
      %v1205 = vsel %vm541, %v1200, %v1204
      %v1207 = vshrl.u32 %v1178, 16
      %v1209 = vrot.slane %v1207, 4
      %v1210 = vshll.u32 %v1178, 16
      %v1212 = vrot.slane %v1210, 5
      %v1213 = vor.u32 %v1209, %v1212
      %v1214 = vrot.slane %v1213, 4
      %v1216 = vshll.u32 %v1179, 16
      %v1218 = vrot.slane %v1216, 5
      %v1219 = vsel %vm541, %v1214, %v1218
      %v1221 = vshrl.u32 %v1180, 16
      %v1223 = vrot.slane %v1221, 4
      %v1224 = vshll.u32 %v1180, 16
      %v1226 = vrot.slane %v1224, 5
      %v1227 = vor.u32 %v1223, %v1226
      %v1228 = vrot.slane %v1227, 4
      %v1230 = vshll.u32 %v1181, 16
      %v1232 = vrot.slane %v1230, 5
      %v1233 = vsel %vm541, %v1228, %v1232
      %v1235 = vshrl.u32 %v1182, 16
      %v1237 = vrot.slane %v1235, 4
      %v1238 = vshll.u32 %v1182, 16
      %v1240 = vrot.slane %v1238, 5
      %v1241 = vor.u32 %v1237, %v1240
      %v1242 = vrot.slane %v1241, 4
      %v1244 = vshll.u32 %v1183, 16
      %v1246 = vrot.slane %v1244, 5
      %v1247 = vsel %vm541, %v1242, %v1246
      %v1249 = vshrl.u32 %v1184, 16
      %v1251 = vrot.slane %v1249, 4
      %v1252 = vshll.u32 %v1184, 16
      %v1254 = vrot.slane %v1252, 5
      %v1255 = vor.u32 %v1251, %v1254
      %v1256 = vrot.slane %v1255, 4
      %v1258 = vshll.u32 %v1185, 16
      %v1260 = vrot.slane %v1258, 5
      %v1261 = vsel %vm541, %v1256, %v1260
      %v1263 = vshrl.u32 %v1186, 16
      %v1265 = vrot.slane %v1263, 4
      %v1266 = vshll.u32 %v1186, 16
      %v1268 = vrot.slane %v1266, 5
      %v1269 = vor.u32 %v1265, %v1268
      %v1270 = vrot.slane %v1269, 4
      %v1272 = vshll.u32 %v1187, 16
      %v1274 = vrot.slane %v1272, 5
      %v1275 = vsel %vm541, %v1270, %v1274
      %v1277 = vshrl.u32 %v1188, 16
      %v1279 = vrot.slane %v1277, 4
      %v1280 = vshll.u32 %v1188, 16
      %v1282 = vrot.slane %v1280, 5
      %v1283 = vor.u32 %v1279, %v1282
      %v1284 = vrot.slane %v1283, 4
      %v1286 = vshll.u32 %v1189, 16
      %v1288 = vrot.slane %v1286, 5
      %v1289 = vsel %vm541, %v1284, %v1288
      %v1291 = vshrl.u32 %v1190, 16
      %v1293 = vrot.slane %v1291, 4
      %v1294 = vshll.u32 %v1190, 16
      %v1296 = vrot.slane %v1294, 5
      %v1297 = vor.u32 %v1293, %v1296
      %v1298 = vrot.slane %v1297, 4
      %v1300 = vshll.u32 %v1191, 16
      %v1302 = vrot.slane %v1300, 5
      %v1303 = vsel %vm541, %v1298, %v1302
      %s1304 = scalar_lea.vmem %s3, 256
      %v1305 = vld [vmem:[%s1304] sm:$0xf]
      %v1306 = vld [vmem:[%s1304 + $0x4] sm:$0xf]
      %v1307 = vld [vmem:[%s1304 + $0x8] sm:$0xf]
      %v1308 = vld [vmem:[%s1304 + $0xc] sm:$0xf]
      %v1309 = vld [vmem:[%s1304 + $0x10] sm:$0xf]
      %v1310 = vld [vmem:[%s1304 + $0x14] sm:$0xf]
      %v1311 = vld [vmem:[%s1304 + $0x18] sm:$0xf]
      %v1312 = vld [vmem:[%s1304 + $0x1c] sm:$0xf]
      %v1313 = vld [vmem:[%s1304 + $0x20] sm:$0xf]
      %v1314 = vld [vmem:[%s1304 + $0x24] sm:$0xf]
      %v1315 = vld [vmem:[%s1304 + $0x28] sm:$0xf]
      %v1316 = vld [vmem:[%s1304 + $0x2c] sm:$0xf]
      %v1317 = vld [vmem:[%s1304 + $0x30] sm:$0xf]
      %v1318 = vld [vmem:[%s1304 + $0x34] sm:$0xf]
      %v1319 = vld [vmem:[%s1304 + $0x38] sm:$0xf]
      %v1320 = vld [vmem:[%s1304 + $0x3c] sm:$0xf]
      %v1321 = vunpack.c.l.b16 %v1205
      %v1322 = vunpack.c.l.b16 %v1219
      %v1323 = vunpack.c.l.b16 %v1233
      %v1324 = vunpack.c.l.b16 %v1247
      %v1325 = vunpack.c.l.b16 %v1261
      %v1326 = vunpack.c.l.b16 %v1275
      %v1327 = vunpack.c.l.b16 %v1289
      %v1328 = vunpack.c.l.b16 %v1303
      %v1329 = vpack.c.b16 %v1322, %v1321
      %v1330 = vpack.c.b16 %v1324, %v1323
      %v1331 = vpack.c.b16 %v1326, %v1325
      %v1332 = vpack.c.b16 %v1328, %v1327
      %v1353 = vunpack.c.l.b16 %v1305
      %v1354 = vunpack.c.l.b16 %v1306
      %v1355 = vunpack.c.l.b16 %v1307
      %v1356 = vunpack.c.l.b16 %v1308
      %v1357 = vunpack.c.l.b16 %v1309
      %v1358 = vunpack.c.l.b16 %v1310
      %v1359 = vunpack.c.l.b16 %v1311
      %v1360 = vunpack.c.l.b16 %v1312
      %v1361 = vunpack.c.l.b16 %v1313
      %v1362 = vunpack.c.l.b16 %v1314
      %v1363 = vunpack.c.l.b16 %v1315
      %v1364 = vunpack.c.l.b16 %v1316
      %v1365 = vunpack.c.l.b16 %v1317
      %v1366 = vunpack.c.l.b16 %v1318
      %v1367 = vunpack.c.l.b16 %v1319
      %v1368 = vunpack.c.l.b16 %v1320
      %v1369 = vpack.c.b16 %v1354, %v1353
      %v1370 = vpack.c.b16 %v1356, %v1355
      %v1371 = vpack.c.b16 %v1358, %v1357
      %v1372 = vpack.c.b16 %v1360, %v1359
      %v1373 = vpack.c.b16 %v1362, %v1361
      %v1374 = vpack.c.b16 %v1364, %v1363
      %v1375 = vpack.c.b16 %v1366, %v1365
      %v1376 = vpack.c.b16 %v1368, %v1367
      %1385 = vmatpush.bf16.msra.mxu0 %v1376
      %1386 = vmatpush.bf16.msra.mxu0 %v1375
      %1387 = vmatpush.bf16.msra.mxu0 %v1374
      %1388 = vmatpush.bf16.msra.mxu0 %v1373
      %1389 = vmatpush.bf16.msra.mxu0 %v1372
      %1390 = vmatpush.bf16.msra.mxu0 %v1371
      %1391 = vmatpush.bf16.msra.mxu0 %v1370
      %1392 = vmatpush.bf16.msra.mxu0 %v1369
      %1393 = vmatmul.bf16.gmra.mxu0 %v1329
      %v1394 = vpop.f32.mrf.mxu0
      %v1395 = vadd.f32 0.0, %v1394
      %v1396 = vpop.f32.mrf.mxu0
      %v1397 = vadd.f32 0.0, %v1396
      %1398 = vmatmul.bf16.gmra.mxu0 %v1330
      %v1399 = vpop.f32.mrf.mxu0
      %v1400 = vadd.f32 0.0, %v1399
      %v1401 = vpop.f32.mrf.mxu0
      %v1402 = vadd.f32 0.0, %v1401
      %1403 = vmatmul.bf16.gmra.mxu0 %v1331
      %v1404 = vpop.f32.mrf.mxu0
      %v1405 = vadd.f32 0.0, %v1404
      %v1406 = vpop.f32.mrf.mxu0
      %v1407 = vadd.f32 0.0, %v1406
      %1408 = vmatmul.bf16.gmra.mxu0 %v1332
      %v1409 = vpop.f32.mrf.mxu0
      %v1410 = vadd.f32 0.0, %v1409
      %v1411 = vpop.f32.mrf.mxu0
      %v1412 = vadd.f32 0.0, %v1411
      %1413 = vdwg.mxu0
      %v1414 = vadd.f32 %v1168, %v1395
      %v1415 = vadd.f32 %v1169, %v1397
      %v1416 = vadd.f32 %v1170, %v1400
      %v1417 = vadd.f32 %v1171, %v1402
      %v1418 = vadd.f32 %v1172, %v1405
      %v1419 = vadd.f32 %v1173, %v1407
      %v1420 = vadd.f32 %v1174, %v1410
      %v1421 = vadd.f32 %v1175, %v1412
      %v1422 = vld [vmem:[%s315] sm:$0xe]
      %v1423 = vld [vmem:[%s315 + $0x8] sm:$0xe]
      %v1424 = vld [vmem:[%s315 + $0x10] sm:$0xe]
      %v1425 = vld [vmem:[%s315 + $0x18] sm:$0xe]
      %v1426 = vld [vmem:[%s315 + $0x20] sm:$0xe]
      %v1427 = vld [vmem:[%s315 + $0x28] sm:$0xe]
      %v1428 = vld [vmem:[%s315 + $0x30] sm:$0xe]
      %v1429 = vld [vmem:[%s315 + $0x38] sm:$0xe]
      %v1446 = vrot.slane %v1422, 5
      %v1447 = vrot.slane %v1446, 4
      %v1448 = vrot.slane %v1177, 5
      %v1449 = vsel %vm891, %v1447, %v1448
      %v1450 = vrot.slane %v1423, 5
      %v1451 = vrot.slane %v1450, 4
      %v1452 = vrot.slane %v1179, 5
      %v1453 = vsel %vm891, %v1451, %v1452
      %v1454 = vrot.slane %v1424, 5
      %v1455 = vrot.slane %v1454, 4
      %v1456 = vrot.slane %v1181, 5
      %v1457 = vsel %vm891, %v1455, %v1456
      %v1458 = vrot.slane %v1425, 5
      %v1459 = vrot.slane %v1458, 4
      %v1460 = vrot.slane %v1183, 5
      %v1461 = vsel %vm891, %v1459, %v1460
      %v1462 = vrot.slane %v1426, 5
      %v1463 = vrot.slane %v1462, 4
      %v1464 = vrot.slane %v1185, 5
      %v1465 = vsel %vm891, %v1463, %v1464
      %v1466 = vrot.slane %v1427, 5
      %v1467 = vrot.slane %v1466, 4
      %v1468 = vrot.slane %v1187, 5
      %v1469 = vsel %vm891, %v1467, %v1468
      %v1470 = vrot.slane %v1428, 5
      %v1471 = vrot.slane %v1470, 4
      %v1472 = vrot.slane %v1189, 5
      %v1473 = vsel %vm891, %v1471, %v1472
      %v1474 = vrot.slane %v1429, 5
      %v1475 = vrot.slane %v1474, 4
      %v1476 = vrot.slane %v1191, 5
      %v1477 = vsel %vm891, %v1475, %v1476
      %s1478 = scalar_lea.vmem %s3, 320
      %v1479 = vld [vmem:[%s1478] sm:$0xf]
      %v1480 = vld [vmem:[%s1478 + $0x4] sm:$0xf]
      %v1481 = vld [vmem:[%s1478 + $0x8] sm:$0xf]
      %v1482 = vld [vmem:[%s1478 + $0xc] sm:$0xf]
      %v1483 = vld [vmem:[%s1478 + $0x10] sm:$0xf]
      %v1484 = vld [vmem:[%s1478 + $0x14] sm:$0xf]
      %v1485 = vld [vmem:[%s1478 + $0x18] sm:$0xf]
      %v1486 = vld [vmem:[%s1478 + $0x1c] sm:$0xf]
      %v1487 = vld [vmem:[%s1478 + $0x20] sm:$0xf]
      %v1488 = vld [vmem:[%s1478 + $0x24] sm:$0xf]
      %v1489 = vld [vmem:[%s1478 + $0x28] sm:$0xf]
      %v1490 = vld [vmem:[%s1478 + $0x2c] sm:$0xf]
      %v1491 = vld [vmem:[%s1478 + $0x30] sm:$0xf]
      %v1492 = vld [vmem:[%s1478 + $0x34] sm:$0xf]
      %v1493 = vld [vmem:[%s1478 + $0x38] sm:$0xf]
      %v1494 = vld [vmem:[%s1478 + $0x3c] sm:$0xf]
      %v1495 = vunpack.c.l.b16 %v1449
      %v1496 = vunpack.c.l.b16 %v1453
      %v1497 = vunpack.c.l.b16 %v1457
      %v1498 = vunpack.c.l.b16 %v1461
      %v1499 = vunpack.c.l.b16 %v1465
      %v1500 = vunpack.c.l.b16 %v1469
      %v1501 = vunpack.c.l.b16 %v1473
      %v1502 = vunpack.c.l.b16 %v1477
      %v1503 = vpack.c.b16 %v1496, %v1495
      %v1504 = vpack.c.b16 %v1498, %v1497
      %v1505 = vpack.c.b16 %v1500, %v1499
      %v1506 = vpack.c.b16 %v1502, %v1501
      %v1527 = vunpack.c.l.b16 %v1479
      %v1528 = vunpack.c.l.b16 %v1480
      %v1529 = vunpack.c.l.b16 %v1481
      %v1530 = vunpack.c.l.b16 %v1482
      %v1531 = vunpack.c.l.b16 %v1483
      %v1532 = vunpack.c.l.b16 %v1484
      %v1533 = vunpack.c.l.b16 %v1485
      %v1534 = vunpack.c.l.b16 %v1486
      %v1535 = vunpack.c.l.b16 %v1487
      %v1536 = vunpack.c.l.b16 %v1488
      %v1537 = vunpack.c.l.b16 %v1489
      %v1538 = vunpack.c.l.b16 %v1490
      %v1539 = vunpack.c.l.b16 %v1491
      %v1540 = vunpack.c.l.b16 %v1492
      %v1541 = vunpack.c.l.b16 %v1493
      %v1542 = vunpack.c.l.b16 %v1494
      %v1543 = vpack.c.b16 %v1528, %v1527
      %v1544 = vpack.c.b16 %v1530, %v1529
      %v1545 = vpack.c.b16 %v1532, %v1531
      %v1546 = vpack.c.b16 %v1534, %v1533
      %v1547 = vpack.c.b16 %v1536, %v1535
      %v1548 = vpack.c.b16 %v1538, %v1537
      %v1549 = vpack.c.b16 %v1540, %v1539
      %v1550 = vpack.c.b16 %v1542, %v1541
      %1559 = vmatpush.bf16.msra.mxu0 %v1550
      %1560 = vmatpush.bf16.msra.mxu0 %v1549
      %1561 = vmatpush.bf16.msra.mxu0 %v1548
      %1562 = vmatpush.bf16.msra.mxu0 %v1547
      %1563 = vmatpush.bf16.msra.mxu0 %v1546
      %1564 = vmatpush.bf16.msra.mxu0 %v1545
      %1565 = vmatpush.bf16.msra.mxu0 %v1544
      %1566 = vmatpush.bf16.msra.mxu0 %v1543
      %1567 = vmatmul.bf16.gmra.mxu0 %v1503
      %v1568 = vpop.f32.mrf.mxu0
      %v1569 = vadd.f32 0.0, %v1568
      %v1570 = vpop.f32.mrf.mxu0
      %v1571 = vadd.f32 0.0, %v1570
      %1572 = vmatmul.bf16.gmra.mxu0 %v1504
      %v1573 = vpop.f32.mrf.mxu0
      %v1574 = vadd.f32 0.0, %v1573
      %v1575 = vpop.f32.mrf.mxu0
      %v1576 = vadd.f32 0.0, %v1575
      %1577 = vmatmul.bf16.gmra.mxu0 %v1505
      %v1578 = vpop.f32.mrf.mxu0
      %v1579 = vadd.f32 0.0, %v1578
      %v1580 = vpop.f32.mrf.mxu0
      %v1581 = vadd.f32 0.0, %v1580
      %1582 = vmatmul.bf16.gmra.mxu0 %v1506
      %v1583 = vpop.f32.mrf.mxu0
      %v1584 = vadd.f32 0.0, %v1583
      %v1585 = vpop.f32.mrf.mxu0
      %v1586 = vadd.f32 0.0, %v1585
      %1587 = vdwg.mxu0
      %v1588 = vadd.f32 %v1414, %v1569
      %v1589 = vadd.f32 %v1415, %v1571
      %v1590 = vadd.f32 %v1416, %v1574
      %v1591 = vadd.f32 %v1417, %v1576
      %v1592 = vadd.f32 %v1418, %v1579
      %v1593 = vadd.f32 %v1419, %v1581
      %v1594 = vadd.f32 %v1420, %v1584
      %v1595 = vadd.f32 %v1421, %v1586
      %s1596 = scalar_lea.vmem [#allocation2], 16
      %v1597 = vld [vmem:[%s1596] sm:$0xf]
      %v1598 = vld [vmem:[%s1596 + $0x8] sm:$0xf]
      %v1599 = vld [vmem:[%s1596 + $0x10] sm:$0xf]
      %v1600 = vld [vmem:[%s1596 + $0x18] sm:$0xf]
      %v1601 = vld [vmem:[%s1596 + $0x20] sm:$0xf]
      %v1602 = vld [vmem:[%s1596 + $0x28] sm:$0xf]
      %v1603 = vld [vmem:[%s1596 + $0x30] sm:$0xf]
      %v1604 = vld [vmem:[%s1596 + $0x38] sm:$0xf]
      %s1605 = scalar_lea.vmem %s3, 384
      %v1606 = vld [vmem:[%s1605] sm:$0xf]
      %v1607 = vld [vmem:[%s1605 + $0x4] sm:$0xf]
      %v1608 = vld [vmem:[%s1605 + $0x8] sm:$0xf]
      %v1609 = vld [vmem:[%s1605 + $0xc] sm:$0xf]
      %v1610 = vld [vmem:[%s1605 + $0x10] sm:$0xf]
      %v1611 = vld [vmem:[%s1605 + $0x14] sm:$0xf]
      %v1612 = vld [vmem:[%s1605 + $0x18] sm:$0xf]
      %v1613 = vld [vmem:[%s1605 + $0x1c] sm:$0xf]
      %v1614 = vld [vmem:[%s1605 + $0x20] sm:$0xf]
      %v1615 = vld [vmem:[%s1605 + $0x24] sm:$0xf]
      %v1616 = vld [vmem:[%s1605 + $0x28] sm:$0xf]
      %v1617 = vld [vmem:[%s1605 + $0x2c] sm:$0xf]
      %v1618 = vld [vmem:[%s1605 + $0x30] sm:$0xf]
      %v1619 = vld [vmem:[%s1605 + $0x34] sm:$0xf]
      %v1620 = vld [vmem:[%s1605 + $0x38] sm:$0xf]
      %v1621 = vld [vmem:[%s1605 + $0x3c] sm:$0xf]
      %v1630 = vunpack.c.l.b16 %v1597
      %v1631 = vunpack.c.l.b16 %v1598
      %v1632 = vunpack.c.l.b16 %v1599
      %v1633 = vunpack.c.l.b16 %v1600
      %v1634 = vunpack.c.l.b16 %v1601
      %v1635 = vunpack.c.l.b16 %v1602
      %v1636 = vunpack.c.l.b16 %v1603
      %v1637 = vunpack.c.l.b16 %v1604
      %v1638 = vpack.c.b16 %v1631, %v1630
      %v1639 = vpack.c.b16 %v1633, %v1632
      %v1640 = vpack.c.b16 %v1635, %v1634
      %v1641 = vpack.c.b16 %v1637, %v1636
      %v1662 = vunpack.c.l.b16 %v1606
      %v1663 = vunpack.c.l.b16 %v1607
      %v1664 = vunpack.c.l.b16 %v1608
      %v1665 = vunpack.c.l.b16 %v1609
      %v1666 = vunpack.c.l.b16 %v1610
      %v1667 = vunpack.c.l.b16 %v1611
      %v1668 = vunpack.c.l.b16 %v1612
      %v1669 = vunpack.c.l.b16 %v1613
      %v1670 = vunpack.c.l.b16 %v1614
      %v1671 = vunpack.c.l.b16 %v1615
      %v1672 = vunpack.c.l.b16 %v1616
      %v1673 = vunpack.c.l.b16 %v1617
      %v1674 = vunpack.c.l.b16 %v1618
      %v1675 = vunpack.c.l.b16 %v1619
      %v1676 = vunpack.c.l.b16 %v1620
      %v1677 = vunpack.c.l.b16 %v1621
      %v1678 = vpack.c.b16 %v1663, %v1662
      %v1679 = vpack.c.b16 %v1665, %v1664
      %v1680 = vpack.c.b16 %v1667, %v1666
      %v1681 = vpack.c.b16 %v1669, %v1668
      %v1682 = vpack.c.b16 %v1671, %v1670
      %v1683 = vpack.c.b16 %v1673, %v1672
      %v1684 = vpack.c.b16 %v1675, %v1674
      %v1685 = vpack.c.b16 %v1677, %v1676
      %1694 = vmatpush.bf16.msra.mxu0 %v1685
      %1695 = vmatpush.bf16.msra.mxu0 %v1684
      %1696 = vmatpush.bf16.msra.mxu0 %v1683
      %1697 = vmatpush.bf16.msra.mxu0 %v1682
      %1698 = vmatpush.bf16.msra.mxu0 %v1681
      %1699 = vmatpush.bf16.msra.mxu0 %v1680
      %1700 = vmatpush.bf16.msra.mxu0 %v1679
      %1701 = vmatpush.bf16.msra.mxu0 %v1678
      %1702 = vmatmul.bf16.gmra.mxu0 %v1638
      %v1703 = vpop.f32.mrf.mxu0
      %v1704 = vadd.f32 0.0, %v1703
      %v1705 = vpop.f32.mrf.mxu0
      %v1706 = vadd.f32 0.0, %v1705
      %1707 = vmatmul.bf16.gmra.mxu0 %v1639
      %v1708 = vpop.f32.mrf.mxu0
      %v1709 = vadd.f32 0.0, %v1708
      %v1710 = vpop.f32.mrf.mxu0
      %v1711 = vadd.f32 0.0, %v1710
      %1712 = vmatmul.bf16.gmra.mxu0 %v1640
      %v1713 = vpop.f32.mrf.mxu0
      %v1714 = vadd.f32 0.0, %v1713
      %v1715 = vpop.f32.mrf.mxu0
      %v1716 = vadd.f32 0.0, %v1715
      %1717 = vmatmul.bf16.gmra.mxu0 %v1641
      %v1718 = vpop.f32.mrf.mxu0
      %v1719 = vadd.f32 0.0, %v1718
      %v1720 = vpop.f32.mrf.mxu0
      %v1721 = vadd.f32 0.0, %v1720
      %1722 = vdwg.mxu0
      %v1723 = vadd.f32 %v1588, %v1704
      %v1724 = vadd.f32 %v1589, %v1706
      %v1725 = vadd.f32 %v1590, %v1709
      %v1726 = vadd.f32 %v1591, %v1711
      %v1727 = vadd.f32 %v1592, %v1714
      %v1728 = vadd.f32 %v1593, %v1716
      %v1729 = vadd.f32 %v1594, %v1719
      %v1730 = vadd.f32 %v1595, %v1721
      %v1731 = vld [vmem:[%s1596] sm:$0xf]
      %v1732 = vld [vmem:[%s1596 + $0x4] sm:$0x1]
      %v1733 = vld [vmem:[%s1596 + $0x8] sm:$0xf]
      %v1734 = vld [vmem:[%s1596 + $0xc] sm:$0x1]
      %v1735 = vld [vmem:[%s1596 + $0x10] sm:$0xf]
      %v1736 = vld [vmem:[%s1596 + $0x14] sm:$0x1]
      %v1737 = vld [vmem:[%s1596 + $0x18] sm:$0xf]
      %v1738 = vld [vmem:[%s1596 + $0x1c] sm:$0x1]
      %v1739 = vld [vmem:[%s1596 + $0x20] sm:$0xf]
      %v1740 = vld [vmem:[%s1596 + $0x24] sm:$0x1]
      %v1741 = vld [vmem:[%s1596 + $0x28] sm:$0xf]
      %v1742 = vld [vmem:[%s1596 + $0x2c] sm:$0x1]
      %v1743 = vld [vmem:[%s1596 + $0x30] sm:$0xf]
      %v1744 = vld [vmem:[%s1596 + $0x34] sm:$0x1]
      %v1745 = vld [vmem:[%s1596 + $0x38] sm:$0xf]
      %v1746 = vld [vmem:[%s1596 + $0x3c] sm:$0x1]
      %v1748 = vshrl.u32 %v1731, 16
      %v1750 = vrot.slane %v1748, 4
      %v1751 = vshll.u32 %v1731, 16
      %v1753 = vrot.slane %v1751, 5
      %v1754 = vor.u32 %v1750, %v1753
      %v1755 = vrot.slane %v1754, 4
      %v1757 = vshll.u32 %v1732, 16
      %v1759 = vrot.slane %v1757, 5
      %v1760 = vsel %vm541, %v1755, %v1759
      %v1762 = vshrl.u32 %v1733, 16
      %v1764 = vrot.slane %v1762, 4
      %v1765 = vshll.u32 %v1733, 16
      %v1767 = vrot.slane %v1765, 5
      %v1768 = vor.u32 %v1764, %v1767
      %v1769 = vrot.slane %v1768, 4
      %v1771 = vshll.u32 %v1734, 16
      %v1773 = vrot.slane %v1771, 5
      %v1774 = vsel %vm541, %v1769, %v1773
      %v1776 = vshrl.u32 %v1735, 16
      %v1778 = vrot.slane %v1776, 4
      %v1779 = vshll.u32 %v1735, 16
      %v1781 = vrot.slane %v1779, 5
      %v1782 = vor.u32 %v1778, %v1781
      %v1783 = vrot.slane %v1782, 4
      %v1785 = vshll.u32 %v1736, 16
      %v1787 = vrot.slane %v1785, 5
      %v1788 = vsel %vm541, %v1783, %v1787
      %v1790 = vshrl.u32 %v1737, 16
      %v1792 = vrot.slane %v1790, 4
      %v1793 = vshll.u32 %v1737, 16
      %v1795 = vrot.slane %v1793, 5
      %v1796 = vor.u32 %v1792, %v1795
      %v1797 = vrot.slane %v1796, 4
      %v1799 = vshll.u32 %v1738, 16
      %v1801 = vrot.slane %v1799, 5
      %v1802 = vsel %vm541, %v1797, %v1801
      %v1804 = vshrl.u32 %v1739, 16
      %v1806 = vrot.slane %v1804, 4
      %v1807 = vshll.u32 %v1739, 16
      %v1809 = vrot.slane %v1807, 5
      %v1810 = vor.u32 %v1806, %v1809
      %v1811 = vrot.slane %v1810, 4
      %v1813 = vshll.u32 %v1740, 16
      %v1815 = vrot.slane %v1813, 5
      %v1816 = vsel %vm541, %v1811, %v1815
      %v1818 = vshrl.u32 %v1741, 16
      %v1820 = vrot.slane %v1818, 4
      %v1821 = vshll.u32 %v1741, 16
      %v1823 = vrot.slane %v1821, 5
      %v1824 = vor.u32 %v1820, %v1823
      %v1825 = vrot.slane %v1824, 4
      %v1827 = vshll.u32 %v1742, 16
      %v1829 = vrot.slane %v1827, 5
      %v1830 = vsel %vm541, %v1825, %v1829
      %v1832 = vshrl.u32 %v1743, 16
      %v1834 = vrot.slane %v1832, 4
      %v1835 = vshll.u32 %v1743, 16
      %v1837 = vrot.slane %v1835, 5
      %v1838 = vor.u32 %v1834, %v1837
      %v1839 = vrot.slane %v1838, 4
      %v1841 = vshll.u32 %v1744, 16
      %v1843 = vrot.slane %v1841, 5
      %v1844 = vsel %vm541, %v1839, %v1843
      %v1846 = vshrl.u32 %v1745, 16
      %v1848 = vrot.slane %v1846, 4
      %v1849 = vshll.u32 %v1745, 16
      %v1851 = vrot.slane %v1849, 5
      %v1852 = vor.u32 %v1848, %v1851
      %v1853 = vrot.slane %v1852, 4
      %v1855 = vshll.u32 %v1746, 16
      %v1857 = vrot.slane %v1855, 5
      %v1858 = vsel %vm541, %v1853, %v1857
      %s1859 = scalar_lea.vmem %s3, 448
      %v1860 = vld [vmem:[%s1859] sm:$0xf]
      %v1861 = vld [vmem:[%s1859 + $0x4] sm:$0xf]
      %v1862 = vld [vmem:[%s1859 + $0x8] sm:$0xf]
      %v1863 = vld [vmem:[%s1859 + $0xc] sm:$0xf]
      %v1864 = vld [vmem:[%s1859 + $0x10] sm:$0xf]
      %v1865 = vld [vmem:[%s1859 + $0x14] sm:$0xf]
      %v1866 = vld [vmem:[%s1859 + $0x18] sm:$0xf]
      %v1867 = vld [vmem:[%s1859 + $0x1c] sm:$0xf]
      %v1868 = vld [vmem:[%s1859 + $0x20] sm:$0xf]
      %v1869 = vld [vmem:[%s1859 + $0x24] sm:$0xf]
      %v1870 = vld [vmem:[%s1859 + $0x28] sm:$0xf]
      %v1871 = vld [vmem:[%s1859 + $0x2c] sm:$0xf]
      %v1872 = vld [vmem:[%s1859 + $0x30] sm:$0xf]
      %v1873 = vld [vmem:[%s1859 + $0x34] sm:$0xf]
      %v1874 = vld [vmem:[%s1859 + $0x38] sm:$0xf]
      %v1875 = vld [vmem:[%s1859 + $0x3c] sm:$0xf]
      %v1876 = vunpack.c.l.b16 %v1760
      %v1877 = vunpack.c.l.b16 %v1774
      %v1878 = vunpack.c.l.b16 %v1788
      %v1879 = vunpack.c.l.b16 %v1802
      %v1880 = vunpack.c.l.b16 %v1816
      %v1881 = vunpack.c.l.b16 %v1830
      %v1882 = vunpack.c.l.b16 %v1844
      %v1883 = vunpack.c.l.b16 %v1858
      %v1884 = vpack.c.b16 %v1877, %v1876
      %v1885 = vpack.c.b16 %v1879, %v1878
      %v1886 = vpack.c.b16 %v1881, %v1880
      %v1887 = vpack.c.b16 %v1883, %v1882
      %v1908 = vunpack.c.l.b16 %v1860
      %v1909 = vunpack.c.l.b16 %v1861
      %v1910 = vunpack.c.l.b16 %v1862
      %v1911 = vunpack.c.l.b16 %v1863
      %v1912 = vunpack.c.l.b16 %v1864
      %v1913 = vunpack.c.l.b16 %v1865
      %v1914 = vunpack.c.l.b16 %v1866
      %v1915 = vunpack.c.l.b16 %v1867
      %v1916 = vunpack.c.l.b16 %v1868
      %v1917 = vunpack.c.l.b16 %v1869
      %v1918 = vunpack.c.l.b16 %v1870
      %v1919 = vunpack.c.l.b16 %v1871
      %v1920 = vunpack.c.l.b16 %v1872
      %v1921 = vunpack.c.l.b16 %v1873
      %v1922 = vunpack.c.l.b16 %v1874
      %v1923 = vunpack.c.l.b16 %v1875
      %v1924 = vpack.c.b16 %v1909, %v1908
      %v1925 = vpack.c.b16 %v1911, %v1910
      %v1926 = vpack.c.b16 %v1913, %v1912
      %v1927 = vpack.c.b16 %v1915, %v1914
      %v1928 = vpack.c.b16 %v1917, %v1916
      %v1929 = vpack.c.b16 %v1919, %v1918
      %v1930 = vpack.c.b16 %v1921, %v1920
      %v1931 = vpack.c.b16 %v1923, %v1922
      %1940 = vmatpush.bf16.msra.mxu0 %v1931
      %1941 = vmatpush.bf16.msra.mxu0 %v1930
      %1942 = vmatpush.bf16.msra.mxu0 %v1929
      %1943 = vmatpush.bf16.msra.mxu0 %v1928
      %1944 = vmatpush.bf16.msra.mxu0 %v1927
      %1945 = vmatpush.bf16.msra.mxu0 %v1926
      %1946 = vmatpush.bf16.msra.mxu0 %v1925
      %1947 = vmatpush.bf16.msra.mxu0 %v1924
      %1948 = vmatmul.bf16.gmra.mxu0 %v1884
      %v1949 = vpop.f32.mrf.mxu0
      %v1950 = vadd.f32 0.0, %v1949
      %v1951 = vpop.f32.mrf.mxu0
      %v1952 = vadd.f32 0.0, %v1951
      %1953 = vmatmul.bf16.gmra.mxu0 %v1885
      %v1954 = vpop.f32.mrf.mxu0
      %v1955 = vadd.f32 0.0, %v1954
      %v1956 = vpop.f32.mrf.mxu0
      %v1957 = vadd.f32 0.0, %v1956
      %1958 = vmatmul.bf16.gmra.mxu0 %v1886
      %v1959 = vpop.f32.mrf.mxu0
      %v1960 = vadd.f32 0.0, %v1959
      %v1961 = vpop.f32.mrf.mxu0
      %v1962 = vadd.f32 0.0, %v1961
      %1963 = vmatmul.bf16.gmra.mxu0 %v1887
      %v1964 = vpop.f32.mrf.mxu0
      %v1965 = vadd.f32 0.0, %v1964
      %v1966 = vpop.f32.mrf.mxu0
      %v1967 = vadd.f32 0.0, %v1966
      %1968 = vdwg.mxu0
      %v1969 = vadd.f32 %v1723, %v1950
      %v1970 = vadd.f32 %v1724, %v1952
      %v1971 = vadd.f32 %v1725, %v1955
      %v1972 = vadd.f32 %v1726, %v1957
      %v1973 = vadd.f32 %v1727, %v1960
      %v1974 = vadd.f32 %v1728, %v1962
      %v1975 = vadd.f32 %v1729, %v1965
      %v1976 = vadd.f32 %v1730, %v1967
      %v1977 = vld [vmem:[%s1596] sm:$0xe]
      %v1978 = vld [vmem:[%s1596 + $0x8] sm:$0xe]
      %v1979 = vld [vmem:[%s1596 + $0x10] sm:$0xe]
      %v1980 = vld [vmem:[%s1596 + $0x18] sm:$0xe]
      %v1981 = vld [vmem:[%s1596 + $0x20] sm:$0xe]
      %v1982 = vld [vmem:[%s1596 + $0x28] sm:$0xe]
      %v1983 = vld [vmem:[%s1596 + $0x30] sm:$0xe]
      %v1984 = vld [vmem:[%s1596 + $0x38] sm:$0xe]
      %v2001 = vrot.slane %v1977, 5
      %v2002 = vrot.slane %v2001, 4
      %v2003 = vrot.slane %v1732, 5
      %v2004 = vsel %vm891, %v2002, %v2003
      %v2005 = vrot.slane %v1978, 5
      %v2006 = vrot.slane %v2005, 4
      %v2007 = vrot.slane %v1734, 5
      %v2008 = vsel %vm891, %v2006, %v2007
      %v2009 = vrot.slane %v1979, 5
      %v2010 = vrot.slane %v2009, 4
      %v2011 = vrot.slane %v1736, 5
      %v2012 = vsel %vm891, %v2010, %v2011
      %v2013 = vrot.slane %v1980, 5
      %v2014 = vrot.slane %v2013, 4
      %v2015 = vrot.slane %v1738, 5
      %v2016 = vsel %vm891, %v2014, %v2015
      %v2017 = vrot.slane %v1981, 5
      %v2018 = vrot.slane %v2017, 4
      %v2019 = vrot.slane %v1740, 5
      %v2020 = vsel %vm891, %v2018, %v2019
      %v2021 = vrot.slane %v1982, 5
      %v2022 = vrot.slane %v2021, 4
      %v2023 = vrot.slane %v1742, 5
      %v2024 = vsel %vm891, %v2022, %v2023
      %v2025 = vrot.slane %v1983, 5
      %v2026 = vrot.slane %v2025, 4
      %v2027 = vrot.slane %v1744, 5
      %v2028 = vsel %vm891, %v2026, %v2027
      %v2029 = vrot.slane %v1984, 5
      %v2030 = vrot.slane %v2029, 4
      %v2031 = vrot.slane %v1746, 5
      %v2032 = vsel %vm891, %v2030, %v2031
      %s2033 = scalar_lea.vmem %s3, 512
      %v2034 = vld [vmem:[%s2033] sm:$0xf]
      %v2035 = vld [vmem:[%s2033 + $0x4] sm:$0xf]
      %v2036 = vld [vmem:[%s2033 + $0x8] sm:$0xf]
      %v2037 = vld [vmem:[%s2033 + $0xc] sm:$0xf]
      %v2038 = vld [vmem:[%s2033 + $0x10] sm:$0xf]
      %v2039 = vld [vmem:[%s2033 + $0x14] sm:$0xf]
      %v2040 = vld [vmem:[%s2033 + $0x18] sm:$0xf]
      %v2041 = vld [vmem:[%s2033 + $0x1c] sm:$0xf]
      %v2042 = vld [vmem:[%s2033 + $0x20] sm:$0xf]
      %v2043 = vld [vmem:[%s2033 + $0x24] sm:$0xf]
      %v2044 = vld [vmem:[%s2033 + $0x28] sm:$0xf]
      %v2045 = vld [vmem:[%s2033 + $0x2c] sm:$0xf]
      %v2046 = vld [vmem:[%s2033 + $0x30] sm:$0xf]
      %v2047 = vld [vmem:[%s2033 + $0x34] sm:$0xf]
      %v2048 = vld [vmem:[%s2033 + $0x38] sm:$0xf]
      %v2049 = vld [vmem:[%s2033 + $0x3c] sm:$0xf]
      %v2050 = vunpack.c.l.b16 %v2004
      %v2051 = vunpack.c.l.b16 %v2008
      %v2052 = vunpack.c.l.b16 %v2012
      %v2053 = vunpack.c.l.b16 %v2016
      %v2054 = vunpack.c.l.b16 %v2020
      %v2055 = vunpack.c.l.b16 %v2024
      %v2056 = vunpack.c.l.b16 %v2028
      %v2057 = vunpack.c.l.b16 %v2032
      %v2058 = vpack.c.b16 %v2051, %v2050
      %v2059 = vpack.c.b16 %v2053, %v2052
      %v2060 = vpack.c.b16 %v2055, %v2054
      %v2061 = vpack.c.b16 %v2057, %v2056
      %v2082 = vunpack.c.l.b16 %v2034
      %v2083 = vunpack.c.l.b16 %v2035
      %v2084 = vunpack.c.l.b16 %v2036
      %v2085 = vunpack.c.l.b16 %v2037
      %v2086 = vunpack.c.l.b16 %v2038
      %v2087 = vunpack.c.l.b16 %v2039
      %v2088 = vunpack.c.l.b16 %v2040
      %v2089 = vunpack.c.l.b16 %v2041
      %v2090 = vunpack.c.l.b16 %v2042
      %v2091 = vunpack.c.l.b16 %v2043
      %v2092 = vunpack.c.l.b16 %v2044
      %v2093 = vunpack.c.l.b16 %v2045
      %v2094 = vunpack.c.l.b16 %v2046
      %v2095 = vunpack.c.l.b16 %v2047
      %v2096 = vunpack.c.l.b16 %v2048
      %v2097 = vunpack.c.l.b16 %v2049
      %v2098 = vpack.c.b16 %v2083, %v2082
      %v2099 = vpack.c.b16 %v2085, %v2084
      %v2100 = vpack.c.b16 %v2087, %v2086
      %v2101 = vpack.c.b16 %v2089, %v2088
      %v2102 = vpack.c.b16 %v2091, %v2090
      %v2103 = vpack.c.b16 %v2093, %v2092
      %v2104 = vpack.c.b16 %v2095, %v2094
      %v2105 = vpack.c.b16 %v2097, %v2096
      %2114 = vmatpush.bf16.msra.mxu0 %v2105
      %2115 = vmatpush.bf16.msra.mxu0 %v2104
      %2116 = vmatpush.bf16.msra.mxu0 %v2103
      %2117 = vmatpush.bf16.msra.mxu0 %v2102
      %2118 = vmatpush.bf16.msra.mxu0 %v2101
      %2119 = vmatpush.bf16.msra.mxu0 %v2100
      %2120 = vmatpush.bf16.msra.mxu0 %v2099
      %2121 = vmatpush.bf16.msra.mxu0 %v2098
      %2122 = vmatmul.bf16.gmra.mxu0 %v2058
      %v2123 = vpop.f32.mrf.mxu0
      %v2124 = vadd.f32 0.0, %v2123
      %v2125 = vpop.f32.mrf.mxu0
      %v2126 = vadd.f32 0.0, %v2125
      %2127 = vmatmul.bf16.gmra.mxu0 %v2059
      %v2128 = vpop.f32.mrf.mxu0
      %v2129 = vadd.f32 0.0, %v2128
      %v2130 = vpop.f32.mrf.mxu0
      %v2131 = vadd.f32 0.0, %v2130
      %2132 = vmatmul.bf16.gmra.mxu0 %v2060
      %v2133 = vpop.f32.mrf.mxu0
      %v2134 = vadd.f32 0.0, %v2133
      %v2135 = vpop.f32.mrf.mxu0
      %v2136 = vadd.f32 0.0, %v2135
      %2137 = vmatmul.bf16.gmra.mxu0 %v2061
      %v2138 = vpop.f32.mrf.mxu0
      %v2139 = vadd.f32 0.0, %v2138
      %v2140 = vpop.f32.mrf.mxu0
      %v2141 = vadd.f32 0.0, %v2140
      %2142 = vdwg.mxu0
      %v2143 = vadd.f32 %v1969, %v2124
      %v2144 = vadd.f32 %v1970, %v2126
      %v2145 = vadd.f32 %v1971, %v2129
      %v2146 = vadd.f32 %v1972, %v2131
      %v2147 = vadd.f32 %v1973, %v2134
      %v2148 = vadd.f32 %v1974, %v2136
      %v2149 = vadd.f32 %v1975, %v2139
      %v2150 = vadd.f32 %v1976, %v2141
      %2151 = vst [vmem:[%s262] sm:$0xff] %v2143
      %2152 = vst [vmem:[%s262 + $0x8] sm:$0xff] %v2144
      %2153 = vst [vmem:[%s262 + $0x10] sm:$0xff] %v2145
      %2154 = vst [vmem:[%s262 + $0x18] sm:$0xff] %v2146
      %2155 = vst [vmem:[%s262 + $0x20] sm:$0xff] %v2147
      %2156 = vst [vmem:[%s262 + $0x28] sm:$0xff] %v2148
      %2157 = vst [vmem:[%s262 + $0x30] sm:$0xff] %v2149
      %2158 = vst [vmem:[%s262 + $0x38] sm:$0xff] %v2150
      %v2159 = vadd.f32 %v2143, %v2144
      %v2160 = vadd.f32 %v2159, %v2145
      %v2161 = vadd.f32 %v2160, %v2146
      %v2162 = vadd.f32 %v2161, %v2147
      %v2163 = vadd.f32 %v2162, %v2148
      %v2164 = vadd.f32 %v2163, %v2149
      %v2165 = vadd.f32 %v2164, %v2150
      %v2166 = vrot.slane %v2165, 4
      %v2167 = vadd.f32 %v2165, %v2166
      %v2168 = vrot.slane %v2167, 2
      %v2169 = vadd.f32 %v2167, %v2168
      %v2170 = vrot.slane %v2169, 1
      %v2171 = vadd.f32 %v2169, %v2170
      %v2172 = vadd.f32 %v2171, 0.0
      %v2173 = vmul.f32 %v2143, %v2143
      %v2174 = vmul.f32 %v2144, %v2144
      %v2175 = vmul.f32 %v2145, %v2145
      %v2176 = vmul.f32 %v2146, %v2146
      %v2177 = vmul.f32 %v2147, %v2147
      %v2178 = vmul.f32 %v2148, %v2148
      %v2179 = vmul.f32 %v2149, %v2149
      %v2180 = vmul.f32 %v2150, %v2150
      %v2181 = vadd.f32 %v2173, %v2174
      %v2182 = vadd.f32 %v2181, %v2175
      %v2183 = vadd.f32 %v2182, %v2176
      %v2184 = vadd.f32 %v2183, %v2177
      %v2185 = vadd.f32 %v2184, %v2178
      %v2186 = vadd.f32 %v2185, %v2179
      %v2187 = vadd.f32 %v2186, %v2180
      %v2188 = vrot.slane %v2187, 4
      %v2189 = vadd.f32 %v2187, %v2188
      %v2190 = vrot.slane %v2189, 2
      %v2191 = vadd.f32 %v2189, %v2190
      %v2192 = vrot.slane %v2191, 1
      %v2193 = vadd.f32 %v2191, %v2192
      %v2194 = vadd.f32 %v2193, 0.0
      %2195 = vst [vmem:[%s265] sm:$0x1] %v2172
      %2196 = vst [vmem:[%s268] sm:$0x1] %v2194
      %p2197 = scmp.lt.s32.totalorder %s18, 1
      %s2198 = scalar_select %p2197, %s18, 1
      %s2199 = smul.addr %s2198, 8
      %s2200 = smul.addr %s2199, 8
      %s2201 = scalar_lea.vmem %s4, %s2200
      %p2202 = scmp.lt.s32.totalorder %s18, 1
      %s2203 = scalar_select %p2202, %s18, 1
      %s2204 = scalar_lea.vmem %s5, %s2203
      %p2205 = scmp.lt.s32.totalorder %s18, 1
      %s2206 = scalar_select %p2205, %s18, 1
      %s2207 = scalar_lea.vmem %s6, %s2206
      // Predicated region
      $region37: #{residual_block_forward.4} parent=35 // pred_check
        %p2208 = pneg %p125
      $region38: #{residual_block_forward.4} parent=35 // pred_check_branch
        %2210 = sbr.rel (%p2208) target = $region40
      $region39: #{residual_block_forward.4} parent=35 // pred_region
        _
      $region40: #{residual_block_forward.4} parent=35 // pred_fallthru
        _
      // Predicated region
      $region41: #{residual_block_forward.4} parent=35 // pred_check
        %p2211 = pneg %p151
      $region42: #{residual_block_forward.4} parent=35 // pred_check_branch
        %2213 = sbr.rel (%p2211) target = $region44
      $region43: #{residual_block_forward.4} parent=35 // pred_region
        _
      $region44: #{residual_block_forward.4} parent=35 // pred_fallthru
        _
      // Predicated region
      $region45: #{residual_block_forward.4} parent=35 // pred_check
        %p2214 = pneg %p177
      $region46: #{residual_block_forward.4} parent=35 // pred_check_branch
        %2216 = sbr.rel (%p2214) target = $region48
      $region47: #{residual_block_forward.4} parent=35 // pred_region
        _
      $region48: #{residual_block_forward.4} parent=35 // pred_fallthru
        _
    $region36: #{residual_block_forward.4} parent=5 // pred_fallthru
      _
    %p2217 = scmp.le.s32.totalorder 2, %s13
    // Predicated region
    $region49: #{residual_block_forward.4} parent=5 // pred_check
      %p2218 = pneg %p2217
    $region50: #{residual_block_forward.4} parent=5 // pred_check_branch
      %2220 = sbr.rel (%p2218) target = $region52
    $region51: #{residual_block_forward.4} parent=5 // pred_region
      %s2221 = ssub.s32 %s13, 2
      // Predicated region
      $region53: #{residual_block_forward.4} parent=51 // pred_check
        %p2222 = pneg %p131
      $region54: #{residual_block_forward.4} parent=51 // pred_check_branch
        %2224 = sbr.rel (%p2222) target = $region56
      $region55: #{residual_block_forward.4} parent=51 // pred_region
        %p2225 = scmp.lt.s32.totalorder %s19, 1
        %s2226 = scalar_select %p2225, %s19, 1
        %s2227 = smul.addr %s2226, 8
        %s2228 = smul.addr %s2227, 8
        %s2229 = scalar_lea.vmem %s4, %s2228
      $region56: #{residual_block_forward.4} parent=51 // pred_fallthru
        _
      // Predicated region
      $region57: #{residual_block_forward.4} parent=51 // pred_check
        %p2230 = pneg %p157
      $region58: #{residual_block_forward.4} parent=51 // pred_check_branch
        %2232 = sbr.rel (%p2230) target = $region60
      $region59: #{residual_block_forward.4} parent=51 // pred_region
        %p2233 = scmp.lt.s32.totalorder %s19, 1
        %s2234 = scalar_select %p2233, %s19, 1
        %s2235 = scalar_lea.vmem %s5, %s2234
      $region60: #{residual_block_forward.4} parent=51 // pred_fallthru
        _
      // Predicated region
      $region61: #{residual_block_forward.4} parent=51 // pred_check
        %p2236 = pneg %p183
      $region62: #{residual_block_forward.4} parent=51 // pred_check_branch
        %2238 = sbr.rel (%p2236) target = $region64
      $region63: #{residual_block_forward.4} parent=51 // pred_region
        %p2239 = scmp.lt.s32.totalorder %s19, 1
        %s2240 = scalar_select %p2239, %s19, 1
        %s2241 = scalar_lea.vmem %s6, %s2240
      $region64: #{residual_block_forward.4} parent=51 // pred_fallthru
        _
    $region52: #{residual_block_forward.4} parent=5 // pred_fallthru
      _
  $region6: #{residual_block_forward.4} parent=0 // loop_footer
    %s17 = sadd.s32 1, %s13
  $region7: #{residual_block_forward.4} parent=0 // loop_footer_branch
    %12 = sbr.rel target = $region3
  $region8: #{residual_block_forward.4} parent=0 // loop_exit
    _

</llo_original>
